<compile_context>
chip_gen: v5e
topology: v5e:2x2
jax: 0.10.0
libtpu: 0.0.40
codegen_flags: <defaults>
</compile_context>

<pallas_src>
import functools

import numpy as np
import jax
import jax.numpy as jnp
from jax.experimental import pallas as pl
from jax.experimental.pallas import tpu as pltpu

_HP = jax.lax.Precision.HIGHEST      # only for the exact pool-gather matmuls + pure-JAX reference
_NW = 11                             # number of per-layer weight arrays fed to the fused kernel


# ----------------------------------------------------------------------------
# in-kernel math helpers
# ----------------------------------------------------------------------------
def _erf(x):
    # Abramowitz & Stegun 7.1.26 (|err| < 1.5e-7): matches torch's exact (erf-based) nn.GELU.
    a1, a2, a3, a4, a5 = 0.254829592, -0.284496736, 1.421413741, -1.453152027, 1.061405429
    p = 0.3275911
    s = jnp.where(x >= 0.0, 1.0, -1.0)
    ax = jnp.abs(x)
    t = pl.reciprocal(1.0 + p * ax, approx=True)          # EUP slot
    poly = ((((a5 * t + a4) * t + a3) * t + a2) * t + a1) * t
    return s * (1.0 - poly * jnp.exp(-ax * ax))


def _expm1(y):
    # Cancellation-free expm1 built only from guaranteed-to-lower ops:
    # cubic series for |y| < 0.02 (err < 1e-8), exp(y)-1 elsewhere.
    series = y * (1.0 + y * (0.5 + y * (1.0 / 6.0)))
    return jnp.where(jnp.abs(y) < 0.02, series, jnp.exp(y) - 1.0)


def _pool_selectors(L):
    # 0/1 gather matrices selecting even / odd lanes: MaxPool1d(2,2) with no lane reshapes.
    D = L // 2
    li = jax.lax.broadcasted_iota(jnp.int32, (L, D), 0)
    di = jax.lax.broadcasted_iota(jnp.int32, (L, D), 1)
    s_even = jnp.where(li == 2 * di, 1.0, 0.0)
    s_odd = jnp.where(li == 2 * di + 1, 1.0, 0.0)
    return s_even, s_odd


def _maxpool_lane(x, s_even, s_odd):
    # MaxPool1d(kernel=2, stride=2) along the last (lane) dim via two 0/1 gather matmuls.
    ev = jnp.dot(x, s_even, precision=_HP, preferred_element_type=jnp.float32)
    od = jnp.dot(x, s_odd, precision=_HP, preferred_element_type=jnp.float32)
    return jnp.maximum(ev, od)


def _attention(x_cg, wqkv, wout, bout, ho_s, heads, dim_head):
    """Multi-head self-attention over the C tokens + residual (scale pre-folded into Wq)."""
    inner = heads * dim_head
    qkv = jnp.dot(x_cg, wqkv, preferred_element_type=jnp.float32)          # (C, 3*inner)
    for h in range(heads):
        lo = h * dim_head
        qh = qkv[:, lo:lo + dim_head]
        kh = qkv[:, inner + lo:inner + lo + dim_head]
        vh = qkv[:, 2 * inner + lo:2 * inner + lo + dim_head]
        dots = jax.lax.dot_general(qh, kh, (((1,), (1,)), ((), ())),
                                   preferred_element_type=jnp.float32)     # (C, C)
        dots = dots - jnp.max(dots, axis=-1, keepdims=True)
        e = jnp.exp(dots)
        attn = e * pl.reciprocal(jnp.sum(e, axis=-1, keepdims=True), approx=True)
        ho_s[:, lo:lo + dim_head] = jnp.dot(attn, vh, preferred_element_type=jnp.float32)
    o = ho_s[...]                                                          # (C, inner)
    return jnp.dot(o, wout, preferred_element_type=jnp.float32) + bout + x_cg


def _conv_bn_elu_pool(x, w_eff, shift_eff, pad_s, st_s, K, sel):
    """Conv1d('same') as one im2col matmul + folded eval-BN + ELU + MaxPool1d(2,2)."""
    C, L = x.shape
    P = (K - 1) // 2
    pad_s[...] = jnp.zeros_like(pad_s)            # zero-pad buffer (VMEM scratch)
    pad_s[:, P:P + L] = x
    for k in range(K):                            # build (K*C, L) im2col matrix in VMEM
        st_s[k * C:(k + 1) * C, :L] = pad_s[:, k:k + L]
    y = jnp.dot(w_eff, st_s[:, :L], preferred_element_type=jnp.float32) + shift_eff
    y = jnp.where(y > 0.0, y, _expm1(y))          # ELU(alpha=1)
    return _maxpool_lane(y, *sel)                 # (C, L//2)


def _ff(x_cg, x_fg, ln_g, ln_b, w1, b1, w2, b2):
    """LayerNorm -> Linear -> GELU(exact) -> Linear, + residual with x_fg."""
    mu = jnp.mean(x_cg, axis=-1, keepdims=True)
    xc = x_cg - mu
    var = jnp.mean(xc * xc, axis=-1, keepdims=True)
    xn = xc * jax.lax.rsqrt(var + 1e-5) * ln_g + ln_b
    h = jnp.dot(xn, w1, preferred_element_type=jnp.float32) + b1
    h = 0.5 * h * (1.0 + _erf(h * 0.7071067811865476))
    y = jnp.dot(h, w2, preferred_element_type=jnp.float32) + b2
    return y + x_fg


# ----------------------------------------------------------------------------
# the single fused kernel (both layers, one batch element per grid step)
# ----------------------------------------------------------------------------
def fused_kernel(*args, heads, dim_head, K, depth):
    x_ref = args[0]
    w_refs = args[1:1 + depth * _NW]
    o_x_ref, o_info_ref = args[1 + depth * _NW:3 + depth * _NW]
    pad_s, st_s, ho_s = args[3 + depth * _NW:]

    x = x_ref[0]                                   # (C, L0) resident in vregs/VMEM
    for l in range(depth):
        (wqkv, wout, bout, ln_g, ln_b, w1, b1, w2, b2,
         conv_w, conv_shift) = tuple(r[...] for r in w_refs[l * _NW:(l + 1) * _NW])
        sel = _pool_selectors(x.shape[-1])                                 # shared by both pools
        x_cg = _maxpool_lane(x, *sel)                                      # pool(x)
        x_cg = _attention(x_cg, wqkv, wout, bout, ho_s, heads, dim_head)   # attn + residual
        x_fg = _conv_bn_elu_pool(x, conv_w, conv_shift, pad_s, st_s, K, sel)  # cnn branch
        o_info_ref[0, l] = jnp.log(jnp.mean(x_fg * x_fg, axis=-1, keepdims=True))  # get_info
        x = _ff(x_cg, x_fg, ln_g, ln_b, w1, b1, w2, b2)                    # ff + x_fg
    o_x_ref[0] = x


# ----------------------------------------------------------------------------
# host-side wrappers
# ----------------------------------------------------------------------------
def fuse_params(params, heads, dim_head):
    """One-time host repack: fold softmax scale into Wq; fold conv bias + eval-BN into the
    im2col conv weight / per-channel shift."""
    inner = heads * dim_head
    scale = float(dim_head) ** -0.5
    flat = []
    for p in params:
        wqkv = p['wqkv'].at[:, :inner].multiply(scale)
        K, C, _ = p['conv_w'].shape
        w_im2col = jnp.transpose(p['conv_w'], (1, 0, 2)).reshape(C, K * C)   # (Cout, K*Cin)
        w_eff = w_im2col * p['bn_scale']
        shift_eff = p['conv_b'] * p['bn_scale'] + p['bn_shift']
        flat += [wqkv, p['wout'], p['bout'], p['ln_g'], p['ln_b'],
                 p['w1'], p['b1'], p['w2'], p['b2'], w_eff, shift_eff]
    return flat


def pallas_forward(x, flat_params, *, heads, dim_head, depth, K):
    B, C, L0 = x.shape
    L_final = L0 // (2 ** depth)
    inner = heads * dim_head

    kern = functools.partial(fused_kernel, heads=heads, dim_head=dim_head, K=K, depth=depth)
    in_specs = [pl.BlockSpec((1, C, L0), lambda b: (b, 0, 0))]
    in_specs += [pl.BlockSpec(w.shape, lambda b: (0, 0)) for w in flat_params]

    o_x, o_info = pl.pallas_call(
        kern,
        out_shape=(jax.ShapeDtypeStruct((B, C, L_final), jnp.float32),
                   jax.ShapeDtypeStruct((B, depth, C, 1), jnp.float32)),
        grid=(B,),
        in_specs=in_specs,
        out_specs=(pl.BlockSpec((1, C, L_final), lambda b: (b, 0, 0)),
                   pl.BlockSpec((1, depth, C, 1), lambda b: (b, 0, 0, 0))),
        scratch_shapes=[
            pltpu.VMEM((C, L0 + K - 1), jnp.float32),   # zero-padded conv input
            pltpu.VMEM((K * C, L0), jnp.float32),       # im2col stacked matrix
            pltpu.VMEM((C, inner), jnp.float32),        # concatenated per-head attn outputs
        ],
        compiler_params=pltpu.CompilerParams(dimension_semantics=("parallel",)),
    )(x, *flat_params)

    # tiny final glue (runs once on (B, 64)/(B, 16) arrays)
    x_flat = o_x.reshape(B, C * L_final)
    x_dense = o_info[:, :, :, 0].reshape(B, depth * C)
    return jnp.concatenate([x_flat, x_dense], axis=-1)


# ----------------------------------------------------------------------------
# deterministic parameter init (synthetic, shapes match the PyTorch module)
# ----------------------------------------------------------------------------
def init_params(key, dim0, depth, heads, dim_head, mlp_dim, in_chan, K):
    inner = heads * dim_head
    params = []
    d = dim0
    for i in range(depth):
        d = int(d * 0.5)
        keys = jax.random.split(jax.random.fold_in(key, i), 12)
        p = {}
        p['wqkv'] = jax.random.normal(keys[0], (d, 3 * inner), jnp.float32) / np.sqrt(d)
        p['wout'] = jax.random.normal(keys[1], (inner, d), jnp.float32) / np.sqrt(inner)
        p['bout'] = 0.02 * jax.random.normal(keys[2], (1, d), jnp.float32)
        p['ln_g'] = 1.0 + 0.1 * jax.random.normal(keys[3], (1, d), jnp.float32)
        p['ln_b'] = 0.1 * jax.random.normal(keys[4], (1, d), jnp.float32)
        p['w1'] = jax.random.normal(keys[5], (d, mlp_dim), jnp.float32) / np.sqrt(d)
        p['b1'] = 0.02 * jax.random.normal(keys[6], (1, mlp_dim), jnp.float32)
        p['w2'] = jax.random.normal(keys[7], (mlp_dim, d), jnp.float32) / np.sqrt(mlp_dim)
        p['b2'] = 0.02 * jax.random.normal(keys[8], (1, d), jnp.float32)
        # conv weight stored as (K, C_out, C_in)  (torch layout is (C_out, C_in, K))
        p['conv_w'] = jax.random.normal(keys[9], (K, in_chan, in_chan), jnp.float32) \
            / np.sqrt(in_chan * K)
        p['conv_b'] = 0.02 * jax.random.normal(keys[10], (in_chan, 1), jnp.float32)
        bn_g = 1.0 + 0.1 * jax.random.normal(keys[11], (in_chan, 1), jnp.float32)
        bn_b = jnp.zeros((in_chan, 1), jnp.float32)
        bn_mean = jnp.zeros((in_chan, 1), jnp.float32)   # eval-mode running stats
        bn_var = jnp.ones((in_chan, 1), jnp.float32)
        p['bn_scale'] = bn_g / jnp.sqrt(bn_var + 1e-5)
        p['bn_shift'] = bn_b - bn_mean * p['bn_scale']
        params.append(p)
    return params


# ----------------------------------------------------------------------------
# pure-JAX reference (mirrors the PyTorch forward, eval mode)
# ----------------------------------------------------------------------------
def ref_forward(x, params, heads, dim_head):
    dense = []
    for p in params:
        B, C, L = x.shape
        D = L // 2
        x_cg = jnp.max(x.reshape(B, C, D, 2), axis=-1)
        inner = heads * dim_head
        qkv = jnp.einsum('bnd,de->bne', x_cg, p['wqkv'], precision=_HP)
        q, k, v = jnp.split(qkv, 3, axis=-1)
        sh = lambda t: t.reshape(B, C, heads, dim_head).transpose(0, 2, 1, 3)
        q, k, v = sh(q), sh(k), sh(v)
        dots = jnp.einsum('bhnd,bhmd->bhnm', q, k, precision=_HP) * (dim_head ** -0.5)
        attn = jax.nn.softmax(dots, axis=-1)
        o = jnp.einsum('bhnm,bhmd->bhnd', attn, v, precision=_HP)
        o = o.transpose(0, 2, 1, 3).reshape(B, C, inner)
        x_cg = jnp.einsum('bni,id->bnd', o, p['wout'], precision=_HP) + p['bout'][0] + x_cg
        K = p['conv_w'].shape[0]
        P = (K - 1) // 2
        xp = jnp.pad(x, ((0, 0), (0, 0), (P, P)))
        conv = jnp.zeros((B, C, L), jnp.float32)
        for kk in range(K):
            conv = conv + jnp.einsum('oi,bil->bol', p['conv_w'][kk],
                                     xp[:, :, kk:kk + L], precision=_HP)
        conv = conv + p['conv_b'][None]
        conv = conv * p['bn_scale'][None] + p['bn_shift'][None]
        conv = jnp.where(conv > 0, conv, jnp.expm1(conv))            # ELU(alpha=1)
        x_fg = jnp.max(conv.reshape(B, C, D, 2), axis=-1)
        dense.append(jnp.log(jnp.mean(x_fg * x_fg, axis=-1)))        # get_info
        mu = jnp.mean(x_cg, axis=-1, keepdims=True)
        var = jnp.mean((x_cg - mu) ** 2, axis=-1, keepdims=True)
        xn = (x_cg - mu) / jnp.sqrt(var + 1e-5) * p['ln_g'][0] + p['ln_b'][0]
        h = jnp.einsum('bnd,dh->bnh', xn, p['w1'], precision=_HP) + p['b1'][0]
        h = jax.nn.gelu(h, approximate=False)
        y = jnp.einsum('bnh,hd->bnd', h, p['w2'], precision=_HP) + p['b2'][0]
        x = y + x_fg
    x_dense = jnp.concatenate(dense, axis=-1)
    return jnp.concatenate([x.reshape(x.shape[0], -1), x_dense], axis=-1)


# ----------------------------------------------------------------------------
if __name__ == "__main__":
    # Transformer(dim=32, depth=2, heads=2, dim_head=8, mlp_dim=16, in_chan=8,
    #             fine_grained_kernel=11, dropout=0.0); input x: (B=2, in_chan=8, L=32)
    B, C, L0 = 2, 8, 32
    depth, heads, dim_head, mlp_dim, K = 2, 2, 8, 16, 11

    key = jax.random.PRNGKey(0)
    kx, kp = jax.random.split(key)
    x = jax.random.normal(kx, (B, C, L0), jnp.float32)
    params = init_params(kp, L0, depth, heads, dim_head, mlp_dim, C, K)
    flat_params = fuse_params(params, heads, dim_head)

    run = jax.jit(functools.partial(pallas_forward, heads=heads, dim_head=dim_head,
                                    depth=depth, K=K))
    emd = jax.block_until_ready(run(x, flat_params))

    L_final = L0 // (2 ** depth)
    assert emd.shape == (B, C * L_final + C * depth), emd.shape

    emd_ref = ref_forward(x, params, heads, dim_head)
    np.testing.assert_allclose(np.asarray(emd), np.asarray(emd_ref), rtol=2e-2, atol=2e-2)

    print("KERNEL_OK")
</pallas_src>

<mosaic_0001>
module attributes {stable_mosaic.version = 11 : i64} {
  func.func @fused_kernel(%arg0: i32, %arg1: memref<1x8x32xf32, #tpu.memory_space<vmem>>, %arg2: memref<16x48xf32, #tpu.memory_space<vmem>>, %arg3: memref<16x16xf32, #tpu.memory_space<vmem>>, %arg4: memref<1x16xf32, #tpu.memory_space<vmem>>, %arg5: memref<1x16xf32, #tpu.memory_space<vmem>>, %arg6: memref<1x16xf32, #tpu.memory_space<vmem>>, %arg7: memref<16x16xf32, #tpu.memory_space<vmem>>, %arg8: memref<1x16xf32, #tpu.memory_space<vmem>>, %arg9: memref<16x16xf32, #tpu.memory_space<vmem>>, %arg10: memref<1x16xf32, #tpu.memory_space<vmem>>, %arg11: memref<8x88xf32, #tpu.memory_space<vmem>>, %arg12: memref<8x1xf32, #tpu.memory_space<vmem>>, %arg13: memref<8x48xf32, #tpu.memory_space<vmem>>, %arg14: memref<16x8xf32, #tpu.memory_space<vmem>>, %arg15: memref<1x8xf32, #tpu.memory_space<vmem>>, %arg16: memref<1x8xf32, #tpu.memory_space<vmem>>, %arg17: memref<1x8xf32, #tpu.memory_space<vmem>>, %arg18: memref<8x16xf32, #tpu.memory_space<vmem>>, %arg19: memref<1x16xf32, #tpu.memory_space<vmem>>, %arg20: memref<16x8xf32, #tpu.memory_space<vmem>>, %arg21: memref<1x8xf32, #tpu.memory_space<vmem>>, %arg22: memref<8x88xf32, #tpu.memory_space<vmem>>, %arg23: memref<8x1xf32, #tpu.memory_space<vmem>>, %arg24: memref<1x8x8xf32, #tpu.memory_space<vmem>>, %arg25: memref<1x2x8x1xf32, #tpu.memory_space<vmem>>, %arg26: memref<8x42xf32, #tpu.memory_space<vmem>>, %arg27: memref<88x32xf32, #tpu.memory_space<vmem>>, %arg28: memref<8x16xf32, #tpu.memory_space<vmem>>) attributes {dimension_semantics = [#tpu.dimension_semantics<parallel>], iteration_bounds = array<i64: 2>, scalar_prefetch = 0 : i64, scratch_operands = 3 : i64, tpu.core_type = #tpu.core_type<tc>, window_params = [{transform_indices = @transform_0, window_bounds = array<i64: 1, 8, 32>}, {pipeline_mode = #tpu.pipeline_mode<synchronous>, transform_indices = @transform_1, window_bounds = array<i64: 16, 48>}, {pipeline_mode = #tpu.pipeline_mode<synchronous>, transform_indices = @transform_2, window_bounds = array<i64: 16, 16>}, {pipeline_mode = #tpu.pipeline_mode<synchronous>, transform_indices = @transform_3, window_bounds = array<i64: 1, 16>}, {pipeline_mode = #tpu.pipeline_mode<synchronous>, transform_indices = @transform_4, window_bounds = array<i64: 1, 16>}, {pipeline_mode = #tpu.pipeline_mode<synchronous>, transform_indices = @transform_5, window_bounds = array<i64: 1, 16>}, {pipeline_mode = #tpu.pipeline_mode<synchronous>, transform_indices = @transform_6, window_bounds = array<i64: 16, 16>}, {pipeline_mode = #tpu.pipeline_mode<synchronous>, transform_indices = @transform_7, window_bounds = array<i64: 1, 16>}, {pipeline_mode = #tpu.pipeline_mode<synchronous>, transform_indices = @transform_8, window_bounds = array<i64: 16, 16>}, {pipeline_mode = #tpu.pipeline_mode<synchronous>, transform_indices = @transform_9, window_bounds = array<i64: 1, 16>}, {pipeline_mode = #tpu.pipeline_mode<synchronous>, transform_indices = @transform_10, window_bounds = array<i64: 8, 88>}, {pipeline_mode = #tpu.pipeline_mode<synchronous>, transform_indices = @transform_11, window_bounds = array<i64: 8, 1>}, {pipeline_mode = #tpu.pipeline_mode<synchronous>, transform_indices = @transform_12, window_bounds = array<i64: 8, 48>}, {pipeline_mode = #tpu.pipeline_mode<synchronous>, transform_indices = @transform_13, window_bounds = array<i64: 16, 8>}, {pipeline_mode = #tpu.pipeline_mode<synchronous>, transform_indices = @transform_14, window_bounds = array<i64: 1, 8>}, {pipeline_mode = #tpu.pipeline_mode<synchronous>, transform_indices = @transform_15, window_bounds = array<i64: 1, 8>}, {pipeline_mode = #tpu.pipeline_mode<synchronous>, transform_indices = @transform_16, window_bounds = array<i64: 1, 8>}, {pipeline_mode = #tpu.pipeline_mode<synchronous>, transform_indices = @transform_17, window_bounds = array<i64: 8, 16>}, {pipeline_mode = #tpu.pipeline_mode<synchronous>, transform_indices = @transform_18, window_bounds = array<i64: 1, 16>}, {pipeline_mode = #tpu.pipeline_mode<synchronous>, transform_indices = @transform_19, window_bounds = array<i64: 16, 8>}, {pipeline_mode = #tpu.pipeline_mode<synchronous>, transform_indices = @transform_20, window_bounds = array<i64: 1, 8>}, {pipeline_mode = #tpu.pipeline_mode<synchronous>, transform_indices = @transform_21, window_bounds = array<i64: 8, 88>}, {pipeline_mode = #tpu.pipeline_mode<synchronous>, transform_indices = @transform_22, window_bounds = array<i64: 8, 1>}, {transform_indices = @transform_23, window_bounds = array<i64: 1, 8, 8>}, {transform_indices = @transform_24, window_bounds = array<i64: 1, 2, 8, 1>}]} {
    %c0 = arith.constant 0 : index
    %c0_0 = arith.constant 0 : index
    %c0_1 = arith.constant 0 : index
    %0 = vector.load %arg1[%c0, %c0_0, %c0_1] : memref<1x8x32xf32, #tpu.memory_space<vmem>>, vector<1x8x32xf32>
    %1 = vector.shape_cast %0 : vector<1x8x32xf32> to vector<8x32xf32>
    %c0_2 = arith.constant 0 : index
    %c0_3 = arith.constant 0 : index
    %2 = vector.load %arg2[%c0_2, %c0_3] : memref<16x48xf32, #tpu.memory_space<vmem>>, vector<16x48xf32>
    %c0_4 = arith.constant 0 : index
    %c0_5 = arith.constant 0 : index
    %3 = vector.load %arg3[%c0_4, %c0_5] : memref<16x16xf32, #tpu.memory_space<vmem>>, vector<16x16xf32>
    %c0_6 = arith.constant 0 : index
    %c0_7 = arith.constant 0 : index
    %4 = vector.load %arg4[%c0_6, %c0_7] : memref<1x16xf32, #tpu.memory_space<vmem>>, vector<1x16xf32>
    %c0_8 = arith.constant 0 : index
    %c0_9 = arith.constant 0 : index
    %5 = vector.load %arg5[%c0_8, %c0_9] : memref<1x16xf32, #tpu.memory_space<vmem>>, vector<1x16xf32>
    %c0_10 = arith.constant 0 : index
    %c0_11 = arith.constant 0 : index
    %6 = vector.load %arg6[%c0_10, %c0_11] : memref<1x16xf32, #tpu.memory_space<vmem>>, vector<1x16xf32>
    %c0_12 = arith.constant 0 : index
    %c0_13 = arith.constant 0 : index
    %7 = vector.load %arg7[%c0_12, %c0_13] : memref<16x16xf32, #tpu.memory_space<vmem>>, vector<16x16xf32>
    %c0_14 = arith.constant 0 : index
    %c0_15 = arith.constant 0 : index
    %8 = vector.load %arg8[%c0_14, %c0_15] : memref<1x16xf32, #tpu.memory_space<vmem>>, vector<1x16xf32>
    %c0_16 = arith.constant 0 : index
    %c0_17 = arith.constant 0 : index
    %9 = vector.load %arg9[%c0_16, %c0_17] : memref<16x16xf32, #tpu.memory_space<vmem>>, vector<16x16xf32>
    %c0_18 = arith.constant 0 : index
    %c0_19 = arith.constant 0 : index
    %10 = vector.load %arg10[%c0_18, %c0_19] : memref<1x16xf32, #tpu.memory_space<vmem>>, vector<1x16xf32>
    %c0_20 = arith.constant 0 : index
    %c0_21 = arith.constant 0 : index
    %11 = vector.load %arg11[%c0_20, %c0_21] : memref<8x88xf32, #tpu.memory_space<vmem>>, vector<8x88xf32>
    %c0_22 = arith.constant 0 : index
    %c0_23 = arith.constant 0 : index
    %12 = vector.load %arg12[%c0_22, %c0_23] : memref<8x1xf32, #tpu.memory_space<vmem>>, vector<8x1xf32>
    %13 = tpu.iota {dimensions = array<i32: 0>} : vector<32x16xi32>
    %14 = tpu.iota {dimensions = array<i32: 1>} : vector<32x16xi32>
    %c2_i32 = arith.constant 2 : i32
    %15 = vector.broadcast %c2_i32 : i32 to vector<32x16xi32>
    %16 = arith.muli %15, %14 : vector<32x16xi32>
    %17 = arith.cmpi eq, %13, %16 : vector<32x16xi32>
    %cst = arith.constant 1.000000e+00 : f32
    %cst_24 = arith.constant 0.000000e+00 : f32
    %18 = vector.broadcast %cst : f32 to vector<32x16xf32>
    %19 = vector.broadcast %cst_24 : f32 to vector<32x16xf32>
    %20 = arith.select %17, %18, %19 : vector<32x16xi1>, vector<32x16xf32>
    %c2_i32_25 = arith.constant 2 : i32
    %21 = vector.broadcast %c2_i32_25 : i32 to vector<32x16xi32>
    %22 = arith.muli %21, %14 : vector<32x16xi32>
    %c1_i32 = arith.constant 1 : i32
    %23 = vector.broadcast %c1_i32 : i32 to vector<32x16xi32>
    %24 = arith.addi %22, %23 : vector<32x16xi32>
    %25 = arith.cmpi eq, %13, %24 : vector<32x16xi32>
    %cst_26 = arith.constant 1.000000e+00 : f32
    %cst_27 = arith.constant 0.000000e+00 : f32
    %26 = vector.broadcast %cst_26 : f32 to vector<32x16xf32>
    %27 = vector.broadcast %cst_27 : f32 to vector<32x16xf32>
    %28 = arith.select %25, %26, %27 : vector<32x16xi1>, vector<32x16xf32>
    %cst_28 = arith.constant dense<0.000000e+00> : vector<8x16xf32>
    %29 = tpu.matmul %1, %20, %cst_28 {dimension_numbers = #tpu.dot_dimension_numbers<[1], [0], [0], [1], [0, 0, 1, 1], [], []>, precision = #tpu.contract_precision<fp32>} : vector<8x32xf32>, vector<32x16xf32>, vector<8x16xf32> -> vector<8x16xf32>
    %cst_29 = arith.constant dense<0.000000e+00> : vector<8x16xf32>
    %30 = tpu.matmul %1, %28, %cst_29 {dimension_numbers = #tpu.dot_dimension_numbers<[1], [0], [0], [1], [0, 0, 1, 1], [], []>, precision = #tpu.contract_precision<fp32>} : vector<8x32xf32>, vector<32x16xf32>, vector<8x16xf32> -> vector<8x16xf32>
    %31 = arith.maximumf %29, %30 : vector<8x16xf32>
    %cst_30 = arith.constant dense<0.000000e+00> : vector<8x48xf32>
    %32 = tpu.matmul %31, %2, %cst_30 {dimension_numbers = #tpu.dot_dimension_numbers<[1], [0], [0], [1], [0, 0, 1, 1], [], []>} : vector<8x16xf32>, vector<16x48xf32>, vector<8x48xf32> -> vector<8x48xf32>
    %33 = vector.extract_strided_slice %32 {offsets = [0, 0], sizes = [8, 8], strides = [1, 1]} : vector<8x48xf32> to vector<8x8xf32>
    %34 = vector.extract_strided_slice %32 {offsets = [0, 16], sizes = [8, 8], strides = [1, 1]} : vector<8x48xf32> to vector<8x8xf32>
    %35 = vector.extract_strided_slice %32 {offsets = [0, 32], sizes = [8, 8], strides = [1, 1]} : vector<8x48xf32> to vector<8x8xf32>
    %cst_31 = arith.constant dense<0.000000e+00> : vector<8x8xf32>
    %36 = tpu.matmul %33, %34, %cst_31 {dimension_numbers = #tpu.dot_dimension_numbers<[1], [1], [0], [0], [0, 0, 1, 0], [], []>} : vector<8x8xf32>, vector<8x8xf32>, vector<8x8xf32> -> vector<8x8xf32>
    %cst_32 = arith.constant dense<0xFF800000> : vector<8xf32>
    %37 = vector.multi_reduction <maximumf>, %36, %cst_32 [1] : vector<8x8xf32> to vector<8xf32>
    %38 = vector.shape_cast %37 : vector<8xf32> to vector<8x1xf32>
    %39 = vector.broadcast %38 : vector<8x1xf32> to vector<8x8xf32>
    %40 = arith.subf %36, %39 : vector<8x8xf32>
    %41 = math.exp %40 : vector<8x8xf32>
    %cst_33 = arith.constant dense<0.000000e+00> : vector<8xf32>
    %42 = vector.multi_reduction <add>, %41, %cst_33 [1] : vector<8x8xf32> to vector<8xf32>
    %43 = vector.shape_cast %42 : vector<8xf32> to vector<8x1xf32>
    %44 = tpu.reciprocal %43 {approx = true} : vector<8x1xf32> -> vector<8x1xf32>
    %45 = vector.broadcast %44 : vector<8x1xf32> to vector<8x8xf32>
    %46 = arith.mulf %41, %45 : vector<8x8xf32>
    %cst_34 = arith.constant dense<0.000000e+00> : vector<8x8xf32>
    %47 = tpu.matmul %46, %35, %cst_34 {dimension_numbers = #tpu.dot_dimension_numbers<[1], [0], [0], [1], [0, 0, 1, 1], [], []>} : vector<8x8xf32>, vector<8x8xf32>, vector<8x8xf32> -> vector<8x8xf32>
    %c0_35 = arith.constant 0 : index
    %c0_36 = arith.constant 0 : index
    %48 = vector.load %arg28[%c0_35, %c0_36] : memref<8x16xf32, #tpu.memory_space<vmem>>, vector<8x8xf32>
    tpu.vector_store %arg28[%c0_35, %c0_36], %47 {strides = array<i32>} : memref<8x16xf32, #tpu.memory_space<vmem>>, vector<8x8xf32>,
    %49 = vector.extract_strided_slice %32 {offsets = [0, 8], sizes = [8, 8], strides = [1, 1]} : vector<8x48xf32> to vector<8x8xf32>
    %50 = vector.extract_strided_slice %32 {offsets = [0, 24], sizes = [8, 8], strides = [1, 1]} : vector<8x48xf32> to vector<8x8xf32>
    %51 = vector.extract_strided_slice %32 {offsets = [0, 40], sizes = [8, 8], strides = [1, 1]} : vector<8x48xf32> to vector<8x8xf32>
    %cst_37 = arith.constant dense<0.000000e+00> : vector<8x8xf32>
    %52 = tpu.matmul %49, %50, %cst_37 {dimension_numbers = #tpu.dot_dimension_numbers<[1], [1], [0], [0], [0, 0, 1, 0], [], []>} : vector<8x8xf32>, vector<8x8xf32>, vector<8x8xf32> -> vector<8x8xf32>
    %cst_38 = arith.constant dense<0xFF800000> : vector<8xf32>
    %53 = vector.multi_reduction <maximumf>, %52, %cst_38 [1] : vector<8x8xf32> to vector<8xf32>
    %54 = vector.shape_cast %53 : vector<8xf32> to vector<8x1xf32>
    %55 = vector.broadcast %54 : vector<8x1xf32> to vector<8x8xf32>
    %56 = arith.subf %52, %55 : vector<8x8xf32>
    %57 = math.exp %56 : vector<8x8xf32>
    %cst_39 = arith.constant dense<0.000000e+00> : vector<8xf32>
    %58 = vector.multi_reduction <add>, %57, %cst_39 [1] : vector<8x8xf32> to vector<8xf32>
    %59 = vector.shape_cast %58 : vector<8xf32> to vector<8x1xf32>
    %60 = tpu.reciprocal %59 {approx = true} : vector<8x1xf32> -> vector<8x1xf32>
    %61 = vector.broadcast %60 : vector<8x1xf32> to vector<8x8xf32>
    %62 = arith.mulf %57, %61 : vector<8x8xf32>
    %cst_40 = arith.constant dense<0.000000e+00> : vector<8x8xf32>
    %63 = tpu.matmul %62, %51, %cst_40 {dimension_numbers = #tpu.dot_dimension_numbers<[1], [0], [0], [1], [0, 0, 1, 1], [], []>} : vector<8x8xf32>, vector<8x8xf32>, vector<8x8xf32> -> vector<8x8xf32>
    %c0_41 = arith.constant 0 : index
    %c8 = arith.constant 8 : index
    %64 = vector.load %arg28[%c0_41, %c8] : memref<8x16xf32, #tpu.memory_space<vmem>>, vector<8x8xf32>
    tpu.vector_store %arg28[%c0_41, %c8], %63 {strides = array<i32>} : memref<8x16xf32, #tpu.memory_space<vmem>>, vector<8x8xf32>,
    %c0_42 = arith.constant 0 : index
    %c0_43 = arith.constant 0 : index
    %65 = vector.load %arg28[%c0_42, %c0_43] : memref<8x16xf32, #tpu.memory_space<vmem>>, vector<8x16xf32>
    %cst_44 = arith.constant dense<0.000000e+00> : vector<8x16xf32>
    %66 = tpu.matmul %65, %3, %cst_44 {dimension_numbers = #tpu.dot_dimension_numbers<[1], [0], [0], [1], [0, 0, 1, 1], [], []>} : vector<8x16xf32>, vector<16x16xf32>, vector<8x16xf32> -> vector<8x16xf32>
    %67 = vector.broadcast %4 : vector<1x16xf32> to vector<8x16xf32>
    %68 = arith.addf %66, %67 : vector<8x16xf32>
    %69 = arith.addf %68, %31 : vector<8x16xf32>
    %cst_45 = arith.constant 0.000000e+00 : f32
    %70 = vector.broadcast %cst_45 : f32 to vector<8x42xf32>
    %c0_46 = arith.constant 0 : index
    %c0_47 = arith.constant 0 : index
    %71 = vector.load %arg26[%c0_46, %c0_47] : memref<8x42xf32, #tpu.memory_space<vmem>>, vector<8x42xf32>
    tpu.vector_store %arg26[%c0_46, %c0_47], %70 {strides = array<i32>} : memref<8x42xf32, #tpu.memory_space<vmem>>, vector<8x42xf32>,
    %c0_48 = arith.constant 0 : index
    %c5 = arith.constant 5 : index
    %72 = vector.load %arg26[%c0_48, %c5] : memref<8x42xf32, #tpu.memory_space<vmem>>, vector<8x32xf32>
    tpu.vector_store %arg26[%c0_48, %c5], %1 {strides = array<i32>} : memref<8x42xf32, #tpu.memory_space<vmem>>, vector<8x32xf32>,
    %c0_49 = arith.constant 0 : index
    %c0_50 = arith.constant 0 : index
    %73 = vector.load %arg26[%c0_49, %c0_50] : memref<8x42xf32, #tpu.memory_space<vmem>>, vector<8x32xf32>
    %c0_51 = arith.constant 0 : index
    %c0_52 = arith.constant 0 : index
    %74 = vector.load %arg27[%c0_51, %c0_52] : memref<88x32xf32, #tpu.memory_space<vmem>>, vector<8x32xf32>
    tpu.vector_store %arg27[%c0_51, %c0_52], %73 {strides = array<i32>} : memref<88x32xf32, #tpu.memory_space<vmem>>, vector<8x32xf32>,
    %c0_53 = arith.constant 0 : index
    %c1 = arith.constant 1 : index
    %75 = vector.load %arg26[%c0_53, %c1] : memref<8x42xf32, #tpu.memory_space<vmem>>, vector<8x32xf32>
    %c8_54 = arith.constant 8 : index
    %c0_55 = arith.constant 0 : index
    %76 = vector.load %arg27[%c8_54, %c0_55] : memref<88x32xf32, #tpu.memory_space<vmem>>, vector<8x32xf32>
    tpu.vector_store %arg27[%c8_54, %c0_55], %75 {strides = array<i32>} : memref<88x32xf32, #tpu.memory_space<vmem>>, vector<8x32xf32>,
    %c0_56 = arith.constant 0 : index
    %c2 = arith.constant 2 : index
    %77 = vector.load %arg26[%c0_56, %c2] : memref<8x42xf32, #tpu.memory_space<vmem>>, vector<8x32xf32>
    %c16 = arith.constant 16 : index
    %c0_57 = arith.constant 0 : index
    %78 = vector.load %arg27[%c16, %c0_57] : memref<88x32xf32, #tpu.memory_space<vmem>>, vector<8x32xf32>
    tpu.vector_store %arg27[%c16, %c0_57], %77 {strides = array<i32>} : memref<88x32xf32, #tpu.memory_space<vmem>>, vector<8x32xf32>,
    %c0_58 = arith.constant 0 : index
    %c3 = arith.constant 3 : index
    %79 = vector.load %arg26[%c0_58, %c3] : memref<8x42xf32, #tpu.memory_space<vmem>>, vector<8x32xf32>
    %c24 = arith.constant 24 : index
    %c0_59 = arith.constant 0 : index
    %80 = vector.load %arg27[%c24, %c0_59] : memref<88x32xf32, #tpu.memory_space<vmem>>, vector<8x32xf32>
    tpu.vector_store %arg27[%c24, %c0_59], %79 {strides = array<i32>} : memref<88x32xf32, #tpu.memory_space<vmem>>, vector<8x32xf32>,
    %c0_60 = arith.constant 0 : index
    %c4 = arith.constant 4 : index
    %81 = vector.load %arg26[%c0_60, %c4] : memref<8x42xf32, #tpu.memory_space<vmem>>, vector<8x32xf32>
    %c32 = arith.constant 32 : index
    %c0_61 = arith.constant 0 : index
    %82 = vector.load %arg27[%c32, %c0_61] : memref<88x32xf32, #tpu.memory_space<vmem>>, vector<8x32xf32>
    tpu.vector_store %arg27[%c32, %c0_61], %81 {strides = array<i32>} : memref<88x32xf32, #tpu.memory_space<vmem>>, vector<8x32xf32>,
    %c0_62 = arith.constant 0 : index
    %c5_63 = arith.constant 5 : index
    %83 = vector.load %arg26[%c0_62, %c5_63] : memref<8x42xf32, #tpu.memory_space<vmem>>, vector<8x32xf32>
    %c40 = arith.constant 40 : index
    %c0_64 = arith.constant 0 : index
    %84 = vector.load %arg27[%c40, %c0_64] : memref<88x32xf32, #tpu.memory_space<vmem>>, vector<8x32xf32>
    tpu.vector_store %arg27[%c40, %c0_64], %83 {strides = array<i32>} : memref<88x32xf32, #tpu.memory_space<vmem>>, vector<8x32xf32>,
    %c0_65 = arith.constant 0 : index
    %c6 = arith.constant 6 : index
    %85 = vector.load %arg26[%c0_65, %c6] : memref<8x42xf32, #tpu.memory_space<vmem>>, vector<8x32xf32>
    %c48 = arith.constant 48 : index
    %c0_66 = arith.constant 0 : index
    %86 = vector.load %arg27[%c48, %c0_66] : memref<88x32xf32, #tpu.memory_space<vmem>>, vector<8x32xf32>
    tpu.vector_store %arg27[%c48, %c0_66], %85 {strides = array<i32>} : memref<88x32xf32, #tpu.memory_space<vmem>>, vector<8x32xf32>,
    %c0_67 = arith.constant 0 : index
    %c7 = arith.constant 7 : index
    %87 = vector.load %arg26[%c0_67, %c7] : memref<8x42xf32, #tpu.memory_space<vmem>>, vector<8x32xf32>
    %c56 = arith.constant 56 : index
    %c0_68 = arith.constant 0 : index
    %88 = vector.load %arg27[%c56, %c0_68] : memref<88x32xf32, #tpu.memory_space<vmem>>, vector<8x32xf32>
    tpu.vector_store %arg27[%c56, %c0_68], %87 {strides = array<i32>} : memref<88x32xf32, #tpu.memory_space<vmem>>, vector<8x32xf32>,
    %c0_69 = arith.constant 0 : index
    %c8_70 = arith.constant 8 : index
    %89 = vector.load %arg26[%c0_69, %c8_70] : memref<8x42xf32, #tpu.memory_space<vmem>>, vector<8x32xf32>
    %c64 = arith.constant 64 : index
    %c0_71 = arith.constant 0 : index
    %90 = vector.load %arg27[%c64, %c0_71] : memref<88x32xf32, #tpu.memory_space<vmem>>, vector<8x32xf32>
    tpu.vector_store %arg27[%c64, %c0_71], %89 {strides = array<i32>} : memref<88x32xf32, #tpu.memory_space<vmem>>, vector<8x32xf32>,
    %c0_72 = arith.constant 0 : index
    %c9 = arith.constant 9 : index
    %91 = vector.load %arg26[%c0_72, %c9] : memref<8x42xf32, #tpu.memory_space<vmem>>, vector<8x32xf32>
    %c72 = arith.constant 72 : index
    %c0_73 = arith.constant 0 : index
    %92 = vector.load %arg27[%c72, %c0_73] : memref<88x32xf32, #tpu.memory_space<vmem>>, vector<8x32xf32>
    tpu.vector_store %arg27[%c72, %c0_73], %91 {strides = array<i32>} : memref<88x32xf32, #tpu.memory_space<vmem>>, vector<8x32xf32>,
    %c0_74 = arith.constant 0 : index
    %c10 = arith.constant 10 : index
    %93 = vector.load %arg26[%c0_74, %c10] : memref<8x42xf32, #tpu.memory_space<vmem>>, vector<8x32xf32>
    %c80 = arith.constant 80 : index
    %c0_75 = arith.constant 0 : index
    %94 = vector.load %arg27[%c80, %c0_75] : memref<88x32xf32, #tpu.memory_space<vmem>>, vector<8x32xf32>
    tpu.vector_store %arg27[%c80, %c0_75], %93 {strides = array<i32>} : memref<88x32xf32, #tpu.memory_space<vmem>>, vector<8x32xf32>,
    %c0_76 = arith.constant 0 : index
    %c0_77 = arith.constant 0 : index
    %95 = vector.load %arg27[%c0_76, %c0_77] : memref<88x32xf32, #tpu.memory_space<vmem>>, vector<88x32xf32>
    %cst_78 = arith.constant dense<0.000000e+00> : vector<8x32xf32>
    %96 = tpu.matmul %11, %95, %cst_78 {dimension_numbers = #tpu.dot_dimension_numbers<[1], [0], [0], [1], [0, 0, 1, 1], [], []>} : vector<8x88xf32>, vector<88x32xf32>, vector<8x32xf32> -> vector<8x32xf32>
    %97 = vector.broadcast %12 : vector<8x1xf32> to vector<8x32xf32>
    %98 = arith.addf %96, %97 : vector<8x32xf32>
    %cst_79 = arith.constant 0.000000e+00 : f32
    %99 = vector.broadcast %cst_79 : f32 to vector<8x32xf32>
    %100 = arith.cmpf ogt, %98, %99 : vector<8x32xf32>
    %cst_80 = arith.constant 0.166666672 : f32
    %101 = vector.broadcast %cst_80 : f32 to vector<8x32xf32>
    %102 = arith.mulf %98, %101 : vector<8x32xf32>
    %cst_81 = arith.constant 5.000000e-01 : f32
    %103 = vector.broadcast %cst_81 : f32 to vector<8x32xf32>
    %104 = arith.addf %103, %102 : vector<8x32xf32>
    %105 = arith.mulf %98, %104 : vector<8x32xf32>
    %cst_82 = arith.constant 1.000000e+00 : f32
    %106 = vector.broadcast %cst_82 : f32 to vector<8x32xf32>
    %107 = arith.addf %106, %105 : vector<8x32xf32>
    %108 = arith.mulf %98, %107 : vector<8x32xf32>
    %109 = math.absf %98 : vector<8x32xf32>
    %cst_83 = arith.constant 2.000000e-02 : f32
    %110 = vector.broadcast %cst_83 : f32 to vector<8x32xf32>
    %111 = arith.cmpf olt, %109, %110 : vector<8x32xf32>
    %112 = math.exp %98 : vector<8x32xf32>
    %cst_84 = arith.constant 1.000000e+00 : f32
    %113 = vector.broadcast %cst_84 : f32 to vector<8x32xf32>
    %114 = arith.subf %112, %113 : vector<8x32xf32>
    %115 = arith.select %111, %108, %114 : vector<8x32xi1>, vector<8x32xf32>
    %116 = arith.select %100, %98, %115 : vector<8x32xi1>, vector<8x32xf32>
    %cst_85 = arith.constant dense<0.000000e+00> : vector<8x16xf32>
    %117 = tpu.matmul %116, %20, %cst_85 {dimension_numbers = #tpu.dot_dimension_numbers<[1], [0], [0], [1], [0, 0, 1, 1], [], []>, precision = #tpu.contract_precision<fp32>} : vector<8x32xf32>, vector<32x16xf32>, vector<8x16xf32> -> vector<8x16xf32>
    %cst_86 = arith.constant dense<0.000000e+00> : vector<8x16xf32>
    %118 = tpu.matmul %116, %28, %cst_86 {dimension_numbers = #tpu.dot_dimension_numbers<[1], [0], [0], [1], [0, 0, 1, 1], [], []>, precision = #tpu.contract_precision<fp32>} : vector<8x32xf32>, vector<32x16xf32>, vector<8x16xf32> -> vector<8x16xf32>
    %119 = arith.maximumf %117, %118 : vector<8x16xf32>
    %120 = arith.mulf %119, %119 : vector<8x16xf32>
    %cst_87 = arith.constant dense<0.000000e+00> : vector<8xf32>
    %121 = vector.multi_reduction <add>, %120, %cst_87 [1] : vector<8x16xf32> to vector<8xf32>
    %122 = vector.shape_cast %121 : vector<8xf32> to vector<8x1xf32>
    %cst_88 = arith.constant 1.600000e+01 : f32
    %123 = vector.broadcast %cst_88 : f32 to vector<8x1xf32>
    %124 = arith.divf %122, %123 : vector<8x1xf32>
    %125 = math.log %124 : vector<8x1xf32>
    %c0_89 = arith.constant 0 : index
    %c0_90 = arith.constant 0 : index
    %c0_91 = arith.constant 0 : index
    %c0_92 = arith.constant 0 : index
    %126 = vector.load %arg25[%c0_89, %c0_90, %c0_91, %c0_92] : memref<1x2x8x1xf32, #tpu.memory_space<vmem>>, vector<1x1x8x1xf32>
    %127 = vector.shape_cast %126 : vector<1x1x8x1xf32> to vector<8x1xf32>
    %128 = vector.shape_cast %125 : vector<8x1xf32> to vector<1x1x8x1xf32>
    tpu.vector_store %arg25[%c0_89, %c0_90, %c0_91, %c0_92], %128 {strides = array<i32>} : memref<1x2x8x1xf32, #tpu.memory_space<vmem>>, vector<1x1x8x1xf32>,
    %cst_93 = arith.constant dense<0.000000e+00> : vector<8xf32>
    %129 = vector.multi_reduction <add>, %69, %cst_93 [1] : vector<8x16xf32> to vector<8xf32>
    %130 = vector.shape_cast %129 : vector<8xf32> to vector<8x1xf32>
    %cst_94 = arith.constant 1.600000e+01 : f32
    %131 = vector.broadcast %cst_94 : f32 to vector<8x1xf32>
    %132 = arith.divf %130, %131 : vector<8x1xf32>
    %133 = vector.broadcast %132 : vector<8x1xf32> to vector<8x16xf32>
    %134 = arith.subf %69, %133 : vector<8x16xf32>
    %135 = arith.mulf %134, %134 : vector<8x16xf32>
    %cst_95 = arith.constant dense<0.000000e+00> : vector<8xf32>
    %136 = vector.multi_reduction <add>, %135, %cst_95 [1] : vector<8x16xf32> to vector<8xf32>
    %137 = vector.shape_cast %136 : vector<8xf32> to vector<8x1xf32>
    %cst_96 = arith.constant 1.600000e+01 : f32
    %138 = vector.broadcast %cst_96 : f32 to vector<8x1xf32>
    %139 = arith.divf %137, %138 : vector<8x1xf32>
    %cst_97 = arith.constant 9.99999974E-6 : f32
    %140 = vector.broadcast %cst_97 : f32 to vector<8x1xf32>
    %141 = arith.addf %139, %140 : vector<8x1xf32>
    %142 = math.rsqrt %141 : vector<8x1xf32>
    %143 = vector.broadcast %142 : vector<8x1xf32> to vector<8x16xf32>
    %144 = arith.mulf %134, %143 : vector<8x16xf32>
    %145 = vector.broadcast %5 : vector<1x16xf32> to vector<8x16xf32>
    %146 = arith.mulf %144, %145 : vector<8x16xf32>
    %147 = vector.broadcast %6 : vector<1x16xf32> to vector<8x16xf32>
    %148 = arith.addf %146, %147 : vector<8x16xf32>
    %cst_98 = arith.constant dense<0.000000e+00> : vector<8x16xf32>
    %149 = tpu.matmul %148, %7, %cst_98 {dimension_numbers = #tpu.dot_dimension_numbers<[1], [0], [0], [1], [0, 0, 1, 1], [], []>} : vector<8x16xf32>, vector<16x16xf32>, vector<8x16xf32> -> vector<8x16xf32>
    %150 = vector.broadcast %8 : vector<1x16xf32> to vector<8x16xf32>
    %151 = arith.addf %149, %150 : vector<8x16xf32>
    %cst_99 = arith.constant 5.000000e-01 : f32
    %152 = vector.broadcast %cst_99 : f32 to vector<8x16xf32>
    %153 = arith.mulf %152, %151 : vector<8x16xf32>
    %cst_100 = arith.constant 0.707106769 : f32
    %154 = vector.broadcast %cst_100 : f32 to vector<8x16xf32>
    %155 = arith.mulf %151, %154 : vector<8x16xf32>
    %cst_101 = arith.constant 0.000000e+00 : f32
    %156 = vector.broadcast %cst_101 : f32 to vector<8x16xf32>
    %157 = arith.cmpf oge, %155, %156 : vector<8x16xf32>
    %cst_102 = arith.constant 1.000000e+00 : f32
    %cst_103 = arith.constant -1.000000e+00 : f32
    %158 = vector.broadcast %cst_102 : f32 to vector<8x16xf32>
    %159 = vector.broadcast %cst_103 : f32 to vector<8x16xf32>
    %160 = arith.select %157, %158, %159 : vector<8x16xi1>, vector<8x16xf32>
    %161 = math.absf %155 : vector<8x16xf32>
    %cst_104 = arith.constant 0.327591091 : f32
    %162 = vector.broadcast %cst_104 : f32 to vector<8x16xf32>
    %163 = arith.mulf %162, %161 : vector<8x16xf32>
    %cst_105 = arith.constant 1.000000e+00 : f32
    %164 = vector.broadcast %cst_105 : f32 to vector<8x16xf32>
    %165 = arith.addf %164, %163 : vector<8x16xf32>
    %166 = tpu.reciprocal %165 {approx = true} : vector<8x16xf32> -> vector<8x16xf32>
    %cst_106 = arith.constant 1.06140542 : f32
    %167 = vector.broadcast %cst_106 : f32 to vector<8x16xf32>
    %168 = arith.mulf %167, %166 : vector<8x16xf32>
    %cst_107 = arith.constant -1.45315206 : f32
    %169 = vector.broadcast %cst_107 : f32 to vector<8x16xf32>
    %170 = arith.addf %168, %169 : vector<8x16xf32>
    %171 = arith.mulf %170, %166 : vector<8x16xf32>
    %cst_108 = arith.constant 1.42141378 : f32
    %172 = vector.broadcast %cst_108 : f32 to vector<8x16xf32>
    %173 = arith.addf %171, %172 : vector<8x16xf32>
    %174 = arith.mulf %173, %166 : vector<8x16xf32>
    %cst_109 = arith.constant -0.284496725 : f32
    %175 = vector.broadcast %cst_109 : f32 to vector<8x16xf32>
    %176 = arith.addf %174, %175 : vector<8x16xf32>
    %177 = arith.mulf %176, %166 : vector<8x16xf32>
    %cst_110 = arith.constant 0.254829586 : f32
    %178 = vector.broadcast %cst_110 : f32 to vector<8x16xf32>
    %179 = arith.addf %177, %178 : vector<8x16xf32>
    %180 = arith.mulf %179, %166 : vector<8x16xf32>
    %cst_111 = arith.constant 0.000000e+00 : f32
    %181 = vector.broadcast %cst_111 : f32 to vector<8x16xf32>
    %182 = arith.subf %181, %161 : vector<8x16xf32>
    %183 = arith.mulf %182, %161 : vector<8x16xf32>
    %184 = math.exp %183 : vector<8x16xf32>
    %185 = arith.mulf %180, %184 : vector<8x16xf32>
    %cst_112 = arith.constant 1.000000e+00 : f32
    %186 = vector.broadcast %cst_112 : f32 to vector<8x16xf32>
    %187 = arith.subf %186, %185 : vector<8x16xf32>
    %188 = arith.mulf %160, %187 : vector<8x16xf32>
    %cst_113 = arith.constant 1.000000e+00 : f32
    %189 = vector.broadcast %cst_113 : f32 to vector<8x16xf32>
    %190 = arith.addf %189, %188 : vector<8x16xf32>
    %191 = arith.mulf %153, %190 : vector<8x16xf32>
    %cst_114 = arith.constant dense<0.000000e+00> : vector<8x16xf32>
    %192 = tpu.matmul %191, %9, %cst_114 {dimension_numbers = #tpu.dot_dimension_numbers<[1], [0], [0], [1], [0, 0, 1, 1], [], []>} : vector<8x16xf32>, vector<16x16xf32>, vector<8x16xf32> -> vector<8x16xf32>
    %193 = vector.broadcast %10 : vector<1x16xf32> to vector<8x16xf32>
    %194 = arith.addf %192, %193 : vector<8x16xf32>
    %195 = arith.addf %194, %119 : vector<8x16xf32>
    %c0_115 = arith.constant 0 : index
    %c0_116 = arith.constant 0 : index
    %196 = vector.load %arg13[%c0_115, %c0_116] : memref<8x48xf32, #tpu.memory_space<vmem>>, vector<8x48xf32>
    %c0_117 = arith.constant 0 : index
    %c0_118 = arith.constant 0 : index
    %197 = vector.load %arg14[%c0_117, %c0_118] : memref<16x8xf32, #tpu.memory_space<vmem>>, vector<16x8xf32>
    %c0_119 = arith.constant 0 : index
    %c0_120 = arith.constant 0 : index
    %198 = vector.load %arg15[%c0_119, %c0_120] : memref<1x8xf32, #tpu.memory_space<vmem>>, vector<1x8xf32>
    %c0_121 = arith.constant 0 : index
    %c0_122 = arith.constant 0 : index
    %199 = vector.load %arg16[%c0_121, %c0_122] : memref<1x8xf32, #tpu.memory_space<vmem>>, vector<1x8xf32>
    %c0_123 = arith.constant 0 : index
    %c0_124 = arith.constant 0 : index
    %200 = vector.load %arg17[%c0_123, %c0_124] : memref<1x8xf32, #tpu.memory_space<vmem>>, vector<1x8xf32>
    %c0_125 = arith.constant 0 : index
    %c0_126 = arith.constant 0 : index
    %201 = vector.load %arg18[%c0_125, %c0_126] : memref<8x16xf32, #tpu.memory_space<vmem>>, vector<8x16xf32>
    %c0_127 = arith.constant 0 : index
    %c0_128 = arith.constant 0 : index
    %202 = vector.load %arg19[%c0_127, %c0_128] : memref<1x16xf32, #tpu.memory_space<vmem>>, vector<1x16xf32>
    %c0_129 = arith.constant 0 : index
    %c0_130 = arith.constant 0 : index
    %203 = vector.load %arg20[%c0_129, %c0_130] : memref<16x8xf32, #tpu.memory_space<vmem>>, vector<16x8xf32>
    %c0_131 = arith.constant 0 : index
    %c0_132 = arith.constant 0 : index
    %204 = vector.load %arg21[%c0_131, %c0_132] : memref<1x8xf32, #tpu.memory_space<vmem>>, vector<1x8xf32>
    %c0_133 = arith.constant 0 : index
    %c0_134 = arith.constant 0 : index
    %205 = vector.load %arg22[%c0_133, %c0_134] : memref<8x88xf32, #tpu.memory_space<vmem>>, vector<8x88xf32>
    %c0_135 = arith.constant 0 : index
    %c0_136 = arith.constant 0 : index
    %206 = vector.load %arg23[%c0_135, %c0_136] : memref<8x1xf32, #tpu.memory_space<vmem>>, vector<8x1xf32>
    %207 = tpu.iota {dimensions = array<i32: 0>} : vector<16x8xi32>
    %208 = tpu.iota {dimensions = array<i32: 1>} : vector<16x8xi32>
    %c2_i32_137 = arith.constant 2 : i32
    %209 = vector.broadcast %c2_i32_137 : i32 to vector<16x8xi32>
    %210 = arith.muli %209, %208 : vector<16x8xi32>
    %211 = arith.cmpi eq, %207, %210 : vector<16x8xi32>
    %cst_138 = arith.constant 1.000000e+00 : f32
    %cst_139 = arith.constant 0.000000e+00 : f32
    %212 = vector.broadcast %cst_138 : f32 to vector<16x8xf32>
    %213 = vector.broadcast %cst_139 : f32 to vector<16x8xf32>
    %214 = arith.select %211, %212, %213 : vector<16x8xi1>, vector<16x8xf32>
    %c2_i32_140 = arith.constant 2 : i32
    %215 = vector.broadcast %c2_i32_140 : i32 to vector<16x8xi32>
    %216 = arith.muli %215, %208 : vector<16x8xi32>
    %c1_i32_141 = arith.constant 1 : i32
    %217 = vector.broadcast %c1_i32_141 : i32 to vector<16x8xi32>
    %218 = arith.addi %216, %217 : vector<16x8xi32>
    %219 = arith.cmpi eq, %207, %218 : vector<16x8xi32>
    %cst_142 = arith.constant 1.000000e+00 : f32
    %cst_143 = arith.constant 0.000000e+00 : f32
    %220 = vector.broadcast %cst_142 : f32 to vector<16x8xf32>
    %221 = vector.broadcast %cst_143 : f32 to vector<16x8xf32>
    %222 = arith.select %219, %220, %221 : vector<16x8xi1>, vector<16x8xf32>
    %cst_144 = arith.constant dense<0.000000e+00> : vector<8x8xf32>
    %223 = tpu.matmul %195, %214, %cst_144 {dimension_numbers = #tpu.dot_dimension_numbers<[1], [0], [0], [1], [0, 0, 1, 1], [], []>, precision = #tpu.contract_precision<fp32>} : vector<8x16xf32>, vector<16x8xf32>, vector<8x8xf32> -> vector<8x8xf32>
    %cst_145 = arith.constant dense<0.000000e+00> : vector<8x8xf32>
    %224 = tpu.matmul %195, %222, %cst_145 {dimension_numbers = #tpu.dot_dimension_numbers<[1], [0], [0], [1], [0, 0, 1, 1], [], []>, precision = #tpu.contract_precision<fp32>} : vector<8x16xf32>, vector<16x8xf32>, vector<8x8xf32> -> vector<8x8xf32>
    %225 = arith.maximumf %223, %224 : vector<8x8xf32>
    %cst_146 = arith.constant dense<0.000000e+00> : vector<8x48xf32>
    %226 = tpu.matmul %225, %196, %cst_146 {dimension_numbers = #tpu.dot_dimension_numbers<[1], [0], [0], [1], [0, 0, 1, 1], [], []>} : vector<8x8xf32>, vector<8x48xf32>, vector<8x48xf32> -> vector<8x48xf32>
    %227 = vector.extract_strided_slice %226 {offsets = [0, 0], sizes = [8, 8], strides = [1, 1]} : vector<8x48xf32> to vector<8x8xf32>
    %228 = vector.extract_strided_slice %226 {offsets = [0, 16], sizes = [8, 8], strides = [1, 1]} : vector<8x48xf32> to vector<8x8xf32>
    %229 = vector.extract_strided_slice %226 {offsets = [0, 32], sizes = [8, 8], strides = [1, 1]} : vector<8x48xf32> to vector<8x8xf32>
    %cst_147 = arith.constant dense<0.000000e+00> : vector<8x8xf32>
    %230 = tpu.matmul %227, %228, %cst_147 {dimension_numbers = #tpu.dot_dimension_numbers<[1], [1], [0], [0], [0, 0, 1, 0], [], []>} : vector<8x8xf32>, vector<8x8xf32>, vector<8x8xf32> -> vector<8x8xf32>
    %cst_148 = arith.constant dense<0xFF800000> : vector<8xf32>
    %231 = vector.multi_reduction <maximumf>, %230, %cst_148 [1] : vector<8x8xf32> to vector<8xf32>
    %232 = vector.shape_cast %231 : vector<8xf32> to vector<8x1xf32>
    %233 = vector.broadcast %232 : vector<8x1xf32> to vector<8x8xf32>
    %234 = arith.subf %230, %233 : vector<8x8xf32>
    %235 = math.exp %234 : vector<8x8xf32>
    %cst_149 = arith.constant dense<0.000000e+00> : vector<8xf32>
    %236 = vector.multi_reduction <add>, %235, %cst_149 [1] : vector<8x8xf32> to vector<8xf32>
    %237 = vector.shape_cast %236 : vector<8xf32> to vector<8x1xf32>
    %238 = tpu.reciprocal %237 {approx = true} : vector<8x1xf32> -> vector<8x1xf32>
    %239 = vector.broadcast %238 : vector<8x1xf32> to vector<8x8xf32>
    %240 = arith.mulf %235, %239 : vector<8x8xf32>
    %cst_150 = arith.constant dense<0.000000e+00> : vector<8x8xf32>
    %241 = tpu.matmul %240, %229, %cst_150 {dimension_numbers = #tpu.dot_dimension_numbers<[1], [0], [0], [1], [0, 0, 1, 1], [], []>} : vector<8x8xf32>, vector<8x8xf32>, vector<8x8xf32> -> vector<8x8xf32>
    %c0_151 = arith.constant 0 : index
    %c0_152 = arith.constant 0 : index
    %242 = vector.load %arg28[%c0_151, %c0_152] : memref<8x16xf32, #tpu.memory_space<vmem>>, vector<8x8xf32>
    tpu.vector_store %arg28[%c0_151, %c0_152], %241 {strides = array<i32>} : memref<8x16xf32, #tpu.memory_space<vmem>>, vector<8x8xf32>,
    %243 = vector.extract_strided_slice %226 {offsets = [0, 8], sizes = [8, 8], strides = [1, 1]} : vector<8x48xf32> to vector<8x8xf32>
    %244 = vector.extract_strided_slice %226 {offsets = [0, 24], sizes = [8, 8], strides = [1, 1]} : vector<8x48xf32> to vector<8x8xf32>
    %245 = vector.extract_strided_slice %226 {offsets = [0, 40], sizes = [8, 8], strides = [1, 1]} : vector<8x48xf32> to vector<8x8xf32>
    %cst_153 = arith.constant dense<0.000000e+00> : vector<8x8xf32>
    %246 = tpu.matmul %243, %244, %cst_153 {dimension_numbers = #tpu.dot_dimension_numbers<[1], [1], [0], [0], [0, 0, 1, 0], [], []>} : vector<8x8xf32>, vector<8x8xf32>, vector<8x8xf32> -> vector<8x8xf32>
    %cst_154 = arith.constant dense<0xFF800000> : vector<8xf32>
    %247 = vector.multi_reduction <maximumf>, %246, %cst_154 [1] : vector<8x8xf32> to vector<8xf32>
    %248 = vector.shape_cast %247 : vector<8xf32> to vector<8x1xf32>
    %249 = vector.broadcast %248 : vector<8x1xf32> to vector<8x8xf32>
    %250 = arith.subf %246, %249 : vector<8x8xf32>
    %251 = math.exp %250 : vector<8x8xf32>
    %cst_155 = arith.constant dense<0.000000e+00> : vector<8xf32>
    %252 = vector.multi_reduction <add>, %251, %cst_155 [1] : vector<8x8xf32> to vector<8xf32>
    %253 = vector.shape_cast %252 : vector<8xf32> to vector<8x1xf32>
    %254 = tpu.reciprocal %253 {approx = true} : vector<8x1xf32> -> vector<8x1xf32>
    %255 = vector.broadcast %254 : vector<8x1xf32> to vector<8x8xf32>
    %256 = arith.mulf %251, %255 : vector<8x8xf32>
    %cst_156 = arith.constant dense<0.000000e+00> : vector<8x8xf32>
    %257 = tpu.matmul %256, %245, %cst_156 {dimension_numbers = #tpu.dot_dimension_numbers<[1], [0], [0], [1], [0, 0, 1, 1], [], []>} : vector<8x8xf32>, vector<8x8xf32>, vector<8x8xf32> -> vector<8x8xf32>
    %c0_157 = arith.constant 0 : index
    %c8_158 = arith.constant 8 : index
    %258 = vector.load %arg28[%c0_157, %c8_158] : memref<8x16xf32, #tpu.memory_space<vmem>>, vector<8x8xf32>
    tpu.vector_store %arg28[%c0_157, %c8_158], %257 {strides = array<i32>} : memref<8x16xf32, #tpu.memory_space<vmem>>, vector<8x8xf32>,
    %c0_159 = arith.constant 0 : index
    %c0_160 = arith.constant 0 : index
    %259 = vector.load %arg28[%c0_159, %c0_160] : memref<8x16xf32, #tpu.memory_space<vmem>>, vector<8x16xf32>
    %cst_161 = arith.constant dense<0.000000e+00> : vector<8x8xf32>
    %260 = tpu.matmul %259, %197, %cst_161 {dimension_numbers = #tpu.dot_dimension_numbers<[1], [0], [0], [1], [0, 0, 1, 1], [], []>} : vector<8x16xf32>, vector<16x8xf32>, vector<8x8xf32> -> vector<8x8xf32>
    %261 = vector.broadcast %198 : vector<1x8xf32> to vector<8x8xf32>
    %262 = arith.addf %260, %261 : vector<8x8xf32>
    %263 = arith.addf %262, %225 : vector<8x8xf32>
    %cst_162 = arith.constant 0.000000e+00 : f32
    %264 = vector.broadcast %cst_162 : f32 to vector<8x42xf32>
    %c0_163 = arith.constant 0 : index
    %c0_164 = arith.constant 0 : index
    %265 = vector.load %arg26[%c0_163, %c0_164] : memref<8x42xf32, #tpu.memory_space<vmem>>, vector<8x42xf32>
    tpu.vector_store %arg26[%c0_163, %c0_164], %264 {strides = array<i32>} : memref<8x42xf32, #tpu.memory_space<vmem>>, vector<8x42xf32>,
    %c0_165 = arith.constant 0 : index
    %c5_166 = arith.constant 5 : index
    %266 = vector.load %arg26[%c0_165, %c5_166] : memref<8x42xf32, #tpu.memory_space<vmem>>, vector<8x16xf32>
    tpu.vector_store %arg26[%c0_165, %c5_166], %195 {strides = array<i32>} : memref<8x42xf32, #tpu.memory_space<vmem>>, vector<8x16xf32>,
    %c0_167 = arith.constant 0 : index
    %c0_168 = arith.constant 0 : index
    %267 = vector.load %arg26[%c0_167, %c0_168] : memref<8x42xf32, #tpu.memory_space<vmem>>, vector<8x16xf32>
    %c0_169 = arith.constant 0 : index
    %c0_170 = arith.constant 0 : index
    %268 = vector.load %arg27[%c0_169, %c0_170] : memref<88x32xf32, #tpu.memory_space<vmem>>, vector<8x16xf32>
    tpu.vector_store %arg27[%c0_169, %c0_170], %267 {strides = array<i32>} : memref<88x32xf32, #tpu.memory_space<vmem>>, vector<8x16xf32>,
    %c0_171 = arith.constant 0 : index
    %c1_172 = arith.constant 1 : index
    %269 = vector.load %arg26[%c0_171, %c1_172] : memref<8x42xf32, #tpu.memory_space<vmem>>, vector<8x16xf32>
    %c8_173 = arith.constant 8 : index
    %c0_174 = arith.constant 0 : index
    %270 = vector.load %arg27[%c8_173, %c0_174] : memref<88x32xf32, #tpu.memory_space<vmem>>, vector<8x16xf32>
    tpu.vector_store %arg27[%c8_173, %c0_174], %269 {strides = array<i32>} : memref<88x32xf32, #tpu.memory_space<vmem>>, vector<8x16xf32>,
    %c0_175 = arith.constant 0 : index
    %c2_176 = arith.constant 2 : index
    %271 = vector.load %arg26[%c0_175, %c2_176] : memref<8x42xf32, #tpu.memory_space<vmem>>, vector<8x16xf32>
    %c16_177 = arith.constant 16 : index
    %c0_178 = arith.constant 0 : index
    %272 = vector.load %arg27[%c16_177, %c0_178] : memref<88x32xf32, #tpu.memory_space<vmem>>, vector<8x16xf32>
    tpu.vector_store %arg27[%c16_177, %c0_178], %271 {strides = array<i32>} : memref<88x32xf32, #tpu.memory_space<vmem>>, vector<8x16xf32>,
    %c0_179 = arith.constant 0 : index
    %c3_180 = arith.constant 3 : index
    %273 = vector.load %arg26[%c0_179, %c3_180] : memref<8x42xf32, #tpu.memory_space<vmem>>, vector<8x16xf32>
    %c24_181 = arith.constant 24 : index
    %c0_182 = arith.constant 0 : index
    %274 = vector.load %arg27[%c24_181, %c0_182] : memref<88x32xf32, #tpu.memory_space<vmem>>, vector<8x16xf32>
    tpu.vector_store %arg27[%c24_181, %c0_182], %273 {strides = array<i32>} : memref<88x32xf32, #tpu.memory_space<vmem>>, vector<8x16xf32>,
    %c0_183 = arith.constant 0 : index
    %c4_184 = arith.constant 4 : index
    %275 = vector.load %arg26[%c0_183, %c4_184] : memref<8x42xf32, #tpu.memory_space<vmem>>, vector<8x16xf32>
    %c32_185 = arith.constant 32 : index
    %c0_186 = arith.constant 0 : index
    %276 = vector.load %arg27[%c32_185, %c0_186] : memref<88x32xf32, #tpu.memory_space<vmem>>, vector<8x16xf32>
    tpu.vector_store %arg27[%c32_185, %c0_186], %275 {strides = array<i32>} : memref<88x32xf32, #tpu.memory_space<vmem>>, vector<8x16xf32>,
    %c0_187 = arith.constant 0 : index
    %c5_188 = arith.constant 5 : index
    %277 = vector.load %arg26[%c0_187, %c5_188] : memref<8x42xf32, #tpu.memory_space<vmem>>, vector<8x16xf32>
    %c40_189 = arith.constant 40 : index
    %c0_190 = arith.constant 0 : index
    %278 = vector.load %arg27[%c40_189, %c0_190] : memref<88x32xf32, #tpu.memory_space<vmem>>, vector<8x16xf32>
    tpu.vector_store %arg27[%c40_189, %c0_190], %277 {strides = array<i32>} : memref<88x32xf32, #tpu.memory_space<vmem>>, vector<8x16xf32>,
    %c0_191 = arith.constant 0 : index
    %c6_192 = arith.constant 6 : index
    %279 = vector.load %arg26[%c0_191, %c6_192] : memref<8x42xf32, #tpu.memory_space<vmem>>, vector<8x16xf32>
    %c48_193 = arith.constant 48 : index
    %c0_194 = arith.constant 0 : index
    %280 = vector.load %arg27[%c48_193, %c0_194] : memref<88x32xf32, #tpu.memory_space<vmem>>, vector<8x16xf32>
    tpu.vector_store %arg27[%c48_193, %c0_194], %279 {strides = array<i32>} : memref<88x32xf32, #tpu.memory_space<vmem>>, vector<8x16xf32>,
    %c0_195 = arith.constant 0 : index
    %c7_196 = arith.constant 7 : index
    %281 = vector.load %arg26[%c0_195, %c7_196] : memref<8x42xf32, #tpu.memory_space<vmem>>, vector<8x16xf32>
    %c56_197 = arith.constant 56 : index
    %c0_198 = arith.constant 0 : index
    %282 = vector.load %arg27[%c56_197, %c0_198] : memref<88x32xf32, #tpu.memory_space<vmem>>, vector<8x16xf32>
    tpu.vector_store %arg27[%c56_197, %c0_198], %281 {strides = array<i32>} : memref<88x32xf32, #tpu.memory_space<vmem>>, vector<8x16xf32>,
    %c0_199 = arith.constant 0 : index
    %c8_200 = arith.constant 8 : index
    %283 = vector.load %arg26[%c0_199, %c8_200] : memref<8x42xf32, #tpu.memory_space<vmem>>, vector<8x16xf32>
    %c64_201 = arith.constant 64 : index
    %c0_202 = arith.constant 0 : index
    %284 = vector.load %arg27[%c64_201, %c0_202] : memref<88x32xf32, #tpu.memory_space<vmem>>, vector<8x16xf32>
    tpu.vector_store %arg27[%c64_201, %c0_202], %283 {strides = array<i32>} : memref<88x32xf32, #tpu.memory_space<vmem>>, vector<8x16xf32>,
    %c0_203 = arith.constant 0 : index
    %c9_204 = arith.constant 9 : index
    %285 = vector.load %arg26[%c0_203, %c9_204] : memref<8x42xf32, #tpu.memory_space<vmem>>, vector<8x16xf32>
    %c72_205 = arith.constant 72 : index
    %c0_206 = arith.constant 0 : index
    %286 = vector.load %arg27[%c72_205, %c0_206] : memref<88x32xf32, #tpu.memory_space<vmem>>, vector<8x16xf32>
    tpu.vector_store %arg27[%c72_205, %c0_206], %285 {strides = array<i32>} : memref<88x32xf32, #tpu.memory_space<vmem>>, vector<8x16xf32>,
    %c0_207 = arith.constant 0 : index
    %c10_208 = arith.constant 10 : index
    %287 = vector.load %arg26[%c0_207, %c10_208] : memref<8x42xf32, #tpu.memory_space<vmem>>, vector<8x16xf32>
    %c80_209 = arith.constant 80 : index
    %c0_210 = arith.constant 0 : index
    %288 = vector.load %arg27[%c80_209, %c0_210] : memref<88x32xf32, #tpu.memory_space<vmem>>, vector<8x16xf32>
    tpu.vector_store %arg27[%c80_209, %c0_210], %287 {strides = array<i32>} : memref<88x32xf32, #tpu.memory_space<vmem>>, vector<8x16xf32>,
    %c0_211 = arith.constant 0 : index
    %c0_212 = arith.constant 0 : index
    %289 = vector.load %arg27[%c0_211, %c0_212] : memref<88x32xf32, #tpu.memory_space<vmem>>, vector<88x16xf32>
    %cst_213 = arith.constant dense<0.000000e+00> : vector<8x16xf32>
    %290 = tpu.matmul %205, %289, %cst_213 {dimension_numbers = #tpu.dot_dimension_numbers<[1], [0], [0], [1], [0, 0, 1, 1], [], []>} : vector<8x88xf32>, vector<88x16xf32>, vector<8x16xf32> -> vector<8x16xf32>
    %291 = vector.broadcast %206 : vector<8x1xf32> to vector<8x16xf32>
    %292 = arith.addf %290, %291 : vector<8x16xf32>
    %cst_214 = arith.constant 0.000000e+00 : f32
    %293 = vector.broadcast %cst_214 : f32 to vector<8x16xf32>
    %294 = arith.cmpf ogt, %292, %293 : vector<8x16xf32>
    %cst_215 = arith.constant 0.166666672 : f32
    %295 = vector.broadcast %cst_215 : f32 to vector<8x16xf32>
    %296 = arith.mulf %292, %295 : vector<8x16xf32>
    %cst_216 = arith.constant 5.000000e-01 : f32
    %297 = vector.broadcast %cst_216 : f32 to vector<8x16xf32>
    %298 = arith.addf %297, %296 : vector<8x16xf32>
    %299 = arith.mulf %292, %298 : vector<8x16xf32>
    %cst_217 = arith.constant 1.000000e+00 : f32
    %300 = vector.broadcast %cst_217 : f32 to vector<8x16xf32>
    %301 = arith.addf %300, %299 : vector<8x16xf32>
    %302 = arith.mulf %292, %301 : vector<8x16xf32>
    %303 = math.absf %292 : vector<8x16xf32>
    %cst_218 = arith.constant 2.000000e-02 : f32
    %304 = vector.broadcast %cst_218 : f32 to vector<8x16xf32>
    %305 = arith.cmpf olt, %303, %304 : vector<8x16xf32>
    %306 = math.exp %292 : vector<8x16xf32>
    %cst_219 = arith.constant 1.000000e+00 : f32
    %307 = vector.broadcast %cst_219 : f32 to vector<8x16xf32>
    %308 = arith.subf %306, %307 : vector<8x16xf32>
    %309 = arith.select %305, %302, %308 : vector<8x16xi1>, vector<8x16xf32>
    %310 = arith.select %294, %292, %309 : vector<8x16xi1>, vector<8x16xf32>
    %cst_220 = arith.constant dense<0.000000e+00> : vector<8x8xf32>
    %311 = tpu.matmul %310, %214, %cst_220 {dimension_numbers = #tpu.dot_dimension_numbers<[1], [0], [0], [1], [0, 0, 1, 1], [], []>, precision = #tpu.contract_precision<fp32>} : vector<8x16xf32>, vector<16x8xf32>, vector<8x8xf32> -> vector<8x8xf32>
    %cst_221 = arith.constant dense<0.000000e+00> : vector<8x8xf32>
    %312 = tpu.matmul %310, %222, %cst_221 {dimension_numbers = #tpu.dot_dimension_numbers<[1], [0], [0], [1], [0, 0, 1, 1], [], []>, precision = #tpu.contract_precision<fp32>} : vector<8x16xf32>, vector<16x8xf32>, vector<8x8xf32> -> vector<8x8xf32>
    %313 = arith.maximumf %311, %312 : vector<8x8xf32>
    %314 = arith.mulf %313, %313 : vector<8x8xf32>
    %cst_222 = arith.constant dense<0.000000e+00> : vector<8xf32>
    %315 = vector.multi_reduction <add>, %314, %cst_222 [1] : vector<8x8xf32> to vector<8xf32>
    %316 = vector.shape_cast %315 : vector<8xf32> to vector<8x1xf32>
    %cst_223 = arith.constant 8.000000e+00 : f32
    %317 = vector.broadcast %cst_223 : f32 to vector<8x1xf32>
    %318 = arith.divf %316, %317 : vector<8x1xf32>
    %319 = math.log %318 : vector<8x1xf32>
    %c0_224 = arith.constant 0 : index
    %c1_225 = arith.constant 1 : index
    %c0_226 = arith.constant 0 : index
    %c0_227 = arith.constant 0 : index
    %320 = vector.load %arg25[%c0_224, %c1_225, %c0_226, %c0_227] : memref<1x2x8x1xf32, #tpu.memory_space<vmem>>, vector<1x1x8x1xf32>
    %321 = vector.shape_cast %320 : vector<1x1x8x1xf32> to vector<8x1xf32>
    %322 = vector.shape_cast %319 : vector<8x1xf32> to vector<1x1x8x1xf32>
    tpu.vector_store %arg25[%c0_224, %c1_225, %c0_226, %c0_227], %322 {strides = array<i32>} : memref<1x2x8x1xf32, #tpu.memory_space<vmem>>, vector<1x1x8x1xf32>,
    %cst_228 = arith.constant dense<0.000000e+00> : vector<8xf32>
    %323 = vector.multi_reduction <add>, %263, %cst_228 [1] : vector<8x8xf32> to vector<8xf32>
    %324 = vector.shape_cast %323 : vector<8xf32> to vector<8x1xf32>
    %cst_229 = arith.constant 8.000000e+00 : f32
    %325 = vector.broadcast %cst_229 : f32 to vector<8x1xf32>
    %326 = arith.divf %324, %325 : vector<8x1xf32>
    %327 = vector.broadcast %326 : vector<8x1xf32> to vector<8x8xf32>
    %328 = arith.subf %263, %327 : vector<8x8xf32>
    %329 = arith.mulf %328, %328 : vector<8x8xf32>
    %cst_230 = arith.constant dense<0.000000e+00> : vector<8xf32>
    %330 = vector.multi_reduction <add>, %329, %cst_230 [1] : vector<8x8xf32> to vector<8xf32>
    %331 = vector.shape_cast %330 : vector<8xf32> to vector<8x1xf32>
    %cst_231 = arith.constant 8.000000e+00 : f32
    %332 = vector.broadcast %cst_231 : f32 to vector<8x1xf32>
    %333 = arith.divf %331, %332 : vector<8x1xf32>
    %cst_232 = arith.constant 9.99999974E-6 : f32
    %334 = vector.broadcast %cst_232 : f32 to vector<8x1xf32>
    %335 = arith.addf %333, %334 : vector<8x1xf32>
    %336 = math.rsqrt %335 : vector<8x1xf32>
    %337 = vector.broadcast %336 : vector<8x1xf32> to vector<8x8xf32>
    %338 = arith.mulf %328, %337 : vector<8x8xf32>
    %339 = vector.broadcast %199 : vector<1x8xf32> to vector<8x8xf32>
    %340 = arith.mulf %338, %339 : vector<8x8xf32>
    %341 = vector.broadcast %200 : vector<1x8xf32> to vector<8x8xf32>
    %342 = arith.addf %340, %341 : vector<8x8xf32>
    %cst_233 = arith.constant dense<0.000000e+00> : vector<8x16xf32>
    %343 = tpu.matmul %342, %201, %cst_233 {dimension_numbers = #tpu.dot_dimension_numbers<[1], [0], [0], [1], [0, 0, 1, 1], [], []>} : vector<8x8xf32>, vector<8x16xf32>, vector<8x16xf32> -> vector<8x16xf32>
    %344 = vector.broadcast %202 : vector<1x16xf32> to vector<8x16xf32>
    %345 = arith.addf %343, %344 : vector<8x16xf32>
    %cst_234 = arith.constant 5.000000e-01 : f32
    %346 = vector.broadcast %cst_234 : f32 to vector<8x16xf32>
    %347 = arith.mulf %346, %345 : vector<8x16xf32>
    %cst_235 = arith.constant 0.707106769 : f32
    %348 = vector.broadcast %cst_235 : f32 to vector<8x16xf32>
    %349 = arith.mulf %345, %348 : vector<8x16xf32>
    %cst_236 = arith.constant 0.000000e+00 : f32
    %350 = vector.broadcast %cst_236 : f32 to vector<8x16xf32>
    %351 = arith.cmpf oge, %349, %350 : vector<8x16xf32>
    %cst_237 = arith.constant 1.000000e+00 : f32
    %cst_238 = arith.constant -1.000000e+00 : f32
    %352 = vector.broadcast %cst_237 : f32 to vector<8x16xf32>
    %353 = vector.broadcast %cst_238 : f32 to vector<8x16xf32>
    %354 = arith.select %351, %352, %353 : vector<8x16xi1>, vector<8x16xf32>
    %355 = math.absf %349 : vector<8x16xf32>
    %cst_239 = arith.constant 0.327591091 : f32
    %356 = vector.broadcast %cst_239 : f32 to vector<8x16xf32>
    %357 = arith.mulf %356, %355 : vector<8x16xf32>
    %cst_240 = arith.constant 1.000000e+00 : f32
    %358 = vector.broadcast %cst_240 : f32 to vector<8x16xf32>
    %359 = arith.addf %358, %357 : vector<8x16xf32>
    %360 = tpu.reciprocal %359 {approx = true} : vector<8x16xf32> -> vector<8x16xf32>
    %cst_241 = arith.constant 1.06140542 : f32
    %361 = vector.broadcast %cst_241 : f32 to vector<8x16xf32>
    %362 = arith.mulf %361, %360 : vector<8x16xf32>
    %cst_242 = arith.constant -1.45315206 : f32
    %363 = vector.broadcast %cst_242 : f32 to vector<8x16xf32>
    %364 = arith.addf %362, %363 : vector<8x16xf32>
    %365 = arith.mulf %364, %360 : vector<8x16xf32>
    %cst_243 = arith.constant 1.42141378 : f32
    %366 = vector.broadcast %cst_243 : f32 to vector<8x16xf32>
    %367 = arith.addf %365, %366 : vector<8x16xf32>
    %368 = arith.mulf %367, %360 : vector<8x16xf32>
    %cst_244 = arith.constant -0.284496725 : f32
    %369 = vector.broadcast %cst_244 : f32 to vector<8x16xf32>
    %370 = arith.addf %368, %369 : vector<8x16xf32>
    %371 = arith.mulf %370, %360 : vector<8x16xf32>
    %cst_245 = arith.constant 0.254829586 : f32
    %372 = vector.broadcast %cst_245 : f32 to vector<8x16xf32>
    %373 = arith.addf %371, %372 : vector<8x16xf32>
    %374 = arith.mulf %373, %360 : vector<8x16xf32>
    %cst_246 = arith.constant 0.000000e+00 : f32
    %375 = vector.broadcast %cst_246 : f32 to vector<8x16xf32>
    %376 = arith.subf %375, %355 : vector<8x16xf32>
    %377 = arith.mulf %376, %355 : vector<8x16xf32>
    %378 = math.exp %377 : vector<8x16xf32>
    %379 = arith.mulf %374, %378 : vector<8x16xf32>
    %cst_247 = arith.constant 1.000000e+00 : f32
    %380 = vector.broadcast %cst_247 : f32 to vector<8x16xf32>
    %381 = arith.subf %380, %379 : vector<8x16xf32>
    %382 = arith.mulf %354, %381 : vector<8x16xf32>
    %cst_248 = arith.constant 1.000000e+00 : f32
    %383 = vector.broadcast %cst_248 : f32 to vector<8x16xf32>
    %384 = arith.addf %383, %382 : vector<8x16xf32>
    %385 = arith.mulf %347, %384 : vector<8x16xf32>
    %cst_249 = arith.constant dense<0.000000e+00> : vector<8x8xf32>
    %386 = tpu.matmul %385, %203, %cst_249 {dimension_numbers = #tpu.dot_dimension_numbers<[1], [0], [0], [1], [0, 0, 1, 1], [], []>} : vector<8x16xf32>, vector<16x8xf32>, vector<8x8xf32> -> vector<8x8xf32>
    %387 = vector.broadcast %204 : vector<1x8xf32> to vector<8x8xf32>
    %388 = arith.addf %386, %387 : vector<8x8xf32>
    %389 = arith.addf %388, %313 : vector<8x8xf32>
    %c0_250 = arith.constant 0 : index
    %c0_251 = arith.constant 0 : index
    %c0_252 = arith.constant 0 : index
    %390 = vector.load %arg24[%c0_250, %c0_251, %c0_252] : memref<1x8x8xf32, #tpu.memory_space<vmem>>, vector<1x8x8xf32>
    %391 = vector.shape_cast %390 : vector<1x8x8xf32> to vector<8x8xf32>
    %392 = vector.shape_cast %389 : vector<8x8xf32> to vector<1x8x8xf32>
    tpu.vector_store %arg24[%c0_250, %c0_251, %c0_252], %392 {strides = array<i32>} : memref<1x8x8xf32, #tpu.memory_space<vmem>>, vector<1x8x8xf32>,
    return
  }
  func.func @transform_0(%arg0: i32) -> (i32, i32, i32) {
    %c0_i32 = arith.constant 0 : i32
    %c0_i32_0 = arith.constant 0 : i32
    %c0_i32_1 = arith.constant 0 : i32
    return %arg0, %c0_i32, %c0_i32_0 : i32, i32, i32
  }
  func.func @transform_1(%arg0: i32) -> (i32, i32) {
    %c0_i32 = arith.constant 0 : i32
    %c0_i32_0 = arith.constant 0 : i32
    %c0_i32_1 = arith.constant 0 : i32
    return %c0_i32, %c0_i32_0 : i32, i32
  }
  func.func @transform_2(%arg0: i32) -> (i32, i32) {
    %c0_i32 = arith.constant 0 : i32
    %c0_i32_0 = arith.constant 0 : i32
    %c0_i32_1 = arith.constant 0 : i32
    return %c0_i32, %c0_i32_0 : i32, i32
  }
  func.func @transform_3(%arg0: i32) -> (i32, i32) {
    %c0_i32 = arith.constant 0 : i32
    %c0_i32_0 = arith.constant 0 : i32
    %c0_i32_1 = arith.constant 0 : i32
    return %c0_i32, %c0_i32_0 : i32, i32
  }
  func.func @transform_4(%arg0: i32) -> (i32, i32) {
    %c0_i32 = arith.constant 0 : i32
    %c0_i32_0 = arith.constant 0 : i32
    %c0_i32_1 = arith.constant 0 : i32
    return %c0_i32, %c0_i32_0 : i32, i32
  }
  func.func @transform_5(%arg0: i32) -> (i32, i32) {
    %c0_i32 = arith.constant 0 : i32
    %c0_i32_0 = arith.constant 0 : i32
    %c0_i32_1 = arith.constant 0 : i32
    return %c0_i32, %c0_i32_0 : i32, i32
  }
  func.func @transform_6(%arg0: i32) -> (i32, i32) {
    %c0_i32 = arith.constant 0 : i32
    %c0_i32_0 = arith.constant 0 : i32
    %c0_i32_1 = arith.constant 0 : i32
    return %c0_i32, %c0_i32_0 : i32, i32
  }
  func.func @transform_7(%arg0: i32) -> (i32, i32) {
    %c0_i32 = arith.constant 0 : i32
    %c0_i32_0 = arith.constant 0 : i32
    %c0_i32_1 = arith.constant 0 : i32
    return %c0_i32, %c0_i32_0 : i32, i32
  }
  func.func @transform_8(%arg0: i32) -> (i32, i32) {
    %c0_i32 = arith.constant 0 : i32
    %c0_i32_0 = arith.constant 0 : i32
    %c0_i32_1 = arith.constant 0 : i32
    return %c0_i32, %c0_i32_0 : i32, i32
  }
  func.func @transform_9(%arg0: i32) -> (i32, i32) {
    %c0_i32 = arith.constant 0 : i32
    %c0_i32_0 = arith.constant 0 : i32
    %c0_i32_1 = arith.constant 0 : i32
    return %c0_i32, %c0_i32_0 : i32, i32
  }
  func.func @transform_10(%arg0: i32) -> (i32, i32) {
    %c0_i32 = arith.constant 0 : i32
    %c0_i32_0 = arith.constant 0 : i32
    %c0_i32_1 = arith.constant 0 : i32
    return %c0_i32, %c0_i32_0 : i32, i32
  }
  func.func @transform_11(%arg0: i32) -> (i32, i32) {
    %c0_i32 = arith.constant 0 : i32
    %c0_i32_0 = arith.constant 0 : i32
    %c0_i32_1 = arith.constant 0 : i32
    return %c0_i32, %c0_i32_0 : i32, i32
  }
  func.func @transform_12(%arg0: i32) -> (i32, i32) {
    %c0_i32 = arith.constant 0 : i32
    %c0_i32_0 = arith.constant 0 : i32
    %c0_i32_1 = arith.constant 0 : i32
    return %c0_i32, %c0_i32_0 : i32, i32
  }
  func.func @transform_13(%arg0: i32) -> (i32, i32) {
    %c0_i32 = arith.constant 0 : i32
    %c0_i32_0 = arith.constant 0 : i32
    %c0_i32_1 = arith.constant 0 : i32
    return %c0_i32, %c0_i32_0 : i32, i32
  }
  func.func @transform_14(%arg0: i32) -> (i32, i32) {
    %c0_i32 = arith.constant 0 : i32
    %c0_i32_0 = arith.constant 0 : i32
    %c0_i32_1 = arith.constant 0 : i32
    return %c0_i32, %c0_i32_0 : i32, i32
  }
  func.func @transform_15(%arg0: i32) -> (i32, i32) {
    %c0_i32 = arith.constant 0 : i32
    %c0_i32_0 = arith.constant 0 : i32
    %c0_i32_1 = arith.constant 0 : i32
    return %c0_i32, %c0_i32_0 : i32, i32
  }
  func.func @transform_16(%arg0: i32) -> (i32, i32) {
    %c0_i32 = arith.constant 0 : i32
    %c0_i32_0 = arith.constant 0 : i32
    %c0_i32_1 = arith.constant 0 : i32
    return %c0_i32, %c0_i32_0 : i32, i32
  }
  func.func @transform_17(%arg0: i32) -> (i32, i32) {
    %c0_i32 = arith.constant 0 : i32
    %c0_i32_0 = arith.constant 0 : i32
    %c0_i32_1 = arith.constant 0 : i32
    return %c0_i32, %c0_i32_0 : i32, i32
  }
  func.func @transform_18(%arg0: i32) -> (i32, i32) {
    %c0_i32 = arith.constant 0 : i32
    %c0_i32_0 = arith.constant 0 : i32
    %c0_i32_1 = arith.constant 0 : i32
    return %c0_i32, %c0_i32_0 : i32, i32
  }
  func.func @transform_19(%arg0: i32) -> (i32, i32) {
    %c0_i32 = arith.constant 0 : i32
    %c0_i32_0 = arith.constant 0 : i32
    %c0_i32_1 = arith.constant 0 : i32
    return %c0_i32, %c0_i32_0 : i32, i32
  }
  func.func @transform_20(%arg0: i32) -> (i32, i32) {
    %c0_i32 = arith.constant 0 : i32
    %c0_i32_0 = arith.constant 0 : i32
    %c0_i32_1 = arith.constant 0 : i32
    return %c0_i32, %c0_i32_0 : i32, i32
  }
  func.func @transform_21(%arg0: i32) -> (i32, i32) {
    %c0_i32 = arith.constant 0 : i32
    %c0_i32_0 = arith.constant 0 : i32
    %c0_i32_1 = arith.constant 0 : i32
    return %c0_i32, %c0_i32_0 : i32, i32
  }
  func.func @transform_22(%arg0: i32) -> (i32, i32) {
    %c0_i32 = arith.constant 0 : i32
    %c0_i32_0 = arith.constant 0 : i32
    %c0_i32_1 = arith.constant 0 : i32
    return %c0_i32, %c0_i32_0 : i32, i32
  }
  func.func @transform_23(%arg0: i32) -> (i32, i32, i32) {
    %c0_i32 = arith.constant 0 : i32
    %c0_i32_0 = arith.constant 0 : i32
    %c0_i32_1 = arith.constant 0 : i32
    return %arg0, %c0_i32, %c0_i32_0 : i32, i32, i32
  }
  func.func @transform_24(%arg0: i32) -> (i32, i32, i32, i32) {
    %c0_i32 = arith.constant 0 : i32
    %c0_i32_0 = arith.constant 0 : i32
    %c0_i32_1 = arith.constant 0 : i32
    %c0_i32_2 = arith.constant 0 : i32
    return %arg0, %c0_i32, %c0_i32_0, %c0_i32_1 : i32, i32, i32, i32
  }
}

</mosaic_0001>

<llo_original>
// kernel: squeeze.1
$region0: #{squeeze.1}
  %s0 = inlined_call_operand.vmem [shape: f32[2,2,8], index: 0, kind: input, shape index: {}]
  %s1 = inlined_call_operand.vmem [shape: f32[2,16], index: 1, kind: output, shape index: {}]
  $region1: #{squeeze.1} parent=0
    #allocation0 [shape = 'u8[4096]{0}', space=vmem, size = 0x1000, scoped, tag = 'scoped mem for output reshape']
    #allocation1 [shape = 'u8[8192]{0}', space=vmem, size = 0x2000, scoped, tag = 'scoped mem for input reshape']
    %s3 = ssub.s32 4, 1
    %s4 = scalar_lea.vmem %s0, 2
    %v5 = vld [vmem:[%s4] sm:%s3]
    %s6 = scalar_lea.vmem [#allocation1], 8
    %7 = vst [vmem:[%s6] sm:%s3] %v5
    %v8 = vld [vmem:[%s0] sm:%s3]
    %9 = vst [vmem:[#allocation1] sm:%s3] %v8
    %s10 = smov 3
    %v11 = vld [vmem:[#allocation1] ss:$8 sm:%s10]
    %vm12 = vcmask 64512
    %13 = vst.msk [vmem:[#allocation0] sm:$0x3] %vm12, %v11
    %s14 = scalar_lea.vmem [#allocation1], 1
    %s15 = smov 3
    %v16 = vld [vmem:[%s14] ss:$8 sm:%s15]
    %17 = vrot.lane.b32.xlu0 %v16, 8
    %v18 = vpop.permute.xlu0 %17
    %vm19 = vcmask 130112
    %20 = vst.msk [vmem:[#allocation0] sm:$0x3] %vm19, %v18
    %s22 = ssub.s32 4, 1
    %v23 = vld [vmem:[#allocation0] sm:%s22]
    %s25 = ssub.s32 4, 1
    %26 = vst [vmem:[%s1] sm:%s25] %v23

// kernel: pallas_forward.1
$region0: #{pallas_forward.1}
  #allocation0 [shape = 'u32[]', space=smem, size = 0x4, offset = 0x4, fixed_abs, tag = 'smem constant byte address 0x4 - core index']
  #allocation1 [shape = 'u32[72,128]{1,0:T(1,128)}', space=vmem, size = 0x9000, scoped, tag = 'internal scratch']
  #allocation2 [shape = 'f32[8,42]{1,0:T(8,128)}', space=vmem, size = 0x1000, scoped, tag = 'scratch operand']
  #allocation3 [shape = 'f32[88,32]{1,0:T(8,128)}', space=vmem, size = 0xb000, scoped, tag = 'scratch operand']
  #allocation4 [shape = 'f32[8,16]{1,0:T(8,128)}', space=vmem, size = 0x1000, scoped, tag = 'scratch operand']
  %s0 = inlined_call_operand.vmem [shape: f32[2,8,32], index: 0, kind: input, shape index: {}]
  %s1 = inlined_call_operand.vmem [shape: f32[16,48], index: 1, kind: input, shape index: {}]
  %s2 = inlined_call_operand.vmem [shape: f32[16,16], index: 2, kind: input, shape index: {}]
  %s3 = inlined_call_operand.vmem [shape: f32[1,16], index: 3, kind: input, shape index: {}]
  %s4 = inlined_call_operand.hbm [shape: f32[1,16], index: 4, kind: input, shape index: {}]
  %s5 = inlined_call_operand.hbm [shape: f32[1,16], index: 5, kind: input, shape index: {}]
  %s6 = inlined_call_operand.hbm [shape: f32[16,16], index: 6, kind: input, shape index: {}]
  %s7 = inlined_call_operand.hbm [shape: f32[1,16], index: 7, kind: input, shape index: {}]
  %s8 = inlined_call_operand.hbm [shape: f32[16,16], index: 8, kind: input, shape index: {}]
  %s9 = inlined_call_operand.hbm [shape: f32[1,16], index: 9, kind: input, shape index: {}]
  %s10 = inlined_call_operand.vmem [shape: f32[8,88], index: 10, kind: input, shape index: {}]
  %s11 = inlined_call_operand.vmem [shape: f32[8,1], index: 11, kind: input, shape index: {}]
  %s12 = inlined_call_operand.hbm [shape: f32[8,48], index: 12, kind: input, shape index: {}]
  %s13 = inlined_call_operand.vmem [shape: f32[16,8], index: 13, kind: input, shape index: {}]
  %s14 = inlined_call_operand.hbm [shape: f32[1,8], index: 14, kind: input, shape index: {}]
  %s15 = inlined_call_operand.hbm [shape: f32[1,8], index: 15, kind: input, shape index: {}]
  %s16 = inlined_call_operand.hbm [shape: f32[1,8], index: 16, kind: input, shape index: {}]
  %s17 = inlined_call_operand.hbm [shape: f32[8,16], index: 17, kind: input, shape index: {}]
  %s18 = inlined_call_operand.hbm [shape: f32[1,16], index: 18, kind: input, shape index: {}]
  %s19 = inlined_call_operand.vmem [shape: f32[16,8], index: 19, kind: input, shape index: {}]
  %s20 = inlined_call_operand.vmem [shape: f32[1,8], index: 20, kind: input, shape index: {}]
  %s21 = inlined_call_operand.vmem [shape: f32[8,88], index: 21, kind: input, shape index: {}]
  %s22 = inlined_call_operand.vmem [shape: f32[8,1], index: 22, kind: input, shape index: {}]
  %s23 = inlined_call_operand.vmem [shape: f32[2,8,8], index: 23, kind: output, shape index: {0}]
  %s24 = inlined_call_operand.vmem [shape: f32[2,2,8,1], index: 24, kind: output, shape index: {1}]
  %25 = xla_tuple %s23, %s24
  %s26 = sld [smem:[#allocation0]]
  $region181: #{pallas_forward.1} parent=0
    _
  %s28 = ssub.s32 1, %s26
  %s29 = scalar_select 0, %s28, %s26
  $region1: #{pallas_forward.1} parent=0
    #allocation5 [shape = 'u8[512]{0}', space=vmem, size = 0x400, scoped, tag = 'input window, operand 4, single buffered']
    #allocation6 [shape = 's32[2]{0}', space=sflag, size = 0x8, scoped, tag = 'scoped memory for pallas_forward.1']
    #allocation7 [shape = 'u8[512]{0}', space=vmem, size = 0x400, scoped, tag = 'input window, operand 5, single buffered']
    #allocation8 [shape = 's32[1]{0}', space=sflag, size = 0x4, scoped, tag = 'scoped memory for pallas_forward.1']
    #allocation9 [shape = 'u8[8192]{0}', space=vmem, size = 0x2000, scoped, tag = 'input window, operand 6, single buffered']
    #allocation10 [shape = 'u8[512]{0}', space=vmem, size = 0x400, scoped, tag = 'input window, operand 7, single buffered']
    #allocation11 [shape = 's32[1]{0}', space=sflag, size = 0x4, scoped, tag = 'scoped memory for pallas_forward.1']
    #allocation12 [shape = 'u8[8192]{0}', space=vmem, size = 0x2000, scoped, tag = 'input window, operand 8, single buffered']
    #allocation13 [shape = 'u8[512]{0}', space=vmem, size = 0x400, scoped, tag = 'input window, operand 9, single buffered']
    #allocation14 [shape = 's32[1]{0}', space=sflag, size = 0x4, scoped, tag = 'scoped memory for pallas_forward.1']
    #allocation15 [shape = 'u8[4096]{0}', space=vmem, size = 0x1000, scoped, tag = 'input window, operand 12, single buffered']
    #allocation16 [shape = 'u8[512]{0}', space=vmem, size = 0x400, scoped, tag = 'input window, operand 14, single buffered']
    #allocation17 [shape = 's32[1]{0}', space=sflag, size = 0x4, scoped, tag = 'scoped memory for pallas_forward.1']
    #allocation18 [shape = 'u8[512]{0}', space=vmem, size = 0x400, scoped, tag = 'input window, operand 15, single buffered']
    #allocation19 [shape = 'u8[512]{0}', space=vmem, size = 0x400, scoped, tag = 'input window, operand 16, single buffered']
    #allocation20 [shape = 's32[1]{0}', space=sflag, size = 0x4, scoped, tag = 'scoped memory for pallas_forward.1']
    #allocation21 [shape = 'u8[4096]{0}', space=vmem, size = 0x1000, scoped, tag = 'input window, operand 17, single buffered']
    #allocation22 [shape = 'u8[512]{0}', space=vmem, size = 0x400, scoped, tag = 'input window, operand 18, single buffered']
    #allocation23 [shape = 's32[1]{0}', space=sflag, size = 0x4, scoped, tag = 'scoped memory for pallas_forward.1']
    %30 = vsyncpa [#allocation6], 0
    %31 = vsyncpa [#allocation8], 0
    %32 = vsyncpa [#allocation11], 0
    %33 = vsyncpa [#allocation14], 0
    %34 = vsyncpa [#allocation17], 0
    %35 = vsyncpa [#allocation20], 0
    %36 = vsyncpa [#allocation23], 0
    loop: start=0, step=1, limit=4
    $region2: #{pallas_forward.1} parent=1 // loop_pre_header
      _
    $region3: #{pallas_forward.1} parent=1 // loop_header
      %s38 = sphi 0, %s42
      %p39 = scmp.ge.s32.totalorder %s38, 4
      %s48 = sphi 0, %s50
      %s51 = sphi 0, %s48
      %s52 = sphi 0, %s51
      %s68 = sphi 0, %s52
      %s72 = sphi 0, %s72
      %s74 = sphi 0, %s72
      %s75 = sphi 0, %s74
      %s89 = sphi 0, %s75
      %s93 = sphi 0, %s93
      %s95 = sphi 0, %s93
      %s96 = sphi 0, %s95
      %s110 = sphi 0, %s96
      %s114 = sphi 0, %s114
      %s116 = sphi 0, %s114
      %s117 = sphi 0, %s116
      %s131 = sphi 0, %s117
      %s135 = sphi 0, %s135
      %s137 = sphi 0, %s135
      %s138 = sphi 0, %s137
      %s152 = sphi 0, %s138
      %s156 = sphi 0, %s156
      %s158 = sphi 0, %s156
      %s159 = sphi 0, %s158
      %s173 = sphi 0, %s159
      %s177 = sphi 0, %s177
      %s179 = sphi 0, %s177
      %s180 = sphi 0, %s179
      %s194 = sphi 0, %s180
      %s198 = sphi 0, %s198
      %s200 = sphi 0, %s198
      %s201 = sphi 0, %s200
      %s215 = sphi 0, %s201
      %s219 = sphi 0, %s219
      %s221 = sphi 0, %s219
      %s222 = sphi 0, %s221
      %s236 = sphi 0, %s222
      %s240 = sphi 0, %s240
      %s242 = sphi 0, %s240
      %s243 = sphi 0, %s242
      %s257 = sphi 0, %s243
      %s261 = sphi 0, %s261
      %s263 = sphi 0, %s261
      %s264 = sphi 0, %s263
      %s278 = sphi 0, %s264
      %s282 = sphi 0, %s282
      %s284 = sphi 0, %s282
      %s285 = sphi 0, %s284
      %s299 = sphi 0, %s285
      %s303 = sphi 0, %s303
      %s305 = sphi 0, %s303
      %s306 = sphi 0, %s305
      %s320 = sphi 0, %s306
      %s324 = sphi 0, %s324
      %s326 = sphi 0, %s324
      %s327 = sphi 0, %s326
      %s341 = sphi 0, %s327
      %s345 = sphi 0, %s345
      %s347 = sphi 0, %s345
      %s348 = sphi 0, %s347
      %s362 = sphi 0, %s348
      %s366 = sphi 0, %s366
      %s368 = sphi 0, %s366
      %s369 = sphi 0, %s368
      %s383 = sphi 0, %s369
      %s387 = sphi 0, %s387
      %s389 = sphi 0, %s387
      %s390 = sphi 0, %s389
      %s404 = sphi 0, %s390
      %s408 = sphi 0, %s408
      %s410 = sphi 0, %s408
      %s411 = sphi 0, %s410
      %s425 = sphi 0, %s411
      %s429 = sphi 0, %s429
      %s431 = sphi 0, %s429
      %s432 = sphi 0, %s431
      %s446 = sphi 0, %s432
      %s450 = sphi 0, %s450
      %s452 = sphi 0, %s450
      %s453 = sphi 0, %s452
      %s467 = sphi 0, %s453
      %s471 = sphi 0, %s471
      %s473 = sphi 0, %s471
      %s474 = sphi 0, %s473
      %s488 = sphi 0, %s474
      %s492 = sphi 0, %s492
      %s494 = sphi 0, %s492
      %s495 = sphi 0, %s494
      %s509 = sphi 0, %s495
      %s513 = sphi 0, %s513
      %s515 = sphi 0, %s513
      %s516 = sphi 0, %s515
      %s530 = sphi 0, %s516
      %s536 = sphi 0, %s538
      %s539 = sphi 0, %s536
      %s540 = sphi 0, %s539
      %s556 = sphi 0, %s540
      %s562 = sphi 0, %s564
      %s565 = sphi 0, %s562
      %s566 = sphi 0, %s565
      %s582 = sphi 0, %s566
    $region4: #{pallas_forward.1} parent=1 // loop_header_branch
      %41 = sbr.rel (%p39) target = $region8
    $region5: #{pallas_forward.1} parent=1 // loop_body
      %s43 = ssub.s32 %s38, 1
      %s44 = ssub.s32 %s38, 2
      %s45 = sadd.s32 %s38, 1
      %s46 = ssub.s32 %s38, %s45
      %p47 = scmp.eq.s32.totalorder %s46, 0
      %s49 = sadd.s32 %s48, 1
      %s50 = scalar_select %p47, %s48, %s49
      %p53 = pneg %p47
      %p54 = scmp.eq.s32.totalorder %s38, 1
      %p55 = por %p53, %p54
      %p56 = scmp.ne.s32.totalorder %s48, %s51
      %p57 = scmp.eq.s32.totalorder %s38, 0
      %p58 = por %p56, %p57
      %p59 = scmp.ne.s32.totalorder %s48, %s51
      %p60 = scmp.eq.s32.totalorder %s43, 1
      %p61 = por %p59, %p60
      %p62 = scmp.ne.s32.totalorder %s51, %s52
      %p63 = scmp.eq.s32.totalorder %s43, 0
      %p64 = por %p62, %p63
      %p65 = scmp.ne.s32.totalorder %s51, %s52
      %p66 = scmp.eq.s32.totalorder %s44, 1
      %p67 = por %p65, %p66
      %p69 = scmp.ne.s32.totalorder %s52, %s68
      %p70 = scmp.eq.s32.totalorder %s44, 0
      %p71 = por %p69, %p70
      %s73 = sadd.s32 %s72, 1
      %p76 = scmp.eq.s32.totalorder %s38, 1
      %p77 = scmp.ne.s32.totalorder %s72, %s74
      %p78 = scmp.eq.s32.totalorder %s38, 0
      %p79 = por %p77, %p78
      %p80 = scmp.ne.s32.totalorder %s72, %s74
      %p81 = scmp.eq.s32.totalorder %s43, 1
      %p82 = por %p80, %p81
      %p83 = scmp.ne.s32.totalorder %s74, %s75
      %p84 = scmp.eq.s32.totalorder %s43, 0
      %p85 = por %p83, %p84
      %p86 = scmp.ne.s32.totalorder %s74, %s75
      %p87 = scmp.eq.s32.totalorder %s44, 1
      %p88 = por %p86, %p87
      %p90 = scmp.ne.s32.totalorder %s75, %s89
      %p91 = scmp.eq.s32.totalorder %s44, 0
      %p92 = por %p90, %p91
      %s94 = sadd.s32 %s93, 1
      %p97 = scmp.eq.s32.totalorder %s38, 1
      %p98 = scmp.ne.s32.totalorder %s93, %s95
      %p99 = scmp.eq.s32.totalorder %s38, 0
      %p100 = por %p98, %p99
      %p101 = scmp.ne.s32.totalorder %s93, %s95
      %p102 = scmp.eq.s32.totalorder %s43, 1
      %p103 = por %p101, %p102
      %p104 = scmp.ne.s32.totalorder %s95, %s96
      %p105 = scmp.eq.s32.totalorder %s43, 0
      %p106 = por %p104, %p105
      %p107 = scmp.ne.s32.totalorder %s95, %s96
      %p108 = scmp.eq.s32.totalorder %s44, 1
      %p109 = por %p107, %p108
      %p111 = scmp.ne.s32.totalorder %s96, %s110
      %p112 = scmp.eq.s32.totalorder %s44, 0
      %p113 = por %p111, %p112
      %s115 = sadd.s32 %s114, 1
      %p118 = scmp.eq.s32.totalorder %s38, 1
      %p119 = scmp.ne.s32.totalorder %s114, %s116
      %p120 = scmp.eq.s32.totalorder %s38, 0
      %p121 = por %p119, %p120
      %p122 = scmp.ne.s32.totalorder %s114, %s116
      %p123 = scmp.eq.s32.totalorder %s43, 1
      %p124 = por %p122, %p123
      %p125 = scmp.ne.s32.totalorder %s116, %s117
      %p126 = scmp.eq.s32.totalorder %s43, 0
      %p127 = por %p125, %p126
      %p128 = scmp.ne.s32.totalorder %s116, %s117
      %p129 = scmp.eq.s32.totalorder %s44, 1
      %p130 = por %p128, %p129
      %p132 = scmp.ne.s32.totalorder %s117, %s131
      %p133 = scmp.eq.s32.totalorder %s44, 0
      %p134 = por %p132, %p133
      %s136 = sadd.s32 %s135, 1
      %p139 = scmp.eq.s32.totalorder %s38, 1
      %p140 = scmp.ne.s32.totalorder %s135, %s137
      %p141 = scmp.eq.s32.totalorder %s38, 0
      %p142 = por %p140, %p141
      %p143 = scmp.ne.s32.totalorder %s135, %s137
      %p144 = scmp.eq.s32.totalorder %s43, 1
      %p145 = por %p143, %p144
      %p146 = scmp.ne.s32.totalorder %s137, %s138
      %p147 = scmp.eq.s32.totalorder %s43, 0
      %p148 = por %p146, %p147
      %p149 = scmp.ne.s32.totalorder %s137, %s138
      %p150 = scmp.eq.s32.totalorder %s44, 1
      %p151 = por %p149, %p150
      %p153 = scmp.ne.s32.totalorder %s138, %s152
      %p154 = scmp.eq.s32.totalorder %s44, 0
      %p155 = por %p153, %p154
      %s157 = sadd.s32 %s156, 1
      %p160 = scmp.eq.s32.totalorder %s38, 1
      %p161 = scmp.ne.s32.totalorder %s156, %s158
      %p162 = scmp.eq.s32.totalorder %s38, 0
      %p163 = por %p161, %p162
      %p164 = scmp.ne.s32.totalorder %s156, %s158
      %p165 = scmp.eq.s32.totalorder %s43, 1
      %p166 = por %p164, %p165
      %p167 = scmp.ne.s32.totalorder %s158, %s159
      %p168 = scmp.eq.s32.totalorder %s43, 0
      %p169 = por %p167, %p168
      %p170 = scmp.ne.s32.totalorder %s158, %s159
      %p171 = scmp.eq.s32.totalorder %s44, 1
      %p172 = por %p170, %p171
      %p174 = scmp.ne.s32.totalorder %s159, %s173
      %p175 = scmp.eq.s32.totalorder %s44, 0
      %p176 = por %p174, %p175
      %s178 = sadd.s32 %s177, 1
      %p181 = scmp.eq.s32.totalorder %s38, 1
      %p182 = scmp.ne.s32.totalorder %s177, %s179
      %p183 = scmp.eq.s32.totalorder %s38, 0
      %p184 = por %p182, %p183
      %p185 = scmp.ne.s32.totalorder %s177, %s179
      %p186 = scmp.eq.s32.totalorder %s43, 1
      %p187 = por %p185, %p186
      %p188 = scmp.ne.s32.totalorder %s179, %s180
      %p189 = scmp.eq.s32.totalorder %s43, 0
      %p190 = por %p188, %p189
      %p191 = scmp.ne.s32.totalorder %s179, %s180
      %p192 = scmp.eq.s32.totalorder %s44, 1
      %p193 = por %p191, %p192
      %p195 = scmp.ne.s32.totalorder %s180, %s194
      %p196 = scmp.eq.s32.totalorder %s44, 0
      %p197 = por %p195, %p196
      %s199 = sadd.s32 %s198, 1
      %p202 = scmp.eq.s32.totalorder %s38, 1
      %p203 = scmp.ne.s32.totalorder %s198, %s200
      %p204 = scmp.eq.s32.totalorder %s38, 0
      %p205 = por %p203, %p204
      %p206 = scmp.ne.s32.totalorder %s198, %s200
      %p207 = scmp.eq.s32.totalorder %s43, 1
      %p208 = por %p206, %p207
      %p209 = scmp.ne.s32.totalorder %s200, %s201
      %p210 = scmp.eq.s32.totalorder %s43, 0
      %p211 = por %p209, %p210
      %p212 = scmp.ne.s32.totalorder %s200, %s201
      %p213 = scmp.eq.s32.totalorder %s44, 1
      %p214 = por %p212, %p213
      %p216 = scmp.ne.s32.totalorder %s201, %s215
      %p217 = scmp.eq.s32.totalorder %s44, 0
      %p218 = por %p216, %p217
      %s220 = sadd.s32 %s219, 1
      %p223 = scmp.eq.s32.totalorder %s38, 1
      %p224 = scmp.ne.s32.totalorder %s219, %s221
      %p225 = scmp.eq.s32.totalorder %s38, 0
      %p226 = por %p224, %p225
      %p227 = scmp.ne.s32.totalorder %s219, %s221
      %p228 = scmp.eq.s32.totalorder %s43, 1
      %p229 = por %p227, %p228
      %p230 = scmp.ne.s32.totalorder %s221, %s222
      %p231 = scmp.eq.s32.totalorder %s43, 0
      %p232 = por %p230, %p231
      %p233 = scmp.ne.s32.totalorder %s221, %s222
      %p234 = scmp.eq.s32.totalorder %s44, 1
      %p235 = por %p233, %p234
      %p237 = scmp.ne.s32.totalorder %s222, %s236
      %p238 = scmp.eq.s32.totalorder %s44, 0
      %p239 = por %p237, %p238
      %s241 = sadd.s32 %s240, 1
      %p244 = scmp.eq.s32.totalorder %s38, 1
      %p245 = scmp.ne.s32.totalorder %s240, %s242
      %p246 = scmp.eq.s32.totalorder %s38, 0
      %p247 = por %p245, %p246
      %p248 = scmp.ne.s32.totalorder %s240, %s242
      %p249 = scmp.eq.s32.totalorder %s43, 1
      %p250 = por %p248, %p249
      %p251 = scmp.ne.s32.totalorder %s242, %s243
      %p252 = scmp.eq.s32.totalorder %s43, 0
      %p253 = por %p251, %p252
      %p254 = scmp.ne.s32.totalorder %s242, %s243
      %p255 = scmp.eq.s32.totalorder %s44, 1
      %p256 = por %p254, %p255
      %p258 = scmp.ne.s32.totalorder %s243, %s257
      %p259 = scmp.eq.s32.totalorder %s44, 0
      %p260 = por %p258, %p259
      %s262 = sadd.s32 %s261, 1
      %p265 = scmp.eq.s32.totalorder %s38, 1
      %p266 = scmp.ne.s32.totalorder %s261, %s263
      %p267 = scmp.eq.s32.totalorder %s38, 0
      %p268 = por %p266, %p267
      %p269 = scmp.ne.s32.totalorder %s261, %s263
      %p270 = scmp.eq.s32.totalorder %s43, 1
      %p271 = por %p269, %p270
      %p272 = scmp.ne.s32.totalorder %s263, %s264
      %p273 = scmp.eq.s32.totalorder %s43, 0
      %p274 = por %p272, %p273
      %p275 = scmp.ne.s32.totalorder %s263, %s264
      %p276 = scmp.eq.s32.totalorder %s44, 1
      %p277 = por %p275, %p276
      %p279 = scmp.ne.s32.totalorder %s264, %s278
      %p280 = scmp.eq.s32.totalorder %s44, 0
      %p281 = por %p279, %p280
      %s283 = sadd.s32 %s282, 1
      %p286 = scmp.eq.s32.totalorder %s38, 1
      %p287 = scmp.ne.s32.totalorder %s282, %s284
      %p288 = scmp.eq.s32.totalorder %s38, 0
      %p289 = por %p287, %p288
      %p290 = scmp.ne.s32.totalorder %s282, %s284
      %p291 = scmp.eq.s32.totalorder %s43, 1
      %p292 = por %p290, %p291
      %p293 = scmp.ne.s32.totalorder %s284, %s285
      %p294 = scmp.eq.s32.totalorder %s43, 0
      %p295 = por %p293, %p294
      %p296 = scmp.ne.s32.totalorder %s284, %s285
      %p297 = scmp.eq.s32.totalorder %s44, 1
      %p298 = por %p296, %p297
      %p300 = scmp.ne.s32.totalorder %s285, %s299
      %p301 = scmp.eq.s32.totalorder %s44, 0
      %p302 = por %p300, %p301
      %s304 = sadd.s32 %s303, 1
      %p307 = scmp.eq.s32.totalorder %s38, 1
      %p308 = scmp.ne.s32.totalorder %s303, %s305
      %p309 = scmp.eq.s32.totalorder %s38, 0
      %p310 = por %p308, %p309
      %p311 = scmp.ne.s32.totalorder %s303, %s305
      %p312 = scmp.eq.s32.totalorder %s43, 1
      %p313 = por %p311, %p312
      %p314 = scmp.ne.s32.totalorder %s305, %s306
      %p315 = scmp.eq.s32.totalorder %s43, 0
      %p316 = por %p314, %p315
      %p317 = scmp.ne.s32.totalorder %s305, %s306
      %p318 = scmp.eq.s32.totalorder %s44, 1
      %p319 = por %p317, %p318
      %p321 = scmp.ne.s32.totalorder %s306, %s320
      %p322 = scmp.eq.s32.totalorder %s44, 0
      %p323 = por %p321, %p322
      %s325 = sadd.s32 %s324, 1
      %p328 = scmp.eq.s32.totalorder %s38, 1
      %p329 = scmp.ne.s32.totalorder %s324, %s326
      %p330 = scmp.eq.s32.totalorder %s38, 0
      %p331 = por %p329, %p330
      %p332 = scmp.ne.s32.totalorder %s324, %s326
      %p333 = scmp.eq.s32.totalorder %s43, 1
      %p334 = por %p332, %p333
      %p335 = scmp.ne.s32.totalorder %s326, %s327
      %p336 = scmp.eq.s32.totalorder %s43, 0
      %p337 = por %p335, %p336
      %p338 = scmp.ne.s32.totalorder %s326, %s327
      %p339 = scmp.eq.s32.totalorder %s44, 1
      %p340 = por %p338, %p339
      %p342 = scmp.ne.s32.totalorder %s327, %s341
      %p343 = scmp.eq.s32.totalorder %s44, 0
      %p344 = por %p342, %p343
      %s346 = sadd.s32 %s345, 1
      %p349 = scmp.eq.s32.totalorder %s38, 1
      %p350 = scmp.ne.s32.totalorder %s345, %s347
      %p351 = scmp.eq.s32.totalorder %s38, 0
      %p352 = por %p350, %p351
      %p353 = scmp.ne.s32.totalorder %s345, %s347
      %p354 = scmp.eq.s32.totalorder %s43, 1
      %p355 = por %p353, %p354
      %p356 = scmp.ne.s32.totalorder %s347, %s348
      %p357 = scmp.eq.s32.totalorder %s43, 0
      %p358 = por %p356, %p357
      %p359 = scmp.ne.s32.totalorder %s347, %s348
      %p360 = scmp.eq.s32.totalorder %s44, 1
      %p361 = por %p359, %p360
      %p363 = scmp.ne.s32.totalorder %s348, %s362
      %p364 = scmp.eq.s32.totalorder %s44, 0
      %p365 = por %p363, %p364
      %s367 = sadd.s32 %s366, 1
      %p370 = scmp.eq.s32.totalorder %s38, 1
      %p371 = scmp.ne.s32.totalorder %s366, %s368
      %p372 = scmp.eq.s32.totalorder %s38, 0
      %p373 = por %p371, %p372
      %p374 = scmp.ne.s32.totalorder %s366, %s368
      %p375 = scmp.eq.s32.totalorder %s43, 1
      %p376 = por %p374, %p375
      %p377 = scmp.ne.s32.totalorder %s368, %s369
      %p378 = scmp.eq.s32.totalorder %s43, 0
      %p379 = por %p377, %p378
      %p380 = scmp.ne.s32.totalorder %s368, %s369
      %p381 = scmp.eq.s32.totalorder %s44, 1
      %p382 = por %p380, %p381
      %p384 = scmp.ne.s32.totalorder %s369, %s383
      %p385 = scmp.eq.s32.totalorder %s44, 0
      %p386 = por %p384, %p385
      %s388 = sadd.s32 %s387, 1
      %p391 = scmp.eq.s32.totalorder %s38, 1
      %p392 = scmp.ne.s32.totalorder %s387, %s389
      %p393 = scmp.eq.s32.totalorder %s38, 0
      %p394 = por %p392, %p393
      %p395 = scmp.ne.s32.totalorder %s387, %s389
      %p396 = scmp.eq.s32.totalorder %s43, 1
      %p397 = por %p395, %p396
      %p398 = scmp.ne.s32.totalorder %s389, %s390
      %p399 = scmp.eq.s32.totalorder %s43, 0
      %p400 = por %p398, %p399
      %p401 = scmp.ne.s32.totalorder %s389, %s390
      %p402 = scmp.eq.s32.totalorder %s44, 1
      %p403 = por %p401, %p402
      %p405 = scmp.ne.s32.totalorder %s390, %s404
      %p406 = scmp.eq.s32.totalorder %s44, 0
      %p407 = por %p405, %p406
      %s409 = sadd.s32 %s408, 1
      %p412 = scmp.eq.s32.totalorder %s38, 1
      %p413 = scmp.ne.s32.totalorder %s408, %s410
      %p414 = scmp.eq.s32.totalorder %s38, 0
      %p415 = por %p413, %p414
      %p416 = scmp.ne.s32.totalorder %s408, %s410
      %p417 = scmp.eq.s32.totalorder %s43, 1
      %p418 = por %p416, %p417
      %p419 = scmp.ne.s32.totalorder %s410, %s411
      %p420 = scmp.eq.s32.totalorder %s43, 0
      %p421 = por %p419, %p420
      %p422 = scmp.ne.s32.totalorder %s410, %s411
      %p423 = scmp.eq.s32.totalorder %s44, 1
      %p424 = por %p422, %p423
      %p426 = scmp.ne.s32.totalorder %s411, %s425
      %p427 = scmp.eq.s32.totalorder %s44, 0
      %p428 = por %p426, %p427
      %s430 = sadd.s32 %s429, 1
      %p433 = scmp.eq.s32.totalorder %s38, 1
      %p434 = scmp.ne.s32.totalorder %s429, %s431
      %p435 = scmp.eq.s32.totalorder %s38, 0
      %p436 = por %p434, %p435
      %p437 = scmp.ne.s32.totalorder %s429, %s431
      %p438 = scmp.eq.s32.totalorder %s43, 1
      %p439 = por %p437, %p438
      %p440 = scmp.ne.s32.totalorder %s431, %s432
      %p441 = scmp.eq.s32.totalorder %s43, 0
      %p442 = por %p440, %p441
      %p443 = scmp.ne.s32.totalorder %s431, %s432
      %p444 = scmp.eq.s32.totalorder %s44, 1
      %p445 = por %p443, %p444
      %p447 = scmp.ne.s32.totalorder %s432, %s446
      %p448 = scmp.eq.s32.totalorder %s44, 0
      %p449 = por %p447, %p448
      %s451 = sadd.s32 %s450, 1
      %p454 = scmp.eq.s32.totalorder %s38, 1
      %p455 = scmp.ne.s32.totalorder %s450, %s452
      %p456 = scmp.eq.s32.totalorder %s38, 0
      %p457 = por %p455, %p456
      %p458 = scmp.ne.s32.totalorder %s450, %s452
      %p459 = scmp.eq.s32.totalorder %s43, 1
      %p460 = por %p458, %p459
      %p461 = scmp.ne.s32.totalorder %s452, %s453
      %p462 = scmp.eq.s32.totalorder %s43, 0
      %p463 = por %p461, %p462
      %p464 = scmp.ne.s32.totalorder %s452, %s453
      %p465 = scmp.eq.s32.totalorder %s44, 1
      %p466 = por %p464, %p465
      %p468 = scmp.ne.s32.totalorder %s453, %s467
      %p469 = scmp.eq.s32.totalorder %s44, 0
      %p470 = por %p468, %p469
      %s472 = sadd.s32 %s471, 1
      %p475 = scmp.eq.s32.totalorder %s38, 1
      %p476 = scmp.ne.s32.totalorder %s471, %s473
      %p477 = scmp.eq.s32.totalorder %s38, 0
      %p478 = por %p476, %p477
      %p479 = scmp.ne.s32.totalorder %s471, %s473
      %p480 = scmp.eq.s32.totalorder %s43, 1
      %p481 = por %p479, %p480
      %p482 = scmp.ne.s32.totalorder %s473, %s474
      %p483 = scmp.eq.s32.totalorder %s43, 0
      %p484 = por %p482, %p483
      %p485 = scmp.ne.s32.totalorder %s473, %s474
      %p486 = scmp.eq.s32.totalorder %s44, 1
      %p487 = por %p485, %p486
      %p489 = scmp.ne.s32.totalorder %s474, %s488
      %p490 = scmp.eq.s32.totalorder %s44, 0
      %p491 = por %p489, %p490
      %s493 = sadd.s32 %s492, 1
      %p496 = scmp.eq.s32.totalorder %s38, 1
      %p497 = scmp.ne.s32.totalorder %s492, %s494
      %p498 = scmp.eq.s32.totalorder %s38, 0
      %p499 = por %p497, %p498
      %p500 = scmp.ne.s32.totalorder %s492, %s494
      %p501 = scmp.eq.s32.totalorder %s43, 1
      %p502 = por %p500, %p501
      %p503 = scmp.ne.s32.totalorder %s494, %s495
      %p504 = scmp.eq.s32.totalorder %s43, 0
      %p505 = por %p503, %p504
      %p506 = scmp.ne.s32.totalorder %s494, %s495
      %p507 = scmp.eq.s32.totalorder %s44, 1
      %p508 = por %p506, %p507
      %p510 = scmp.ne.s32.totalorder %s495, %s509
      %p511 = scmp.eq.s32.totalorder %s44, 0
      %p512 = por %p510, %p511
      %s514 = sadd.s32 %s513, 1
      %p517 = scmp.eq.s32.totalorder %s38, 1
      %p518 = scmp.ne.s32.totalorder %s513, %s515
      %p519 = scmp.eq.s32.totalorder %s38, 0
      %p520 = por %p518, %p519
      %p521 = scmp.ne.s32.totalorder %s513, %s515
      %p522 = scmp.eq.s32.totalorder %s43, 1
      %p523 = por %p521, %p522
      %p524 = scmp.ne.s32.totalorder %s515, %s516
      %p525 = scmp.eq.s32.totalorder %s43, 0
      %p526 = por %p524, %p525
      %p527 = scmp.ne.s32.totalorder %s515, %s516
      %p528 = scmp.eq.s32.totalorder %s44, 1
      %p529 = por %p527, %p528
      %p531 = scmp.ne.s32.totalorder %s516, %s530
      %p532 = scmp.eq.s32.totalorder %s44, 0
      %p533 = por %p531, %p532
      %s534 = ssub.s32 %s38, %s45
      %p535 = scmp.eq.s32.totalorder %s534, 0
      %s537 = sadd.s32 %s536, 1
      %s538 = scalar_select %p535, %s536, %s537
      %p541 = pneg %p535
      %p542 = scmp.eq.s32.totalorder %s38, 1
      %p543 = por %p541, %p542
      %p544 = scmp.ne.s32.totalorder %s536, %s539
      %p545 = scmp.eq.s32.totalorder %s38, 0
      %p546 = por %p544, %p545
      %p547 = scmp.ne.s32.totalorder %s536, %s539
      %p548 = scmp.eq.s32.totalorder %s43, 1
      %p549 = por %p547, %p548
      %p550 = scmp.ne.s32.totalorder %s539, %s540
      %p551 = scmp.eq.s32.totalorder %s43, 0
      %p552 = por %p550, %p551
      %p553 = scmp.ne.s32.totalorder %s539, %s540
      %p554 = scmp.eq.s32.totalorder %s44, 1
      %p555 = por %p553, %p554
      %p557 = scmp.ne.s32.totalorder %s540, %s556
      %p558 = scmp.eq.s32.totalorder %s44, 0
      %p559 = por %p557, %p558
      %s560 = ssub.s32 %s38, %s45
      %p561 = scmp.eq.s32.totalorder %s560, 0
      %s563 = sadd.s32 %s562, 1
      %s564 = scalar_select %p561, %s562, %s563
      %p567 = pneg %p561
      %p568 = scmp.eq.s32.totalorder %s38, 1
      %p569 = por %p567, %p568
      %p570 = scmp.ne.s32.totalorder %s562, %s565
      %p571 = scmp.eq.s32.totalorder %s38, 0
      %p572 = por %p570, %p571
      %p573 = scmp.ne.s32.totalorder %s562, %s565
      %p574 = scmp.eq.s32.totalorder %s43, 1
      %p575 = por %p573, %p574
      %p576 = scmp.ne.s32.totalorder %s565, %s566
      %p577 = scmp.eq.s32.totalorder %s43, 0
      %p578 = por %p576, %p577
      %p579 = scmp.ne.s32.totalorder %s565, %s566
      %p580 = scmp.eq.s32.totalorder %s44, 1
      %p581 = por %p579, %p580
      %p583 = scmp.ne.s32.totalorder %s566, %s582
      %p584 = scmp.eq.s32.totalorder %s44, 0
      %p585 = por %p583, %p584
      %p586 = scmp.le.s32.totalorder 1, %s38
      %p587 = scmp.lt.s32.totalorder %s38, 3
      %p588 = pnand %p586, %p587
      %p589 = pneg %p588
      // Predicated region
      $region9: #{pallas_forward.1} parent=5 // pred_check
        _
      $region10: #{pallas_forward.1} parent=5 // pred_check_branch
        %591 = sbr.rel (%p588) target = $region12
      $region11: #{pallas_forward.1} parent=5 // pred_region
        %s592 = ssub.s32 %s38, 1
        // Predicated region
        $region13: #{pallas_forward.1} parent=11 // pred_check
          %p593 = pneg %p85
        $region14: #{pallas_forward.1} parent=11 // pred_check_branch
          %595 = sbr.rel (%p593) target = $region16
        $region15: #{pallas_forward.1} parent=11 // pred_region
          _
        $region16: #{pallas_forward.1} parent=11 // pred_fallthru
          _
        // Predicated region
        $region17: #{pallas_forward.1} parent=11 // pred_check
          %p596 = pneg %p106
        $region18: #{pallas_forward.1} parent=11 // pred_check_branch
          %598 = sbr.rel (%p596) target = $region20
        $region19: #{pallas_forward.1} parent=11 // pred_region
          _
        $region20: #{pallas_forward.1} parent=11 // pred_fallthru
          _
        // Predicated region
        $region21: #{pallas_forward.1} parent=11 // pred_check
          %p599 = pneg %p127
        $region22: #{pallas_forward.1} parent=11 // pred_check_branch
          %601 = sbr.rel (%p599) target = $region24
        $region23: #{pallas_forward.1} parent=11 // pred_region
          _
        $region24: #{pallas_forward.1} parent=11 // pred_fallthru
          _
        // Predicated region
        $region25: #{pallas_forward.1} parent=11 // pred_check
          %p602 = pneg %p148
        $region26: #{pallas_forward.1} parent=11 // pred_check_branch
          %604 = sbr.rel (%p602) target = $region28
        $region27: #{pallas_forward.1} parent=11 // pred_region
          %606 = vsyncadd [#allocation6], 0
          %s608 = sshll.u32 %s4, 4
          %s609 = int_to_ptr.hbm [resolvable:$true] %s608
          %s610 = sshll.u32 [#allocation5], 4
          %s611 = int_to_ptr.vmem [resolvable:$true] %s610
          %613 = dma.hbm_to_vmem [thread:$0]  %s609, 16, %s611, [#allocation6]
        $region28: #{pallas_forward.1} parent=11 // pred_fallthru
          _
        // Predicated region
        $region29: #{pallas_forward.1} parent=11 // pred_check
          %p614 = pneg %p169
        $region30: #{pallas_forward.1} parent=11 // pred_check_branch
          %616 = sbr.rel (%p614) target = $region32
        $region31: #{pallas_forward.1} parent=11 // pred_region
          %618 = vsyncadd [#allocation8], 0
          %s620 = sshll.u32 %s5, 4
          %s621 = int_to_ptr.hbm [resolvable:$true] %s620
          %s622 = sshll.u32 [#allocation7], 4
          %s623 = int_to_ptr.vmem [resolvable:$true] %s622
          %625 = dma.hbm_to_vmem [thread:$0]  %s621, 16, %s623, [#allocation8]
        $region32: #{pallas_forward.1} parent=11 // pred_fallthru
          _
        // Predicated region
        $region33: #{pallas_forward.1} parent=11 // pred_check
          %p626 = pneg %p190
        $region34: #{pallas_forward.1} parent=11 // pred_check_branch
          %628 = sbr.rel (%p626) target = $region36
        $region35: #{pallas_forward.1} parent=11 // pred_region
          %630 = vsyncadd [#allocation8], 0
          %s631 = sshll.u32 %s6, 4
          %s632 = int_to_ptr.hbm [resolvable:$true] %s631
          %s633 = sshll.u32 [#allocation9], 4
          %s634 = int_to_ptr.vmem [resolvable:$true] %s633
          %639 = dma.hbm_to_vmem [thread:$0]  %s632, 256, %s634, [#allocation8], 128, 128, 8
        $region36: #{pallas_forward.1} parent=11 // pred_fallthru
          _
        // Predicated region
        $region37: #{pallas_forward.1} parent=11 // pred_check
          %p640 = pneg %p211
        $region38: #{pallas_forward.1} parent=11 // pred_check_branch
          %642 = sbr.rel (%p640) target = $region40
        $region39: #{pallas_forward.1} parent=11 // pred_region
          %644 = vsyncadd [#allocation11], 0
          %s646 = sshll.u32 %s7, 4
          %s647 = int_to_ptr.hbm [resolvable:$true] %s646
          %s648 = sshll.u32 [#allocation10], 4
          %s649 = int_to_ptr.vmem [resolvable:$true] %s648
          %651 = dma.hbm_to_vmem [thread:$0]  %s647, 16, %s649, [#allocation11]
        $region40: #{pallas_forward.1} parent=11 // pred_fallthru
          _
        // Predicated region
        $region41: #{pallas_forward.1} parent=11 // pred_check
          %p652 = pneg %p232
        $region42: #{pallas_forward.1} parent=11 // pred_check_branch
          %654 = sbr.rel (%p652) target = $region44
        $region43: #{pallas_forward.1} parent=11 // pred_region
          %656 = vsyncadd [#allocation11], 0
          %s657 = sshll.u32 %s8, 4
          %s658 = int_to_ptr.hbm [resolvable:$true] %s657
          %s659 = sshll.u32 [#allocation12], 4
          %s660 = int_to_ptr.vmem [resolvable:$true] %s659
          %665 = dma.hbm_to_vmem [thread:$0]  %s658, 256, %s660, [#allocation11], 128, 128, 8
        $region44: #{pallas_forward.1} parent=11 // pred_fallthru
          _
        // Predicated region
        $region45: #{pallas_forward.1} parent=11 // pred_check
          %p666 = pneg %p253
        $region46: #{pallas_forward.1} parent=11 // pred_check_branch
          %668 = sbr.rel (%p666) target = $region48
        $region47: #{pallas_forward.1} parent=11 // pred_region
          %670 = vsyncadd [#allocation14], 0
          %s672 = sshll.u32 %s9, 4
          %s673 = int_to_ptr.hbm [resolvable:$true] %s672
          %s674 = sshll.u32 [#allocation13], 4
          %s675 = int_to_ptr.vmem [resolvable:$true] %s674
          %677 = dma.hbm_to_vmem [thread:$0]  %s673, 16, %s675, [#allocation14]
        $region48: #{pallas_forward.1} parent=11 // pred_fallthru
          _
        // Predicated region
        $region49: #{pallas_forward.1} parent=11 // pred_check
          %p678 = pneg %p274
        $region50: #{pallas_forward.1} parent=11 // pred_check_branch
          %680 = sbr.rel (%p678) target = $region52
        $region51: #{pallas_forward.1} parent=11 // pred_region
          _
        $region52: #{pallas_forward.1} parent=11 // pred_fallthru
          _
        // Predicated region
        $region53: #{pallas_forward.1} parent=11 // pred_check
          %p681 = pneg %p295
        $region54: #{pallas_forward.1} parent=11 // pred_check_branch
          %683 = sbr.rel (%p681) target = $region56
        $region55: #{pallas_forward.1} parent=11 // pred_region
          _
        $region56: #{pallas_forward.1} parent=11 // pred_fallthru
          _
        // Predicated region
        $region57: #{pallas_forward.1} parent=11 // pred_check
          %p684 = pneg %p316
        $region58: #{pallas_forward.1} parent=11 // pred_check_branch
          %686 = sbr.rel (%p684) target = $region60
        $region59: #{pallas_forward.1} parent=11 // pred_region
          %688 = vsyncadd [#allocation14], 0
          %s690 = sshll.u32 %s12, 4
          %s691 = int_to_ptr.hbm [resolvable:$true] %s690
          %s692 = sshll.u32 [#allocation15], 4
          %s693 = int_to_ptr.vmem [resolvable:$true] %s692
          %695 = dma.hbm_to_vmem [thread:$0]  %s691, 128, %s693, [#allocation14]
        $region60: #{pallas_forward.1} parent=11 // pred_fallthru
          _
        // Predicated region
        $region61: #{pallas_forward.1} parent=11 // pred_check
          %p696 = pneg %p337
        $region62: #{pallas_forward.1} parent=11 // pred_check_branch
          %698 = sbr.rel (%p696) target = $region64
        $region63: #{pallas_forward.1} parent=11 // pred_region
          _
        $region64: #{pallas_forward.1} parent=11 // pred_fallthru
          _
        // Predicated region
        $region65: #{pallas_forward.1} parent=11 // pred_check
          %p699 = pneg %p358
        $region66: #{pallas_forward.1} parent=11 // pred_check_branch
          %701 = sbr.rel (%p699) target = $region68
        $region67: #{pallas_forward.1} parent=11 // pred_region
          %703 = vsyncadd [#allocation17], 0
          %s705 = sshll.u32 %s14, 4
          %s706 = int_to_ptr.hbm [resolvable:$true] %s705
          %s707 = sshll.u32 [#allocation16], 4
          %s708 = int_to_ptr.vmem [resolvable:$true] %s707
          %710 = dma.hbm_to_vmem [thread:$0]  %s706, 16, %s708, [#allocation17]
        $region68: #{pallas_forward.1} parent=11 // pred_fallthru
          _
        // Predicated region
        $region69: #{pallas_forward.1} parent=11 // pred_check
          %p711 = pneg %p379
        $region70: #{pallas_forward.1} parent=11 // pred_check_branch
          %713 = sbr.rel (%p711) target = $region72
        $region71: #{pallas_forward.1} parent=11 // pred_region
          %715 = vsyncadd [#allocation17], 0
          %s717 = sshll.u32 %s15, 4
          %s718 = int_to_ptr.hbm [resolvable:$true] %s717
          %s719 = sshll.u32 [#allocation18], 4
          %s720 = int_to_ptr.vmem [resolvable:$true] %s719
          %722 = dma.hbm_to_vmem [thread:$0]  %s718, 16, %s720, [#allocation17]
        $region72: #{pallas_forward.1} parent=11 // pred_fallthru
          _
        // Predicated region
        $region73: #{pallas_forward.1} parent=11 // pred_check
          %p723 = pneg %p400
        $region74: #{pallas_forward.1} parent=11 // pred_check_branch
          %725 = sbr.rel (%p723) target = $region76
        $region75: #{pallas_forward.1} parent=11 // pred_region
          %727 = vsyncadd [#allocation20], 0
          %s729 = sshll.u32 %s16, 4
          %s730 = int_to_ptr.hbm [resolvable:$true] %s729
          %s731 = sshll.u32 [#allocation19], 4
          %s732 = int_to_ptr.vmem [resolvable:$true] %s731
          %734 = dma.hbm_to_vmem [thread:$0]  %s730, 16, %s732, [#allocation20]
        $region76: #{pallas_forward.1} parent=11 // pred_fallthru
          _
        // Predicated region
        $region77: #{pallas_forward.1} parent=11 // pred_check
          %p735 = pneg %p421
        $region78: #{pallas_forward.1} parent=11 // pred_check_branch
          %737 = sbr.rel (%p735) target = $region80
        $region79: #{pallas_forward.1} parent=11 // pred_region
          %739 = vsyncadd [#allocation20], 0
          %s741 = sshll.u32 %s17, 4
          %s742 = int_to_ptr.hbm [resolvable:$true] %s741
          %s743 = sshll.u32 [#allocation21], 4
          %s744 = int_to_ptr.vmem [resolvable:$true] %s743
          %746 = dma.hbm_to_vmem [thread:$0]  %s742, 128, %s744, [#allocation20]
        $region80: #{pallas_forward.1} parent=11 // pred_fallthru
          _
        // Predicated region
        $region81: #{pallas_forward.1} parent=11 // pred_check
          %p747 = pneg %p442
        $region82: #{pallas_forward.1} parent=11 // pred_check_branch
          %749 = sbr.rel (%p747) target = $region84
        $region83: #{pallas_forward.1} parent=11 // pred_region
          %751 = vsyncadd [#allocation23], 0
          %s753 = sshll.u32 %s18, 4
          %s754 = int_to_ptr.hbm [resolvable:$true] %s753
          %s755 = sshll.u32 [#allocation22], 4
          %s756 = int_to_ptr.vmem [resolvable:$true] %s755
          %758 = dma.hbm_to_vmem [thread:$0]  %s754, 16, %s756, [#allocation23]
        $region84: #{pallas_forward.1} parent=11 // pred_fallthru
          _
        // Predicated region
        $region85: #{pallas_forward.1} parent=11 // pred_check
          %p759 = pneg %p463
        $region86: #{pallas_forward.1} parent=11 // pred_check_branch
          %761 = sbr.rel (%p759) target = $region88
        $region87: #{pallas_forward.1} parent=11 // pred_region
          _
        $region88: #{pallas_forward.1} parent=11 // pred_fallthru
          _
        // Predicated region
        $region89: #{pallas_forward.1} parent=11 // pred_check
          %p762 = pneg %p484
        $region90: #{pallas_forward.1} parent=11 // pred_check_branch
          %764 = sbr.rel (%p762) target = $region92
        $region91: #{pallas_forward.1} parent=11 // pred_region
          _
        $region92: #{pallas_forward.1} parent=11 // pred_fallthru
          _
        // Predicated region
        $region93: #{pallas_forward.1} parent=11 // pred_check
          %p765 = pneg %p505
        $region94: #{pallas_forward.1} parent=11 // pred_check_branch
          %767 = sbr.rel (%p765) target = $region96
        $region95: #{pallas_forward.1} parent=11 // pred_region
          _
        $region96: #{pallas_forward.1} parent=11 // pred_fallthru
          _
        // Predicated region
        $region97: #{pallas_forward.1} parent=11 // pred_check
          %p768 = pneg %p526
        $region98: #{pallas_forward.1} parent=11 // pred_check_branch
          %770 = sbr.rel (%p768) target = $region100
        $region99: #{pallas_forward.1} parent=11 // pred_region
          _
        $region100: #{pallas_forward.1} parent=11 // pred_fallthru
          _
      $region12: #{pallas_forward.1} parent=5 // pred_fallthru
        _
      %p771 = scmp.lt.s32.totalorder %s38, 2
      // Predicated region
      $region101: #{pallas_forward.1} parent=5 // pred_check
        %p772 = pneg %p771
      $region102: #{pallas_forward.1} parent=5 // pred_check_branch
        %774 = sbr.rel (%p772) target = $region104
      $region103: #{pallas_forward.1} parent=5 // pred_region
        // Predicated region
        $region105: #{pallas_forward.1} parent=103 // pred_check
          %p775 = pneg %p58
        $region106: #{pallas_forward.1} parent=103 // pred_check_branch
          %777 = sbr.rel (%p775) target = $region108
        $region107: #{pallas_forward.1} parent=103 // pred_region
          %p778 = scmp.lt.s32.totalorder %s38, 1
          %s779 = scalar_select %p778, %s38, 1
          %s780 = smul.addr %s779, 8
          %s781 = scalar_lea.vmem %s0, %s780
        $region108: #{pallas_forward.1} parent=103 // pred_fallthru
          _
      $region104: #{pallas_forward.1} parent=5 // pred_fallthru
        _
      %p782 = scmp.le.s32.totalorder 1, %s38
      %p783 = scmp.lt.s32.totalorder %s38, 3
      %p784 = pnand %p782, %p783
      %p785 = pneg %p784
      // Predicated region
      $region109: #{pallas_forward.1} parent=5 // pred_check
        _
      $region110: #{pallas_forward.1} parent=5 // pred_check_branch
        %787 = sbr.rel (%p784) target = $region112
      $region111: #{pallas_forward.1} parent=5 // pred_region
        %s788 = ssub.s32 %s38, 1
        // Predicated region
        $region113: #{pallas_forward.1} parent=111 // pred_check
          %p789 = pneg %p148
        $region114: #{pallas_forward.1} parent=111 // pred_check_branch
          %791 = sbr.rel (%p789) target = $region116
        $region115: #{pallas_forward.1} parent=111 // pred_region
          %793 = dma.done [#allocation6], 16
        $region116: #{pallas_forward.1} parent=111 // pred_fallthru
          _
        // Predicated region
        $region117: #{pallas_forward.1} parent=111 // pred_check
          %p794 = pneg %p169
        $region118: #{pallas_forward.1} parent=111 // pred_check_branch
          %796 = sbr.rel (%p794) target = $region120
        $region119: #{pallas_forward.1} parent=111 // pred_region
          %798 = dma.done [#allocation8], 16
        $region120: #{pallas_forward.1} parent=111 // pred_fallthru
          _
        // Predicated region
        $region121: #{pallas_forward.1} parent=111 // pred_check
          %p799 = pneg %p190
        $region122: #{pallas_forward.1} parent=111 // pred_check_branch
          %801 = sbr.rel (%p799) target = $region124
        $region123: #{pallas_forward.1} parent=111 // pred_region
          %803 = dma.done [#allocation8], 256
        $region124: #{pallas_forward.1} parent=111 // pred_fallthru
          _
        // Predicated region
        $region125: #{pallas_forward.1} parent=111 // pred_check
          %p804 = pneg %p211
        $region126: #{pallas_forward.1} parent=111 // pred_check_branch
          %806 = sbr.rel (%p804) target = $region128
        $region127: #{pallas_forward.1} parent=111 // pred_region
          %808 = dma.done [#allocation11], 16
        $region128: #{pallas_forward.1} parent=111 // pred_fallthru
          _
        // Predicated region
        $region129: #{pallas_forward.1} parent=111 // pred_check
          %p809 = pneg %p232
        $region130: #{pallas_forward.1} parent=111 // pred_check_branch
          %811 = sbr.rel (%p809) target = $region132
        $region131: #{pallas_forward.1} parent=111 // pred_region
          %813 = dma.done [#allocation11], 256
        $region132: #{pallas_forward.1} parent=111 // pred_fallthru
          _
        // Predicated region
        $region133: #{pallas_forward.1} parent=111 // pred_check
          %p814 = pneg %p253
        $region134: #{pallas_forward.1} parent=111 // pred_check_branch
          %816 = sbr.rel (%p814) target = $region136
        $region135: #{pallas_forward.1} parent=111 // pred_region
          %818 = dma.done [#allocation14], 16
        $region136: #{pallas_forward.1} parent=111 // pred_fallthru
          _
        // Predicated region
        $region137: #{pallas_forward.1} parent=111 // pred_check
          %p819 = pneg %p316
        $region138: #{pallas_forward.1} parent=111 // pred_check_branch
          %821 = sbr.rel (%p819) target = $region140
        $region139: #{pallas_forward.1} parent=111 // pred_region
          %823 = dma.done [#allocation14], 128
        $region140: #{pallas_forward.1} parent=111 // pred_fallthru
          _
        // Predicated region
        $region141: #{pallas_forward.1} parent=111 // pred_check
          %p824 = pneg %p358
        $region142: #{pallas_forward.1} parent=111 // pred_check_branch
          %826 = sbr.rel (%p824) target = $region144
        $region143: #{pallas_forward.1} parent=111 // pred_region
          %828 = dma.done [#allocation17], 16
        $region144: #{pallas_forward.1} parent=111 // pred_fallthru
          _
        // Predicated region
        $region145: #{pallas_forward.1} parent=111 // pred_check
          %p829 = pneg %p379
        $region146: #{pallas_forward.1} parent=111 // pred_check_branch
          %831 = sbr.rel (%p829) target = $region148
        $region147: #{pallas_forward.1} parent=111 // pred_region
          %833 = dma.done [#allocation17], 16
        $region148: #{pallas_forward.1} parent=111 // pred_fallthru
          _
        // Predicated region
        $region149: #{pallas_forward.1} parent=111 // pred_check
          %p834 = pneg %p400
        $region150: #{pallas_forward.1} parent=111 // pred_check_branch
          %836 = sbr.rel (%p834) target = $region152
        $region151: #{pallas_forward.1} parent=111 // pred_region
          %838 = dma.done [#allocation20], 16
        $region152: #{pallas_forward.1} parent=111 // pred_fallthru
          _
        // Predicated region
        $region153: #{pallas_forward.1} parent=111 // pred_check
          %p839 = pneg %p421
        $region154: #{pallas_forward.1} parent=111 // pred_check_branch
          %841 = sbr.rel (%p839) target = $region156
        $region155: #{pallas_forward.1} parent=111 // pred_region
          %843 = dma.done [#allocation20], 128
        $region156: #{pallas_forward.1} parent=111 // pred_fallthru
          _
        // Predicated region
        $region157: #{pallas_forward.1} parent=111 // pred_check
          %p844 = pneg %p442
        $region158: #{pallas_forward.1} parent=111 // pred_check_branch
          %846 = sbr.rel (%p844) target = $region160
        $region159: #{pallas_forward.1} parent=111 // pred_region
          %848 = dma.done [#allocation23], 16
        $region160: #{pallas_forward.1} parent=111 // pred_fallthru
          _
        %p849 = scmp.lt.s32.totalorder %s43, 1
        %s850 = scalar_select %p849, %s43, 1
        %s851 = smul.addr %s850, 8
        %s852 = scalar_lea.vmem %s0, %s851
        %p853 = pneg %p64
        %p854 = pneg %p61
        %p855 = pneg %p85
        %p856 = pneg %p82
        %p857 = pneg %p106
        %p858 = pneg %p103
        %p859 = pneg %p127
        %p860 = pneg %p124
        %p861 = pneg %p148
        %p862 = pneg %p145
        %p863 = pneg %p169
        %p864 = pneg %p166
        %p865 = pneg %p190
        %p866 = pneg %p187
        %p867 = pneg %p211
        %p868 = pneg %p208
        %p869 = pneg %p232
        %p870 = pneg %p229
        %p871 = pneg %p253
        %p872 = pneg %p250
        %p873 = pneg %p274
        %p874 = pneg %p271
        %p875 = pneg %p295
        %p876 = pneg %p292
        %p877 = pneg %p316
        %p878 = pneg %p313
        %p879 = pneg %p337
        %p880 = pneg %p334
        %p881 = pneg %p358
        %p882 = pneg %p355
        %p883 = pneg %p379
        %p884 = pneg %p376
        %p885 = pneg %p400
        %p886 = pneg %p397
        %p887 = pneg %p421
        %p888 = pneg %p418
        %p889 = pneg %p442
        %p890 = pneg %p439
        %p891 = pneg %p463
        %p892 = pneg %p460
        %p893 = pneg %p484
        %p894 = pneg %p481
        %p895 = pneg %p505
        %p896 = pneg %p502
        %p897 = pneg %p526
        %p898 = pneg %p523
        %p899 = pneg %p552
        %p900 = pneg %p549
        %p901 = scmp.lt.s32.totalorder %s43, 1
        %s902 = scalar_select %p901, %s43, 1
        %s903 = smul.addr %s902, 8
        %s904 = scalar_lea.vmem %s23, %s903
        %p905 = pneg %p578
        %p906 = pneg %p575
        %p907 = scmp.lt.s32.totalorder %s43, 1
        %s908 = scalar_select %p907, %s43, 1
        %s909 = smul.addr %s908, 2
        %s910 = smul.addr %s909, 8
        %s911 = scalar_lea.vmem %s24, %s910
        %p912 = scmp.lt.s32.totalorder %s43, 1
        %s913 = scalar_select %p912, %s43, 1
        %s914 = smul.addr %s913, 8
        %s915 = scalar_lea.vmem %s0, %s914
        %p916 = scmp.lt.s32.totalorder %s43, 1
        %s917 = scalar_select %p916, %s43, 1
        %s918 = smul.addr %s917, 8
        %s919 = scalar_lea.vmem %s23, %s918
        %p920 = scmp.lt.s32.totalorder %s43, 1
        %s921 = scalar_select %p920, %s43, 1
        %s922 = smul.addr %s921, 2
        %s923 = smul.addr %s922, 8
        %s924 = scalar_lea.vmem %s24, %s923
        %v925 = vld [vmem:[%s915] sm:$0xff]
        %v926 = vld [vmem:[%s1] sm:$0xff]
        %v927 = vld [vmem:[%s1 + $0x8] sm:$0xff]
        %v928 = vld [vmem:[%s2] sm:$0xff]
        %v929 = vld [vmem:[%s2 + $0x8] sm:$0xff]
        %v930 = vld [vmem:[%s3] sm:$0x1]
        %v931 = vld [vmem:[#allocation5] sm:$0x1]
        %v932 = vld [vmem:[#allocation7] sm:$0x1]
        %v933 = vld [vmem:[#allocation9] sm:$0xff]
        %v934 = vld [vmem:[#allocation9 + $0x8] sm:$0xff]
        %v935 = vld [vmem:[#allocation10] sm:$0x1]
        %v936 = vld [vmem:[#allocation12] sm:$0xff]
        %v937 = vld [vmem:[#allocation12 + $0x8] sm:$0xff]
        %v938 = vld [vmem:[#allocation13] sm:$0x1]
        %v939 = vld [vmem:[%s10] sm:$0xff]
        %v940 = vld [vmem:[%s11] sm:$0xff]
        %v941 = vlaneseq
        %v942 = vshrl.u32 %v941, 7
        %v943 = vadd.s32 %v942, 8
        %v944 = vadd.s32 %v942, 16
        %v945 = vadd.s32 %v942, 24
        %v946 = vlaneseq
        %v947 = vand.u32 %v946, 127
        %v948 = vmul.u32 %v947, 2
        %vm949 = vcmp.eq.s32.totalorder %v942, %v948
        %vm950 = vcmp.eq.s32.totalorder %v943, %v948
        %vm951 = vcmp.eq.s32.totalorder %v944, %v948
        %vm952 = vcmp.eq.s32.totalorder %v945, %v948
        %v953 = vsel %vm949, 1.0, 0.0
        %v954 = vsel %vm950, 1.0, 0.0
        %v955 = vsel %vm951, 1.0, 0.0
        %v956 = vsel %vm952, 1.0, 0.0
        %v957 = vadd.s32 %v948, 1
        %vm958 = vcmp.eq.s32.totalorder %v942, %v957
        %vm959 = vcmp.eq.s32.totalorder %v943, %v957
        %vm960 = vcmp.eq.s32.totalorder %v944, %v957
        %vm961 = vcmp.eq.s32.totalorder %v945, %v957
        %v962 = vsel %vm958, 1.0, 0.0
        %v963 = vsel %vm959, 1.0, 0.0
        %v964 = vsel %vm960, 1.0, 0.0
        %v965 = vsel %vm961, 1.0, 0.0
        %vm966 = vcmask 261120
        %v968 = vsel %vm966, %v925, 0
        %970 = vmatpush.msra.mxu0 0.0
        %971 = vmatpush.msra.mxu0 0.0
        %972 = vmatpush.msra.mxu0 0.0
        %973 = vmatpush.msra.mxu0 0.0
        %974 = vmatpush.msra.mxu0 0.0
        %975 = vmatpush.msra.mxu0 0.0
        %976 = vmatpush.msra.mxu0 0.0
        %977 = vmatpush.msra.mxu0 0.0
        %978 = vmatpush.msra.mxu0 0.0
        %979 = vmatpush.msra.mxu0 0.0
        %980 = vmatpush.msra.mxu0 0.0
        %981 = vmatpush.msra.mxu0 0.0
        %982 = vmatpush.msra.mxu0 %v956
        %983 = vmatpush.msra.mxu0 %v955
        %984 = vmatpush.msra.mxu0 %v954
        %985 = vmatpush.msra.mxu0 %v953
        %v986 = vand.u32 %v968, 4294901760
        %v987 = vsub.f32 %v968, %v986
        %v988 = vand.u32 %v987, 4294901760
        %v989 = vsub.f32 %v987, %v988
        %v990 = vand.u32 %v989, 4294901760
        %991 = vmatmul.f32.gmra.mxu0 %v990
        %v992 = vpop.f32.mrf.mxu0
        %v993 = vadd.f32 0.0, %v992
        %994 = vdwg.mxu0
        %995 = vmatpush.msra.mxu0 0.0
        %996 = vmatpush.msra.mxu0 0.0
        %997 = vmatpush.msra.mxu0 0.0
        %998 = vmatpush.msra.mxu0 0.0
        %999 = vmatpush.msra.mxu0 0.0
        %1000 = vmatpush.msra.mxu0 0.0
        %1001 = vmatpush.msra.mxu0 0.0
        %1002 = vmatpush.msra.mxu0 0.0
        %1003 = vmatpush.msra.mxu0 0.0
        %1004 = vmatpush.msra.mxu0 0.0
        %1005 = vmatpush.msra.mxu0 0.0
        %1006 = vmatpush.msra.mxu0 0.0
        %v1007 = vsub.f32 %v956, %v956
        %v1008 = vand.u32 %v1007, 4294901760
        %v1009 = vsub.f32 %v1007, %v1008
        %v1010 = vand.u32 %v1009, 4294901760
        %1011 = vmatpush.msra.mxu0 %v1010
        %v1012 = vsub.f32 %v955, %v955
        %v1013 = vand.u32 %v1012, 4294901760
        %v1014 = vsub.f32 %v1012, %v1013
        %v1015 = vand.u32 %v1014, 4294901760
        %1016 = vmatpush.msra.mxu0 %v1015
        %v1017 = vsub.f32 %v954, %v954
        %v1018 = vand.u32 %v1017, 4294901760
        %v1019 = vsub.f32 %v1017, %v1018
        %v1020 = vand.u32 %v1019, 4294901760
        %1021 = vmatpush.msra.mxu0 %v1020
        %v1022 = vsub.f32 %v953, %v953
        %v1023 = vand.u32 %v1022, 4294901760
        %v1024 = vsub.f32 %v1022, %v1023
        %v1025 = vand.u32 %v1024, 4294901760
        %1026 = vmatpush.msra.mxu0 %v1025
        %v1027 = vand.u32 %v968, 4294901760
        %1028 = vmatmul.f32.gmra.mxu0 %v1027
        %v1029 = vpop.f32.mrf.mxu0
        %v1030 = vadd.f32 %v993, %v1029
        %1031 = vdwg.mxu0
        %1032 = vmatpush.msra.mxu0 0.0
        %1033 = vmatpush.msra.mxu0 0.0
        %1034 = vmatpush.msra.mxu0 0.0
        %1035 = vmatpush.msra.mxu0 0.0
        %1036 = vmatpush.msra.mxu0 0.0
        %1037 = vmatpush.msra.mxu0 0.0
        %1038 = vmatpush.msra.mxu0 0.0
        %1039 = vmatpush.msra.mxu0 0.0
        %1040 = vmatpush.msra.mxu0 0.0
        %1041 = vmatpush.msra.mxu0 0.0
        %1042 = vmatpush.msra.mxu0 0.0
        %1043 = vmatpush.msra.mxu0 0.0
        %v1044 = vsub.f32 %v956, %v956
        %1045 = vmatpush.msra.mxu0 %v1044
        %v1046 = vsub.f32 %v955, %v955
        %1047 = vmatpush.msra.mxu0 %v1046
        %v1048 = vsub.f32 %v954, %v954
        %1049 = vmatpush.msra.mxu0 %v1048
        %v1050 = vsub.f32 %v953, %v953
        %1051 = vmatpush.msra.mxu0 %v1050
        %v1052 = vand.u32 %v968, 4294901760
        %v1053 = vsub.f32 %v968, %v1052
        %1054 = vmatmul.f32.gmra.mxu0 %v1053
        %v1055 = vpop.f32.mrf.mxu0
        %v1056 = vadd.f32 %v1030, %v1055
        %1057 = vdwg.mxu0
        %1058 = vmatpush.msra.mxu0 0.0
        %1059 = vmatpush.msra.mxu0 0.0
        %1060 = vmatpush.msra.mxu0 0.0
        %1061 = vmatpush.msra.mxu0 0.0
        %1062 = vmatpush.msra.mxu0 0.0
        %1063 = vmatpush.msra.mxu0 0.0
        %1064 = vmatpush.msra.mxu0 0.0
        %1065 = vmatpush.msra.mxu0 0.0
        %1066 = vmatpush.msra.mxu0 0.0
        %1067 = vmatpush.msra.mxu0 0.0
        %1068 = vmatpush.msra.mxu0 0.0
        %1069 = vmatpush.msra.mxu0 0.0
        %1070 = vmatpush.msra.mxu0 %v956
        %1071 = vmatpush.msra.mxu0 %v955
        %1072 = vmatpush.msra.mxu0 %v954
        %1073 = vmatpush.msra.mxu0 %v953
        %v1074 = vand.u32 %v968, 4294901760
        %v1075 = vsub.f32 %v968, %v1074
        %v1076 = vand.u32 %v1075, 4294901760
        %1077 = vmatmul.f32.gmra.mxu0 %v1076
        %v1078 = vpop.f32.mrf.mxu0
        %v1079 = vadd.f32 %v1056, %v1078
        %1080 = vdwg.mxu0
        %1081 = vmatpush.msra.mxu0 0.0
        %1082 = vmatpush.msra.mxu0 0.0
        %1083 = vmatpush.msra.mxu0 0.0
        %1084 = vmatpush.msra.mxu0 0.0
        %1085 = vmatpush.msra.mxu0 0.0
        %1086 = vmatpush.msra.mxu0 0.0
        %1087 = vmatpush.msra.mxu0 0.0
        %1088 = vmatpush.msra.mxu0 0.0
        %1089 = vmatpush.msra.mxu0 0.0
        %1090 = vmatpush.msra.mxu0 0.0
        %1091 = vmatpush.msra.mxu0 0.0
        %1092 = vmatpush.msra.mxu0 0.0
        %v1093 = vsub.f32 %v956, %v956
        %v1094 = vand.u32 %v1093, 4294901760
        %1095 = vmatpush.msra.mxu0 %v1094
        %v1096 = vsub.f32 %v955, %v955
        %v1097 = vand.u32 %v1096, 4294901760
        %1098 = vmatpush.msra.mxu0 %v1097
        %v1099 = vsub.f32 %v954, %v954
        %v1100 = vand.u32 %v1099, 4294901760
        %1101 = vmatpush.msra.mxu0 %v1100
        %v1102 = vsub.f32 %v953, %v953
        %v1103 = vand.u32 %v1102, 4294901760
        %1104 = vmatpush.msra.mxu0 %v1103
        %v1105 = vand.u32 %v968, 4294901760
        %1106 = vmatmul.f32.gmra.mxu0 %v1105
        %v1107 = vpop.f32.mrf.mxu0
        %v1108 = vadd.f32 %v1079, %v1107
        %1109 = vdwg.mxu0
        %1110 = vmatpush.msra.mxu0 0.0
        %1111 = vmatpush.msra.mxu0 0.0
        %1112 = vmatpush.msra.mxu0 0.0
        %1113 = vmatpush.msra.mxu0 0.0
        %1114 = vmatpush.msra.mxu0 0.0
        %1115 = vmatpush.msra.mxu0 0.0
        %1116 = vmatpush.msra.mxu0 0.0
        %1117 = vmatpush.msra.mxu0 0.0
        %1118 = vmatpush.msra.mxu0 0.0
        %1119 = vmatpush.msra.mxu0 0.0
        %1120 = vmatpush.msra.mxu0 0.0
        %1121 = vmatpush.msra.mxu0 0.0
        %1122 = vmatpush.msra.mxu0 %v956
        %1123 = vmatpush.msra.mxu0 %v955
        %1124 = vmatpush.msra.mxu0 %v954
        %1125 = vmatpush.msra.mxu0 %v953
        %v1126 = vand.u32 %v968, 4294901760
        %1127 = vmatmul.f32.gmra.mxu0 %v1126
        %v1128 = vpop.f32.mrf.mxu0
        %v1129 = vadd.f32 %v1108, %v1128
        %1130 = vdwg.mxu0
        %1131 = vmatpush.msra.mxu0 0.0
        %1132 = vmatpush.msra.mxu0 0.0
        %1133 = vmatpush.msra.mxu0 0.0
        %1134 = vmatpush.msra.mxu0 0.0
        %1135 = vmatpush.msra.mxu0 0.0
        %1136 = vmatpush.msra.mxu0 0.0
        %1137 = vmatpush.msra.mxu0 0.0
        %1138 = vmatpush.msra.mxu0 0.0
        %1139 = vmatpush.msra.mxu0 0.0
        %1140 = vmatpush.msra.mxu0 0.0
        %1141 = vmatpush.msra.mxu0 0.0
        %1142 = vmatpush.msra.mxu0 0.0
        %1143 = vmatpush.msra.mxu0 %v965
        %1144 = vmatpush.msra.mxu0 %v964
        %1145 = vmatpush.msra.mxu0 %v963
        %1146 = vmatpush.msra.mxu0 %v962
        %v1147 = vand.u32 %v968, 4294901760
        %v1148 = vsub.f32 %v968, %v1147
        %v1149 = vand.u32 %v1148, 4294901760
        %v1150 = vsub.f32 %v1148, %v1149
        %v1151 = vand.u32 %v1150, 4294901760
        %1152 = vmatmul.f32.gmra.mxu0 %v1151
        %v1153 = vpop.f32.mrf.mxu0
        %v1154 = vadd.f32 0.0, %v1153
        %1155 = vdwg.mxu0
        %1156 = vmatpush.msra.mxu0 0.0
        %1157 = vmatpush.msra.mxu0 0.0
        %1158 = vmatpush.msra.mxu0 0.0
        %1159 = vmatpush.msra.mxu0 0.0
        %1160 = vmatpush.msra.mxu0 0.0
        %1161 = vmatpush.msra.mxu0 0.0
        %1162 = vmatpush.msra.mxu0 0.0
        %1163 = vmatpush.msra.mxu0 0.0
        %1164 = vmatpush.msra.mxu0 0.0
        %1165 = vmatpush.msra.mxu0 0.0
        %1166 = vmatpush.msra.mxu0 0.0
        %1167 = vmatpush.msra.mxu0 0.0
        %v1168 = vsub.f32 %v965, %v965
        %v1169 = vand.u32 %v1168, 4294901760
        %v1170 = vsub.f32 %v1168, %v1169
        %v1171 = vand.u32 %v1170, 4294901760
        %1172 = vmatpush.msra.mxu0 %v1171
        %v1173 = vsub.f32 %v964, %v964
        %v1174 = vand.u32 %v1173, 4294901760
        %v1175 = vsub.f32 %v1173, %v1174
        %v1176 = vand.u32 %v1175, 4294901760
        %1177 = vmatpush.msra.mxu0 %v1176
        %v1178 = vsub.f32 %v963, %v963
        %v1179 = vand.u32 %v1178, 4294901760
        %v1180 = vsub.f32 %v1178, %v1179
        %v1181 = vand.u32 %v1180, 4294901760
        %1182 = vmatpush.msra.mxu0 %v1181
        %v1183 = vsub.f32 %v962, %v962
        %v1184 = vand.u32 %v1183, 4294901760
        %v1185 = vsub.f32 %v1183, %v1184
        %v1186 = vand.u32 %v1185, 4294901760
        %1187 = vmatpush.msra.mxu0 %v1186
        %v1188 = vand.u32 %v968, 4294901760
        %1189 = vmatmul.f32.gmra.mxu0 %v1188
        %v1190 = vpop.f32.mrf.mxu0
        %v1191 = vadd.f32 %v1154, %v1190
        %1192 = vdwg.mxu0
        %1193 = vmatpush.msra.mxu0 0.0
        %1194 = vmatpush.msra.mxu0 0.0
        %1195 = vmatpush.msra.mxu0 0.0
        %1196 = vmatpush.msra.mxu0 0.0
        %1197 = vmatpush.msra.mxu0 0.0
        %1198 = vmatpush.msra.mxu0 0.0
        %1199 = vmatpush.msra.mxu0 0.0
        %1200 = vmatpush.msra.mxu0 0.0
        %1201 = vmatpush.msra.mxu0 0.0
        %1202 = vmatpush.msra.mxu0 0.0
        %1203 = vmatpush.msra.mxu0 0.0
        %1204 = vmatpush.msra.mxu0 0.0
        %v1205 = vsub.f32 %v965, %v965
        %1206 = vmatpush.msra.mxu0 %v1205
        %v1207 = vsub.f32 %v964, %v964
        %1208 = vmatpush.msra.mxu0 %v1207
        %v1209 = vsub.f32 %v963, %v963
        %1210 = vmatpush.msra.mxu0 %v1209
        %v1211 = vsub.f32 %v962, %v962
        %1212 = vmatpush.msra.mxu0 %v1211
        %v1213 = vand.u32 %v968, 4294901760
        %v1214 = vsub.f32 %v968, %v1213
        %1215 = vmatmul.f32.gmra.mxu0 %v1214
        %v1216 = vpop.f32.mrf.mxu0
        %v1217 = vadd.f32 %v1191, %v1216
        %1218 = vdwg.mxu0
        %1219 = vmatpush.msra.mxu0 0.0
        %1220 = vmatpush.msra.mxu0 0.0
        %1221 = vmatpush.msra.mxu0 0.0
        %1222 = vmatpush.msra.mxu0 0.0
        %1223 = vmatpush.msra.mxu0 0.0
        %1224 = vmatpush.msra.mxu0 0.0
        %1225 = vmatpush.msra.mxu0 0.0
        %1226 = vmatpush.msra.mxu0 0.0
        %1227 = vmatpush.msra.mxu0 0.0
        %1228 = vmatpush.msra.mxu0 0.0
        %1229 = vmatpush.msra.mxu0 0.0
        %1230 = vmatpush.msra.mxu0 0.0
        %1231 = vmatpush.msra.mxu0 %v965
        %1232 = vmatpush.msra.mxu0 %v964
        %1233 = vmatpush.msra.mxu0 %v963
        %1234 = vmatpush.msra.mxu0 %v962
        %v1235 = vand.u32 %v968, 4294901760
        %v1236 = vsub.f32 %v968, %v1235
        %v1237 = vand.u32 %v1236, 4294901760
        %1238 = vmatmul.f32.gmra.mxu0 %v1237
        %v1239 = vpop.f32.mrf.mxu0
        %v1240 = vadd.f32 %v1217, %v1239
        %1241 = vdwg.mxu0
        %1242 = vmatpush.msra.mxu0 0.0
        %1243 = vmatpush.msra.mxu0 0.0
        %1244 = vmatpush.msra.mxu0 0.0
        %1245 = vmatpush.msra.mxu0 0.0
        %1246 = vmatpush.msra.mxu0 0.0
        %1247 = vmatpush.msra.mxu0 0.0
        %1248 = vmatpush.msra.mxu0 0.0
        %1249 = vmatpush.msra.mxu0 0.0
        %1250 = vmatpush.msra.mxu0 0.0
        %1251 = vmatpush.msra.mxu0 0.0
        %1252 = vmatpush.msra.mxu0 0.0
        %1253 = vmatpush.msra.mxu0 0.0
        %v1254 = vsub.f32 %v965, %v965
        %v1255 = vand.u32 %v1254, 4294901760
        %1256 = vmatpush.msra.mxu0 %v1255
        %v1257 = vsub.f32 %v964, %v964
        %v1258 = vand.u32 %v1257, 4294901760
        %1259 = vmatpush.msra.mxu0 %v1258
        %v1260 = vsub.f32 %v963, %v963
        %v1261 = vand.u32 %v1260, 4294901760
        %1262 = vmatpush.msra.mxu0 %v1261
        %v1263 = vsub.f32 %v962, %v962
        %v1264 = vand.u32 %v1263, 4294901760
        %1265 = vmatpush.msra.mxu0 %v1264
        %v1266 = vand.u32 %v968, 4294901760
        %1267 = vmatmul.f32.gmra.mxu0 %v1266
        %v1268 = vpop.f32.mrf.mxu0
        %v1269 = vadd.f32 %v1240, %v1268
        %1270 = vdwg.mxu0
        %1271 = vmatpush.msra.mxu0 0.0
        %1272 = vmatpush.msra.mxu0 0.0
        %1273 = vmatpush.msra.mxu0 0.0
        %1274 = vmatpush.msra.mxu0 0.0
        %1275 = vmatpush.msra.mxu0 0.0
        %1276 = vmatpush.msra.mxu0 0.0
        %1277 = vmatpush.msra.mxu0 0.0
        %1278 = vmatpush.msra.mxu0 0.0
        %1279 = vmatpush.msra.mxu0 0.0
        %1280 = vmatpush.msra.mxu0 0.0
        %1281 = vmatpush.msra.mxu0 0.0
        %1282 = vmatpush.msra.mxu0 0.0
        %1283 = vmatpush.msra.mxu0 %v965
        %1284 = vmatpush.msra.mxu0 %v964
        %1285 = vmatpush.msra.mxu0 %v963
        %1286 = vmatpush.msra.mxu0 %v962
        %v1287 = vand.u32 %v968, 4294901760
        %1288 = vmatmul.f32.gmra.mxu0 %v1287
        %v1289 = vpop.f32.mrf.mxu0
        %v1290 = vadd.f32 %v1269, %v1289
        %1291 = vdwg.mxu0
        %v1292 = vmax.f32 %v1129, %v1290
        %vm1293 = vcmask 130048
        %v1295 = vsel %vm1293, %v1292, 0
        %1297 = vmatpush.msra.mxu0 0.0
        %1298 = vmatpush.msra.mxu0 0.0
        %1299 = vmatpush.msra.mxu0 0.0
        %1300 = vmatpush.msra.mxu0 0.0
        %1301 = vmatpush.msra.mxu0 0.0
        %1302 = vmatpush.msra.mxu0 0.0
        %1303 = vmatpush.msra.mxu0 0.0
        %1304 = vmatpush.msra.mxu0 0.0
        %1305 = vmatpush.msra.mxu0 0.0
        %1306 = vmatpush.msra.mxu0 0.0
        %1307 = vmatpush.msra.mxu0 0.0
        %1308 = vmatpush.msra.mxu0 0.0
        %1309 = vmatpush.msra.mxu0 0.0
        %1310 = vmatpush.msra.mxu0 0.0
        %1311 = vmatpush.msra.mxu0 %v927
        %1312 = vmatpush.msra.mxu0 %v926
        %1313 = vmatmul.f32.gmra.mxu0 %v1295
        %v1314 = vpop.f32.mrf.mxu0
        %v1315 = vadd.f32 0.0, %v1314
        %1316 = vdwg.mxu0
        %1318 = vrot.lane.b32.xlu0 %v1315, 112
        %v1319 = vpop.permute.xlu0 %1318
        %vm1320 = vcmask 64512
        %v1321 = vsel %vm1320, %v1315, 0
        %v1323 = vsel %vm1320, %v1319, 0
        %1325 = vmatpush.xpose.msra.mxu0 0.0
        %1326 = vmatpush.xpose.msra.mxu0 0.0
        %1327 = vmatpush.xpose.msra.mxu0 0.0
        %1328 = vmatpush.xpose.msra.mxu0 0.0
        %1329 = vmatpush.xpose.msra.mxu0 0.0
        %1330 = vmatpush.xpose.msra.mxu0 0.0
        %1331 = vmatpush.xpose.msra.mxu0 0.0
        %1332 = vmatpush.xpose.msra.mxu0 0.0
        %1333 = vmatpush.xpose.msra.mxu0 0.0
        %1334 = vmatpush.xpose.msra.mxu0 0.0
        %1335 = vmatpush.xpose.msra.mxu0 0.0
        %1336 = vmatpush.xpose.msra.mxu0 0.0
        %1337 = vmatpush.xpose.msra.mxu0 0.0
        %1338 = vmatpush.xpose.msra.mxu0 0.0
        %1339 = vmatpush.xpose.msra.mxu0 0.0
        %1340 = vmatpush.xpose.msra.mxu0 %v1323
        %1341 = vmatmul.f32.gmra.mxu0 %v1321
        %v1342 = vpop.f32.mrf.mxu0
        %v1343 = vadd.f32 0.0, %v1342
        %1344 = vdwg.mxu0
        %v1345 = vsel %vm1320, %v1343, -inf
        %1346 = vmax.xlane.f32.xlu0 %v1345
        %v1347 = vpop.xlane.xlu0 %1346
        %v1348 = vsub.f32 %v1343, %v1347
        %v1349 = vmul.f32 %v1348, 1.442695
        %v1350 = vpow.pop %v1349
        %v1351 = vsel %vm1320, %v1350, 0.0
        %1352 = vadd.xlane.f32.xlu0 %v1351
        %v1353 = vpop.xlane.xlu0 %1352
        %v1354 = vrcp.pop %v1353
        %v1355 = vmul.f32 %v1350, %v1354
        %1356 = vrot.lane.b32.xlu0 %v1315, 96
        %v1357 = vpop.permute.xlu0 %1356
        %v1360 = vsel %vm1320, %v1355, 0
        %1362 = vmatpush.msra.mxu0 0.0
        %1363 = vmatpush.msra.mxu0 0.0
        %1364 = vmatpush.msra.mxu0 0.0
        %1365 = vmatpush.msra.mxu0 0.0
        %1366 = vmatpush.msra.mxu0 0.0
        %1367 = vmatpush.msra.mxu0 0.0
        %1368 = vmatpush.msra.mxu0 0.0
        %1369 = vmatpush.msra.mxu0 0.0
        %1370 = vmatpush.msra.mxu0 0.0
        %1371 = vmatpush.msra.mxu0 0.0
        %1372 = vmatpush.msra.mxu0 0.0
        %1373 = vmatpush.msra.mxu0 0.0
        %1374 = vmatpush.msra.mxu0 0.0
        %1375 = vmatpush.msra.mxu0 0.0
        %1376 = vmatpush.msra.mxu0 0.0
        %1377 = vmatpush.msra.mxu0 %v1357
        %1378 = vmatmul.f32.gmra.mxu0 %v1360
        %v1379 = vpop.f32.mrf.mxu0
        %v1380 = vadd.f32 0.0, %v1379
        %1381 = vdwg.mxu0
        %1382 = vst.msk [vmem:[#allocation4] sm:$0xff] %vm1320, %v1380
        %1383 = vrot.lane.b32.xlu0 %v1315, 120
        %v1384 = vpop.permute.xlu0 %1383
        %1385 = vrot.lane.b32.xlu0 %v1315, 104
        %v1386 = vpop.permute.xlu0 %1385
        %v1387 = vsel %vm1320, %v1384, 0
        %v1389 = vsel %vm1320, %v1386, 0
        %1391 = vmatpush.xpose.msra.mxu0 0.0
        %1392 = vmatpush.xpose.msra.mxu0 0.0
        %1393 = vmatpush.xpose.msra.mxu0 0.0
        %1394 = vmatpush.xpose.msra.mxu0 0.0
        %1395 = vmatpush.xpose.msra.mxu0 0.0
        %1396 = vmatpush.xpose.msra.mxu0 0.0
        %1397 = vmatpush.xpose.msra.mxu0 0.0
        %1398 = vmatpush.xpose.msra.mxu0 0.0
        %1399 = vmatpush.xpose.msra.mxu0 0.0
        %1400 = vmatpush.xpose.msra.mxu0 0.0
        %1401 = vmatpush.xpose.msra.mxu0 0.0
        %1402 = vmatpush.xpose.msra.mxu0 0.0
        %1403 = vmatpush.xpose.msra.mxu0 0.0
        %1404 = vmatpush.xpose.msra.mxu0 0.0
        %1405 = vmatpush.xpose.msra.mxu0 0.0
        %1406 = vmatpush.xpose.msra.mxu0 %v1389
        %1407 = vmatmul.f32.gmra.mxu0 %v1387
        %v1408 = vpop.f32.mrf.mxu0
        %v1409 = vadd.f32 0.0, %v1408
        %1410 = vdwg.mxu0
        %v1411 = vsel %vm1320, %v1409, -inf
        %1412 = vmax.xlane.f32.xlu0 %v1411
        %v1413 = vpop.xlane.xlu0 %1412
        %v1414 = vsub.f32 %v1409, %v1413
        %v1415 = vmul.f32 %v1414, 1.442695
        %v1416 = vpow.pop %v1415
        %v1417 = vsel %vm1320, %v1416, 0.0
        %1418 = vadd.xlane.f32.xlu0 %v1417
        %v1419 = vpop.xlane.xlu0 %1418
        %v1420 = vrcp.pop %v1419
        %v1421 = vmul.f32 %v1416, %v1420
        %1422 = vrot.lane.b32.xlu0 %v1315, 88
        %v1423 = vpop.permute.xlu0 %1422
        %v1426 = vsel %vm1320, %v1421, 0
        %1428 = vmatpush.msra.mxu0 0.0
        %1429 = vmatpush.msra.mxu0 0.0
        %1430 = vmatpush.msra.mxu0 0.0
        %1431 = vmatpush.msra.mxu0 0.0
        %1432 = vmatpush.msra.mxu0 0.0
        %1433 = vmatpush.msra.mxu0 0.0
        %1434 = vmatpush.msra.mxu0 0.0
        %1435 = vmatpush.msra.mxu0 0.0
        %1436 = vmatpush.msra.mxu0 0.0
        %1437 = vmatpush.msra.mxu0 0.0
        %1438 = vmatpush.msra.mxu0 0.0
        %1439 = vmatpush.msra.mxu0 0.0
        %1440 = vmatpush.msra.mxu0 0.0
        %1441 = vmatpush.msra.mxu0 0.0
        %1442 = vmatpush.msra.mxu0 0.0
        %1443 = vmatpush.msra.mxu0 %v1423
        %1444 = vmatmul.f32.gmra.mxu0 %v1426
        %v1445 = vpop.f32.mrf.mxu0
        %v1446 = vadd.f32 0.0, %v1445
        %1447 = vdwg.mxu0
        %1449 = vrot.lane.b32.xlu0 %v1446, 8
        %v1450 = vpop.permute.xlu0 %1449
        %vm1452 = vcmask 130112
        %1453 = vst.msk [vmem:[#allocation4] sm:$0xff] %vm1452, %v1450
        %v1454 = vld [vmem:[#allocation4] sm:$0xff]
        %v1456 = vperm.slane %v930, 0
        %v1459 = vsel %vm1293, %v1454, 0
        %1461 = vmatpush.msra.mxu0 0.0
        %1462 = vmatpush.msra.mxu0 0.0
        %1463 = vmatpush.msra.mxu0 0.0
        %1464 = vmatpush.msra.mxu0 0.0
        %1465 = vmatpush.msra.mxu0 0.0
        %1466 = vmatpush.msra.mxu0 0.0
        %1467 = vmatpush.msra.mxu0 0.0
        %1468 = vmatpush.msra.mxu0 0.0
        %1469 = vmatpush.msra.mxu0 0.0
        %1470 = vmatpush.msra.mxu0 0.0
        %1471 = vmatpush.msra.mxu0 0.0
        %1472 = vmatpush.msra.mxu0 0.0
        %1473 = vmatpush.msra.mxu0 0.0
        %1474 = vmatpush.msra.mxu0 0.0
        %1475 = vmatpush.msra.mxu0 %v929
        %1476 = vmatpush.msra.mxu0 %v928
        %1477 = vmatmul.f32.gmra.mxu0 %v1459
        %v1478 = vpop.f32.mrf.mxu0
        %v1479 = vadd.f32 %v1456, %v1478
        %1480 = vdwg.mxu0
        %v1481 = vadd.f32 %v1479, %v1292
        %vm1482 = vcmask 343040
        %1483 = vst.msk [vmem:[#allocation2] sm:$0xff] %vm1482, 0.0
        %1484 = vrot.lane.b32.xlu0 %v925, 5
        %v1485 = vpop.permute.xlu0 %1484
        %vm1487 = vcmask 302120
        %1488 = vst.msk [vmem:[#allocation2] sm:$0xff] %vm1487, %v1485
        %v1489 = vld [vmem:[#allocation2] sm:$0xff]
        %1490 = vst.msk [vmem:[#allocation3] sm:$0xff] %vm966, %v1489
        %v1491 = vld [vmem:[#allocation2] sm:$0xff]
        %1493 = vrot.lane.b32.xlu0 %v1491, 127
        %v1494 = vpop.permute.xlu0 %1493
        %1496 = vst.msk [vmem:[#allocation3 + $0x8] sm:$0xff] %vm966, %v1494
        %v1497 = vld [vmem:[#allocation2] sm:$0xff]
        %1499 = vrot.lane.b32.xlu0 %v1497, 126
        %v1500 = vpop.permute.xlu0 %1499
        %1502 = vst.msk [vmem:[#allocation3 + $0x10] sm:$0xff] %vm966, %v1500
        %v1503 = vld [vmem:[#allocation2] sm:$0xff]
        %1505 = vrot.lane.b32.xlu0 %v1503, 125
        %v1506 = vpop.permute.xlu0 %1505
        %1508 = vst.msk [vmem:[#allocation3 + $0x18] sm:$0xff] %vm966, %v1506
        %v1509 = vld [vmem:[#allocation2] sm:$0xff]
        %1511 = vrot.lane.b32.xlu0 %v1509, 124
        %v1512 = vpop.permute.xlu0 %1511
        %1514 = vst.msk [vmem:[#allocation3 + $0x20] sm:$0xff] %vm966, %v1512
        %v1515 = vld [vmem:[#allocation2] sm:$0xff]
        %1517 = vrot.lane.b32.xlu0 %v1515, 123
        %v1518 = vpop.permute.xlu0 %1517
        %1520 = vst.msk [vmem:[#allocation3 + $0x28] sm:$0xff] %vm966, %v1518
        %v1521 = vld [vmem:[#allocation2] sm:$0xff]
        %1523 = vrot.lane.b32.xlu0 %v1521, 122
        %v1524 = vpop.permute.xlu0 %1523
        %1526 = vst.msk [vmem:[#allocation3 + $0x30] sm:$0xff] %vm966, %v1524
        %v1527 = vld [vmem:[#allocation2] sm:$0xff]
        %1529 = vrot.lane.b32.xlu0 %v1527, 121
        %v1530 = vpop.permute.xlu0 %1529
        %1532 = vst.msk [vmem:[#allocation3 + $0x38] sm:$0xff] %vm966, %v1530
        %v1533 = vld [vmem:[#allocation2] sm:$0xff]
        %1535 = vrot.lane.b32.xlu0 %v1533, 120
        %v1536 = vpop.permute.xlu0 %1535
        %1538 = vst.msk [vmem:[#allocation3 + $0x40] sm:$0xff] %vm966, %v1536
        %v1539 = vld [vmem:[#allocation2] sm:$0xff]
        %1541 = vrot.lane.b32.xlu0 %v1539, 119
        %v1542 = vpop.permute.xlu0 %1541
        %1544 = vst.msk [vmem:[#allocation3 + $0x48] sm:$0xff] %vm966, %v1542
        %v1545 = vld [vmem:[#allocation2] sm:$0xff]
        %1547 = vrot.lane.b32.xlu0 %v1545, 118
        %v1548 = vpop.permute.xlu0 %1547
        %1550 = vst.msk [vmem:[#allocation3 + $0x50] sm:$0xff] %vm966, %v1548
        %v1551 = vld [vmem:[#allocation3] sm:$0xff]
        %v1552 = vld [vmem:[#allocation3 + $0x8] sm:$0xff]
        %v1553 = vld [vmem:[#allocation3 + $0x10] sm:$0xff]
        %v1554 = vld [vmem:[#allocation3 + $0x18] sm:$0xff]
        %v1555 = vld [vmem:[#allocation3 + $0x20] sm:$0xff]
        %v1556 = vld [vmem:[#allocation3 + $0x28] sm:$0xff]
        %v1557 = vld [vmem:[#allocation3 + $0x30] sm:$0xff]
        %v1558 = vld [vmem:[#allocation3 + $0x38] sm:$0xff]
        %v1559 = vld [vmem:[#allocation3 + $0x40] sm:$0xff]
        %v1560 = vld [vmem:[#allocation3 + $0x48] sm:$0xff]
        %v1561 = vld [vmem:[#allocation3 + $0x50] sm:$0xff]
        %1563 = vset.pattern.permute.xlu0 0
        %1564 = vperm.xlu0 %1563, %v940
        %v1565 = vpop.permute.xlu0 %1564
        %vm1567 = vcmask 719872
        %v1569 = vsel %vm1567, %v939, 0
        %1571 = vmatpush.msra.mxu0 0.0
        %1572 = vmatpush.msra.mxu0 0.0
        %1573 = vmatpush.msra.mxu0 0.0
        %1574 = vmatpush.msra.mxu0 0.0
        %1575 = vmatpush.msra.mxu0 0.0
        %1576 = vmatpush.msra.mxu0 %v1561
        %1577 = vmatpush.msra.mxu0 %v1560
        %1578 = vmatpush.msra.mxu0 %v1559
        %1579 = vmatpush.msra.mxu0 %v1558
        %1580 = vmatpush.msra.mxu0 %v1557
        %1581 = vmatpush.msra.mxu0 %v1556
        %1582 = vmatpush.msra.mxu0 %v1555
        %1583 = vmatpush.msra.mxu0 %v1554
        %1584 = vmatpush.msra.mxu0 %v1553
        %1585 = vmatpush.msra.mxu0 %v1552
        %1586 = vmatpush.msra.mxu0 %v1551
        %1587 = vmatmul.f32.gmra.mxu0 %v1569
        %v1588 = vpop.f32.mrf.mxu0
        %v1589 = vadd.f32 %v1565, %v1588
        %1590 = vdwg.mxu0
        %vm1591 = vcmp.gt.f32.partialorder %v1589, 0.0
        %v1592 = vmul.f32 %v1589, 0.16666667
        %v1593 = vadd.f32 %v1592, 0.5
        %v1594 = vmul.f32 %v1589, %v1593
        %v1595 = vadd.f32 %v1594, 1.0
        %v1596 = vmul.f32 %v1589, %v1595
        %v1597 = vand.u32 2147483647, %v1589
        %vm1598 = vcmp.lt.f32.partialorder %v1597, 0.02
        %v1599 = vmul.f32 %v1589, 1.442695
        %v1600 = vpow.pop %v1599
        %v1601 = vsub.f32 %v1600, 1.0
        %v1602 = vsel %vm1598, %v1596, %v1601
        %v1603 = vsel %vm1591, %v1589, %v1602
        %v1605 = vsel %vm966, %v1603, 0
        %1607 = vmatpush.msra.mxu0 0.0
        %1608 = vmatpush.msra.mxu0 0.0
        %1609 = vmatpush.msra.mxu0 0.0
        %1610 = vmatpush.msra.mxu0 0.0
        %1611 = vmatpush.msra.mxu0 0.0
        %1612 = vmatpush.msra.mxu0 0.0
        %1613 = vmatpush.msra.mxu0 0.0
        %1614 = vmatpush.msra.mxu0 0.0
        %1615 = vmatpush.msra.mxu0 0.0
        %1616 = vmatpush.msra.mxu0 0.0
        %1617 = vmatpush.msra.mxu0 0.0
        %1618 = vmatpush.msra.mxu0 0.0
        %1619 = vmatpush.msra.mxu0 %v956
        %1620 = vmatpush.msra.mxu0 %v955
        %1621 = vmatpush.msra.mxu0 %v954
        %1622 = vmatpush.msra.mxu0 %v953
        %v1623 = vand.u32 %v1605, 4294901760
        %v1624 = vsub.f32 %v1605, %v1623
        %v1625 = vand.u32 %v1624, 4294901760
        %v1626 = vsub.f32 %v1624, %v1625
        %v1627 = vand.u32 %v1626, 4294901760
        %1628 = vmatmul.f32.gmra.mxu0 %v1627
        %v1629 = vpop.f32.mrf.mxu0
        %v1630 = vadd.f32 0.0, %v1629
        %1631 = vdwg.mxu0
        %1632 = vmatpush.msra.mxu0 0.0
        %1633 = vmatpush.msra.mxu0 0.0
        %1634 = vmatpush.msra.mxu0 0.0
        %1635 = vmatpush.msra.mxu0 0.0
        %1636 = vmatpush.msra.mxu0 0.0
        %1637 = vmatpush.msra.mxu0 0.0
        %1638 = vmatpush.msra.mxu0 0.0
        %1639 = vmatpush.msra.mxu0 0.0
        %1640 = vmatpush.msra.mxu0 0.0
        %1641 = vmatpush.msra.mxu0 0.0
        %1642 = vmatpush.msra.mxu0 0.0
        %1643 = vmatpush.msra.mxu0 0.0
        %v1644 = vsub.f32 %v956, %v956
        %v1645 = vand.u32 %v1644, 4294901760
        %v1646 = vsub.f32 %v1644, %v1645
        %v1647 = vand.u32 %v1646, 4294901760
        %1648 = vmatpush.msra.mxu0 %v1647
        %v1649 = vsub.f32 %v955, %v955
        %v1650 = vand.u32 %v1649, 4294901760
        %v1651 = vsub.f32 %v1649, %v1650
        %v1652 = vand.u32 %v1651, 4294901760
        %1653 = vmatpush.msra.mxu0 %v1652
        %v1654 = vsub.f32 %v954, %v954
        %v1655 = vand.u32 %v1654, 4294901760
        %v1656 = vsub.f32 %v1654, %v1655
        %v1657 = vand.u32 %v1656, 4294901760
        %1658 = vmatpush.msra.mxu0 %v1657
        %v1659 = vsub.f32 %v953, %v953
        %v1660 = vand.u32 %v1659, 4294901760
        %v1661 = vsub.f32 %v1659, %v1660
        %v1662 = vand.u32 %v1661, 4294901760
        %1663 = vmatpush.msra.mxu0 %v1662
        %v1664 = vand.u32 %v1605, 4294901760
        %1665 = vmatmul.f32.gmra.mxu0 %v1664
        %v1666 = vpop.f32.mrf.mxu0
        %v1667 = vadd.f32 %v1630, %v1666
        %1668 = vdwg.mxu0
        %1669 = vmatpush.msra.mxu0 0.0
        %1670 = vmatpush.msra.mxu0 0.0
        %1671 = vmatpush.msra.mxu0 0.0
        %1672 = vmatpush.msra.mxu0 0.0
        %1673 = vmatpush.msra.mxu0 0.0
        %1674 = vmatpush.msra.mxu0 0.0
        %1675 = vmatpush.msra.mxu0 0.0
        %1676 = vmatpush.msra.mxu0 0.0
        %1677 = vmatpush.msra.mxu0 0.0
        %1678 = vmatpush.msra.mxu0 0.0
        %1679 = vmatpush.msra.mxu0 0.0
        %1680 = vmatpush.msra.mxu0 0.0
        %v1681 = vsub.f32 %v956, %v956
        %1682 = vmatpush.msra.mxu0 %v1681
        %v1683 = vsub.f32 %v955, %v955
        %1684 = vmatpush.msra.mxu0 %v1683
        %v1685 = vsub.f32 %v954, %v954
        %1686 = vmatpush.msra.mxu0 %v1685
        %v1687 = vsub.f32 %v953, %v953
        %1688 = vmatpush.msra.mxu0 %v1687
        %v1689 = vand.u32 %v1605, 4294901760
        %v1690 = vsub.f32 %v1605, %v1689
        %1691 = vmatmul.f32.gmra.mxu0 %v1690
        %v1692 = vpop.f32.mrf.mxu0
        %v1693 = vadd.f32 %v1667, %v1692
        %1694 = vdwg.mxu0
        %1695 = vmatpush.msra.mxu0 0.0
        %1696 = vmatpush.msra.mxu0 0.0
        %1697 = vmatpush.msra.mxu0 0.0
        %1698 = vmatpush.msra.mxu0 0.0
        %1699 = vmatpush.msra.mxu0 0.0
        %1700 = vmatpush.msra.mxu0 0.0
        %1701 = vmatpush.msra.mxu0 0.0
        %1702 = vmatpush.msra.mxu0 0.0
        %1703 = vmatpush.msra.mxu0 0.0
        %1704 = vmatpush.msra.mxu0 0.0
        %1705 = vmatpush.msra.mxu0 0.0
        %1706 = vmatpush.msra.mxu0 0.0
        %1707 = vmatpush.msra.mxu0 %v956
        %1708 = vmatpush.msra.mxu0 %v955
        %1709 = vmatpush.msra.mxu0 %v954
        %1710 = vmatpush.msra.mxu0 %v953
        %v1711 = vand.u32 %v1605, 4294901760
        %v1712 = vsub.f32 %v1605, %v1711
        %v1713 = vand.u32 %v1712, 4294901760
        %1714 = vmatmul.f32.gmra.mxu0 %v1713
        %v1715 = vpop.f32.mrf.mxu0
        %v1716 = vadd.f32 %v1693, %v1715
        %1717 = vdwg.mxu0
        %1718 = vmatpush.msra.mxu0 0.0
        %1719 = vmatpush.msra.mxu0 0.0
        %1720 = vmatpush.msra.mxu0 0.0
        %1721 = vmatpush.msra.mxu0 0.0
        %1722 = vmatpush.msra.mxu0 0.0
        %1723 = vmatpush.msra.mxu0 0.0
        %1724 = vmatpush.msra.mxu0 0.0
        %1725 = vmatpush.msra.mxu0 0.0
        %1726 = vmatpush.msra.mxu0 0.0
        %1727 = vmatpush.msra.mxu0 0.0
        %1728 = vmatpush.msra.mxu0 0.0
        %1729 = vmatpush.msra.mxu0 0.0
        %v1730 = vsub.f32 %v956, %v956
        %v1731 = vand.u32 %v1730, 4294901760
        %1732 = vmatpush.msra.mxu0 %v1731
        %v1733 = vsub.f32 %v955, %v955
        %v1734 = vand.u32 %v1733, 4294901760
        %1735 = vmatpush.msra.mxu0 %v1734
        %v1736 = vsub.f32 %v954, %v954
        %v1737 = vand.u32 %v1736, 4294901760
        %1738 = vmatpush.msra.mxu0 %v1737
        %v1739 = vsub.f32 %v953, %v953
        %v1740 = vand.u32 %v1739, 4294901760
        %1741 = vmatpush.msra.mxu0 %v1740
        %v1742 = vand.u32 %v1605, 4294901760
        %1743 = vmatmul.f32.gmra.mxu0 %v1742
        %v1744 = vpop.f32.mrf.mxu0
        %v1745 = vadd.f32 %v1716, %v1744
        %1746 = vdwg.mxu0
        %1747 = vmatpush.msra.mxu0 0.0
        %1748 = vmatpush.msra.mxu0 0.0
        %1749 = vmatpush.msra.mxu0 0.0
        %1750 = vmatpush.msra.mxu0 0.0
        %1751 = vmatpush.msra.mxu0 0.0
        %1752 = vmatpush.msra.mxu0 0.0
        %1753 = vmatpush.msra.mxu0 0.0
        %1754 = vmatpush.msra.mxu0 0.0
        %1755 = vmatpush.msra.mxu0 0.0
        %1756 = vmatpush.msra.mxu0 0.0
        %1757 = vmatpush.msra.mxu0 0.0
        %1758 = vmatpush.msra.mxu0 0.0
        %1759 = vmatpush.msra.mxu0 %v956
        %1760 = vmatpush.msra.mxu0 %v955
        %1761 = vmatpush.msra.mxu0 %v954
        %1762 = vmatpush.msra.mxu0 %v953
        %v1763 = vand.u32 %v1605, 4294901760
        %1764 = vmatmul.f32.gmra.mxu0 %v1763
        %v1765 = vpop.f32.mrf.mxu0
        %v1766 = vadd.f32 %v1745, %v1765
        %1767 = vdwg.mxu0
        %1768 = vmatpush.msra.mxu0 0.0
        %1769 = vmatpush.msra.mxu0 0.0
        %1770 = vmatpush.msra.mxu0 0.0
        %1771 = vmatpush.msra.mxu0 0.0
        %1772 = vmatpush.msra.mxu0 0.0
        %1773 = vmatpush.msra.mxu0 0.0
        %1774 = vmatpush.msra.mxu0 0.0
        %1775 = vmatpush.msra.mxu0 0.0
        %1776 = vmatpush.msra.mxu0 0.0
        %1777 = vmatpush.msra.mxu0 0.0
        %1778 = vmatpush.msra.mxu0 0.0
        %1779 = vmatpush.msra.mxu0 0.0
        %1780 = vmatpush.msra.mxu0 %v965
        %1781 = vmatpush.msra.mxu0 %v964
        %1782 = vmatpush.msra.mxu0 %v963
        %1783 = vmatpush.msra.mxu0 %v962
        %v1784 = vand.u32 %v1605, 4294901760
        %v1785 = vsub.f32 %v1605, %v1784
        %v1786 = vand.u32 %v1785, 4294901760
        %v1787 = vsub.f32 %v1785, %v1786
        %v1788 = vand.u32 %v1787, 4294901760
        %1789 = vmatmul.f32.gmra.mxu0 %v1788
        %v1790 = vpop.f32.mrf.mxu0
        %v1791 = vadd.f32 0.0, %v1790
        %1792 = vdwg.mxu0
        %1793 = vmatpush.msra.mxu0 0.0
        %1794 = vmatpush.msra.mxu0 0.0
        %1795 = vmatpush.msra.mxu0 0.0
        %1796 = vmatpush.msra.mxu0 0.0
        %1797 = vmatpush.msra.mxu0 0.0
        %1798 = vmatpush.msra.mxu0 0.0
        %1799 = vmatpush.msra.mxu0 0.0
        %1800 = vmatpush.msra.mxu0 0.0
        %1801 = vmatpush.msra.mxu0 0.0
        %1802 = vmatpush.msra.mxu0 0.0
        %1803 = vmatpush.msra.mxu0 0.0
        %1804 = vmatpush.msra.mxu0 0.0
        %v1805 = vsub.f32 %v965, %v965
        %v1806 = vand.u32 %v1805, 4294901760
        %v1807 = vsub.f32 %v1805, %v1806
        %v1808 = vand.u32 %v1807, 4294901760
        %1809 = vmatpush.msra.mxu0 %v1808
        %v1810 = vsub.f32 %v964, %v964
        %v1811 = vand.u32 %v1810, 4294901760
        %v1812 = vsub.f32 %v1810, %v1811
        %v1813 = vand.u32 %v1812, 4294901760
        %1814 = vmatpush.msra.mxu0 %v1813
        %v1815 = vsub.f32 %v963, %v963
        %v1816 = vand.u32 %v1815, 4294901760
        %v1817 = vsub.f32 %v1815, %v1816
        %v1818 = vand.u32 %v1817, 4294901760
        %1819 = vmatpush.msra.mxu0 %v1818
        %v1820 = vsub.f32 %v962, %v962
        %v1821 = vand.u32 %v1820, 4294901760
        %v1822 = vsub.f32 %v1820, %v1821
        %v1823 = vand.u32 %v1822, 4294901760
        %1824 = vmatpush.msra.mxu0 %v1823
        %v1825 = vand.u32 %v1605, 4294901760
        %1826 = vmatmul.f32.gmra.mxu0 %v1825
        %v1827 = vpop.f32.mrf.mxu0
        %v1828 = vadd.f32 %v1791, %v1827
        %1829 = vdwg.mxu0
        %1830 = vmatpush.msra.mxu0 0.0
        %1831 = vmatpush.msra.mxu0 0.0
        %1832 = vmatpush.msra.mxu0 0.0
        %1833 = vmatpush.msra.mxu0 0.0
        %1834 = vmatpush.msra.mxu0 0.0
        %1835 = vmatpush.msra.mxu0 0.0
        %1836 = vmatpush.msra.mxu0 0.0
        %1837 = vmatpush.msra.mxu0 0.0
        %1838 = vmatpush.msra.mxu0 0.0
        %1839 = vmatpush.msra.mxu0 0.0
        %1840 = vmatpush.msra.mxu0 0.0
        %1841 = vmatpush.msra.mxu0 0.0
        %v1842 = vsub.f32 %v965, %v965
        %1843 = vmatpush.msra.mxu0 %v1842
        %v1844 = vsub.f32 %v964, %v964
        %1845 = vmatpush.msra.mxu0 %v1844
        %v1846 = vsub.f32 %v963, %v963
        %1847 = vmatpush.msra.mxu0 %v1846
        %v1848 = vsub.f32 %v962, %v962
        %1849 = vmatpush.msra.mxu0 %v1848
        %v1850 = vand.u32 %v1605, 4294901760
        %v1851 = vsub.f32 %v1605, %v1850
        %1852 = vmatmul.f32.gmra.mxu0 %v1851
        %v1853 = vpop.f32.mrf.mxu0
        %v1854 = vadd.f32 %v1828, %v1853
        %1855 = vdwg.mxu0
        %1856 = vmatpush.msra.mxu0 0.0
        %1857 = vmatpush.msra.mxu0 0.0
        %1858 = vmatpush.msra.mxu0 0.0
        %1859 = vmatpush.msra.mxu0 0.0
        %1860 = vmatpush.msra.mxu0 0.0
        %1861 = vmatpush.msra.mxu0 0.0
        %1862 = vmatpush.msra.mxu0 0.0
        %1863 = vmatpush.msra.mxu0 0.0
        %1864 = vmatpush.msra.mxu0 0.0
        %1865 = vmatpush.msra.mxu0 0.0
        %1866 = vmatpush.msra.mxu0 0.0
        %1867 = vmatpush.msra.mxu0 0.0
        %1868 = vmatpush.msra.mxu0 %v965
        %1869 = vmatpush.msra.mxu0 %v964
        %1870 = vmatpush.msra.mxu0 %v963
        %1871 = vmatpush.msra.mxu0 %v962
        %v1872 = vand.u32 %v1605, 4294901760
        %v1873 = vsub.f32 %v1605, %v1872
        %v1874 = vand.u32 %v1873, 4294901760
        %1875 = vmatmul.f32.gmra.mxu0 %v1874
        %v1876 = vpop.f32.mrf.mxu0
        %v1877 = vadd.f32 %v1854, %v1876
        %1878 = vdwg.mxu0
        %1879 = vmatpush.msra.mxu0 0.0
        %1880 = vmatpush.msra.mxu0 0.0
        %1881 = vmatpush.msra.mxu0 0.0
        %1882 = vmatpush.msra.mxu0 0.0
        %1883 = vmatpush.msra.mxu0 0.0
        %1884 = vmatpush.msra.mxu0 0.0
        %1885 = vmatpush.msra.mxu0 0.0
        %1886 = vmatpush.msra.mxu0 0.0
        %1887 = vmatpush.msra.mxu0 0.0
        %1888 = vmatpush.msra.mxu0 0.0
        %1889 = vmatpush.msra.mxu0 0.0
        %1890 = vmatpush.msra.mxu0 0.0
        %v1891 = vsub.f32 %v965, %v965
        %v1892 = vand.u32 %v1891, 4294901760
        %1893 = vmatpush.msra.mxu0 %v1892
        %v1894 = vsub.f32 %v964, %v964
        %v1895 = vand.u32 %v1894, 4294901760
        %1896 = vmatpush.msra.mxu0 %v1895
        %v1897 = vsub.f32 %v963, %v963
        %v1898 = vand.u32 %v1897, 4294901760
        %1899 = vmatpush.msra.mxu0 %v1898
        %v1900 = vsub.f32 %v962, %v962
        %v1901 = vand.u32 %v1900, 4294901760
        %1902 = vmatpush.msra.mxu0 %v1901
        %v1903 = vand.u32 %v1605, 4294901760
        %1904 = vmatmul.f32.gmra.mxu0 %v1903
        %v1905 = vpop.f32.mrf.mxu0
        %v1906 = vadd.f32 %v1877, %v1905
        %1907 = vdwg.mxu0
        %1908 = vmatpush.msra.mxu0 0.0
        %1909 = vmatpush.msra.mxu0 0.0
        %1910 = vmatpush.msra.mxu0 0.0
        %1911 = vmatpush.msra.mxu0 0.0
        %1912 = vmatpush.msra.mxu0 0.0
        %1913 = vmatpush.msra.mxu0 0.0
        %1914 = vmatpush.msra.mxu0 0.0
        %1915 = vmatpush.msra.mxu0 0.0
        %1916 = vmatpush.msra.mxu0 0.0
        %1917 = vmatpush.msra.mxu0 0.0
        %1918 = vmatpush.msra.mxu0 0.0
        %1919 = vmatpush.msra.mxu0 0.0
        %1920 = vmatpush.msra.mxu0 %v965
        %1921 = vmatpush.msra.mxu0 %v964
        %1922 = vmatpush.msra.mxu0 %v963
        %1923 = vmatpush.msra.mxu0 %v962
        %v1924 = vand.u32 %v1605, 4294901760
        %1925 = vmatmul.f32.gmra.mxu0 %v1924
        %v1926 = vpop.f32.mrf.mxu0
        %v1927 = vadd.f32 %v1906, %v1926
        %1928 = vdwg.mxu0
        %v1929 = vmax.f32 %v1766, %v1927
        %v1930 = vmul.f32 %v1929, %v1929
        %v1931 = vsel %vm1293, %v1930, 0.0
        %1932 = vadd.xlane.f32.xlu0 %v1931
        %v1933 = vpop.xlane.xlu0 %1932
        %v1934 = vrcp.pop 16.0
        %v1935 = vmul.f32 16.0, %v1934
        %v1936 = vsub.f32 1.0, %v1935
        %v1937 = vmul.f32 %v1934, %v1936
        %v1938 = vadd.f32 %v1934, %v1937
        %vm1939 = vweird.f32 %v1934
        %v1940 = vsel %vm1939, %v1934, %v1938
        %v1941 = vmul.f32 %v1933, %v1940
        %v1942 = vlog2.pop %v1941
        %v1943 = vmul.f32 %v1942, 0.6931472
        %vm1944 = vcmask 7168
        %1945 = vst.msk [vmem:[%s924] sm:$0xff] %vm1944, %v1943
        %v1946 = vsel %vm1293, %v1481, 0.0
        %1947 = vadd.xlane.f32.xlu0 %v1946
        %v1948 = vpop.xlane.xlu0 %1947
        %v1949 = vmul.f32 %v1948, %v1940
        %v1950 = vsub.f32 %v1481, %v1949
        %v1951 = vmul.f32 %v1950, %v1950
        %v1952 = vsel %vm1293, %v1951, 0.0
        %1953 = vadd.xlane.f32.xlu0 %v1952
        %v1954 = vpop.xlane.xlu0 %1953
        %v1955 = vmul.f32 %v1954, %v1940
        %v1956 = vadd.f32 %v1955, 1e-05
        %v1957 = vrsqrt.pop %v1956
        %v1958 = vmul.f32 %v1957, %v1956
        %v1959 = vmul.f32 %v1958, %v1957
        %v1960 = vmul.f32 0.5, %v1959
        %v1961 = vsub.f32 1.5, %v1960
        %v1962 = vmul.f32 %v1957, %v1961
        %vm1963 = vweird.f32 %v1956
        %vm1964 = vweird.f32 %v1957
        %vm1965 = vmor %vm1963, %vm1964
        %v1966 = vsel %vm1965, %v1957, %v1962
        %v1967 = vmul.f32 %v1950, %v1966
        %v1969 = vperm.slane %v931, 0
        %v1971 = vmul.f32 %v1967, %v1969
        %v1973 = vperm.slane %v932, 0
        %v1975 = vadd.f32 %v1971, %v1973
        %v1977 = vperm.slane %v935, 0
        %v1980 = vsel %vm1293, %v1975, 0
        %1982 = vmatpush.msra.mxu0 0.0
        %1983 = vmatpush.msra.mxu0 0.0
        %1984 = vmatpush.msra.mxu0 0.0
        %1985 = vmatpush.msra.mxu0 0.0
        %1986 = vmatpush.msra.mxu0 0.0
        %1987 = vmatpush.msra.mxu0 0.0
        %1988 = vmatpush.msra.mxu0 0.0
        %1989 = vmatpush.msra.mxu0 0.0
        %1990 = vmatpush.msra.mxu0 0.0
        %1991 = vmatpush.msra.mxu0 0.0
        %1992 = vmatpush.msra.mxu0 0.0
        %1993 = vmatpush.msra.mxu0 0.0
        %1994 = vmatpush.msra.mxu0 0.0
        %1995 = vmatpush.msra.mxu0 0.0
        %1996 = vmatpush.msra.mxu0 %v934
        %1997 = vmatpush.msra.mxu0 %v933
        %1998 = vmatmul.f32.gmra.mxu0 %v1980
        %v1999 = vpop.f32.mrf.mxu0
        %v2000 = vadd.f32 %v1977, %v1999
        %2001 = vdwg.mxu0
        %v2002 = vmul.f32 %v2000, 0.5
        %v2003 = vmul.f32 %v2000, 0.70710677
        %vm2004 = vcmp.ge.f32.partialorder %v2003, 0.0
        %v2005 = vsel %vm2004, 1.0, -1.0
        %v2006 = vand.u32 2147483647, %v2003
        %v2007 = vmul.f32 %v2006, 0.3275911
        %v2008 = vadd.f32 %v2007, 1.0
        %v2009 = vrcp.pop %v2008
        %v2010 = vmul.f32 %v2009, 1.0614054
        %v2011 = vadd.f32 %v2010, -1.4531521
        %v2012 = vmul.f32 %v2011, %v2009
        %v2013 = vadd.f32 %v2012, 1.4214138
        %v2014 = vmul.f32 %v2013, %v2009
        %v2015 = vadd.f32 %v2014, -0.28449672
        %v2016 = vmul.f32 %v2015, %v2009
        %v2017 = vadd.f32 %v2016, 0.2548296
        %v2018 = vmul.f32 %v2017, %v2009
        %v2019 = vsub.f32 0.0, %v2006
        %v2020 = vmul.f32 %v2019, %v2006
        %v2021 = vmul.f32 %v2020, 1.442695
        %v2022 = vpow.pop %v2021
        %v2023 = vmul.f32 %v2018, %v2022
        %v2024 = vsub.f32 1.0, %v2023
        %v2025 = vmul.f32 %v2005, %v2024
        %v2026 = vadd.f32 %v2025, 1.0
        %v2027 = vmul.f32 %v2002, %v2026
        %v2029 = vperm.slane %v938, 0
        %v2032 = vsel %vm1293, %v2027, 0
        %2034 = vmatpush.msra.mxu0 0.0
        %2035 = vmatpush.msra.mxu0 0.0
        %2036 = vmatpush.msra.mxu0 0.0
        %2037 = vmatpush.msra.mxu0 0.0
        %2038 = vmatpush.msra.mxu0 0.0
        %2039 = vmatpush.msra.mxu0 0.0
        %2040 = vmatpush.msra.mxu0 0.0
        %2041 = vmatpush.msra.mxu0 0.0
        %2042 = vmatpush.msra.mxu0 0.0
        %2043 = vmatpush.msra.mxu0 0.0
        %2044 = vmatpush.msra.mxu0 0.0
        %2045 = vmatpush.msra.mxu0 0.0
        %2046 = vmatpush.msra.mxu0 0.0
        %2047 = vmatpush.msra.mxu0 0.0
        %2048 = vmatpush.msra.mxu0 %v937
        %2049 = vmatpush.msra.mxu0 %v936
        %2050 = vmatmul.f32.gmra.mxu0 %v2032
        %v2051 = vpop.f32.mrf.mxu0
        %v2052 = vadd.f32 %v2029, %v2051
        %2053 = vdwg.mxu0
        %v2054 = vadd.f32 %v2052, %v1929
        %v2055 = vld [vmem:[#allocation15] sm:$0xff]
        %v2056 = vld [vmem:[%s13] sm:$0xff]
        %v2057 = vld [vmem:[%s13 + $0x8] sm:$0xff]
        %v2058 = vld [vmem:[#allocation16] sm:$0x1]
        %v2059 = vld [vmem:[#allocation18] sm:$0x1]
        %v2060 = vld [vmem:[#allocation19] sm:$0x1]
        %v2061 = vld [vmem:[#allocation21] sm:$0xff]
        %v2062 = vld [vmem:[#allocation22] sm:$0x1]
        %v2063 = vld [vmem:[%s19] sm:$0xff]
        %v2064 = vld [vmem:[%s19 + $0x8] sm:$0xff]
        %v2065 = vld [vmem:[%s20] sm:$0x1]
        %v2066 = vld [vmem:[%s21] sm:$0xff]
        %v2067 = vld [vmem:[%s22] sm:$0xff]
        %v2069 = vsel %vm1293, %v2054, 0
        %2071 = vmatpush.msra.mxu0 0.0
        %2072 = vmatpush.msra.mxu0 0.0
        %2073 = vmatpush.msra.mxu0 0.0
        %2074 = vmatpush.msra.mxu0 0.0
        %2075 = vmatpush.msra.mxu0 0.0
        %2076 = vmatpush.msra.mxu0 0.0
        %2077 = vmatpush.msra.mxu0 0.0
        %2078 = vmatpush.msra.mxu0 0.0
        %2079 = vmatpush.msra.mxu0 0.0
        %2080 = vmatpush.msra.mxu0 0.0
        %2081 = vmatpush.msra.mxu0 0.0
        %2082 = vmatpush.msra.mxu0 0.0
        %2083 = vmatpush.msra.mxu0 0.0
        %2084 = vmatpush.msra.mxu0 0.0
        %2085 = vmatpush.msra.mxu0 %v954
        %2086 = vmatpush.msra.mxu0 %v953
        %v2087 = vand.u32 %v2069, 4294901760
        %v2088 = vsub.f32 %v2069, %v2087
        %v2089 = vand.u32 %v2088, 4294901760
        %v2090 = vsub.f32 %v2088, %v2089
        %v2091 = vand.u32 %v2090, 4294901760
        %2092 = vmatmul.f32.gmra.mxu0 %v2091
        %v2093 = vpop.f32.mrf.mxu0
        %v2094 = vadd.f32 0.0, %v2093
        %2095 = vdwg.mxu0
        %2096 = vmatpush.msra.mxu0 0.0
        %2097 = vmatpush.msra.mxu0 0.0
        %2098 = vmatpush.msra.mxu0 0.0
        %2099 = vmatpush.msra.mxu0 0.0
        %2100 = vmatpush.msra.mxu0 0.0
        %2101 = vmatpush.msra.mxu0 0.0
        %2102 = vmatpush.msra.mxu0 0.0
        %2103 = vmatpush.msra.mxu0 0.0
        %2104 = vmatpush.msra.mxu0 0.0
        %2105 = vmatpush.msra.mxu0 0.0
        %2106 = vmatpush.msra.mxu0 0.0
        %2107 = vmatpush.msra.mxu0 0.0
        %2108 = vmatpush.msra.mxu0 0.0
        %2109 = vmatpush.msra.mxu0 0.0
        %v2110 = vsub.f32 %v954, %v954
        %v2111 = vand.u32 %v2110, 4294901760
        %v2112 = vsub.f32 %v2110, %v2111
        %v2113 = vand.u32 %v2112, 4294901760
        %2114 = vmatpush.msra.mxu0 %v2113
        %v2115 = vsub.f32 %v953, %v953
        %v2116 = vand.u32 %v2115, 4294901760
        %v2117 = vsub.f32 %v2115, %v2116
        %v2118 = vand.u32 %v2117, 4294901760
        %2119 = vmatpush.msra.mxu0 %v2118
        %v2120 = vand.u32 %v2069, 4294901760
        %2121 = vmatmul.f32.gmra.mxu0 %v2120
        %v2122 = vpop.f32.mrf.mxu0
        %v2123 = vadd.f32 %v2094, %v2122
        %2124 = vdwg.mxu0
        %2125 = vmatpush.msra.mxu0 0.0
        %2126 = vmatpush.msra.mxu0 0.0
        %2127 = vmatpush.msra.mxu0 0.0
        %2128 = vmatpush.msra.mxu0 0.0
        %2129 = vmatpush.msra.mxu0 0.0
        %2130 = vmatpush.msra.mxu0 0.0
        %2131 = vmatpush.msra.mxu0 0.0
        %2132 = vmatpush.msra.mxu0 0.0
        %2133 = vmatpush.msra.mxu0 0.0
        %2134 = vmatpush.msra.mxu0 0.0
        %2135 = vmatpush.msra.mxu0 0.0
        %2136 = vmatpush.msra.mxu0 0.0
        %2137 = vmatpush.msra.mxu0 0.0
        %2138 = vmatpush.msra.mxu0 0.0
        %v2139 = vsub.f32 %v954, %v954
        %2140 = vmatpush.msra.mxu0 %v2139
        %v2141 = vsub.f32 %v953, %v953
        %2142 = vmatpush.msra.mxu0 %v2141
        %v2143 = vand.u32 %v2069, 4294901760
        %v2144 = vsub.f32 %v2069, %v2143
        %2145 = vmatmul.f32.gmra.mxu0 %v2144
        %v2146 = vpop.f32.mrf.mxu0
        %v2147 = vadd.f32 %v2123, %v2146
        %2148 = vdwg.mxu0
        %2149 = vmatpush.msra.mxu0 0.0
        %2150 = vmatpush.msra.mxu0 0.0
        %2151 = vmatpush.msra.mxu0 0.0
        %2152 = vmatpush.msra.mxu0 0.0
        %2153 = vmatpush.msra.mxu0 0.0
        %2154 = vmatpush.msra.mxu0 0.0
        %2155 = vmatpush.msra.mxu0 0.0
        %2156 = vmatpush.msra.mxu0 0.0
        %2157 = vmatpush.msra.mxu0 0.0
        %2158 = vmatpush.msra.mxu0 0.0
        %2159 = vmatpush.msra.mxu0 0.0
        %2160 = vmatpush.msra.mxu0 0.0
        %2161 = vmatpush.msra.mxu0 0.0
        %2162 = vmatpush.msra.mxu0 0.0
        %2163 = vmatpush.msra.mxu0 %v954
        %2164 = vmatpush.msra.mxu0 %v953
        %v2165 = vand.u32 %v2069, 4294901760
        %v2166 = vsub.f32 %v2069, %v2165
        %v2167 = vand.u32 %v2166, 4294901760
        %2168 = vmatmul.f32.gmra.mxu0 %v2167
        %v2169 = vpop.f32.mrf.mxu0
        %v2170 = vadd.f32 %v2147, %v2169
        %2171 = vdwg.mxu0
        %2172 = vmatpush.msra.mxu0 0.0
        %2173 = vmatpush.msra.mxu0 0.0
        %2174 = vmatpush.msra.mxu0 0.0
        %2175 = vmatpush.msra.mxu0 0.0
        %2176 = vmatpush.msra.mxu0 0.0
        %2177 = vmatpush.msra.mxu0 0.0
        %2178 = vmatpush.msra.mxu0 0.0
        %2179 = vmatpush.msra.mxu0 0.0
        %2180 = vmatpush.msra.mxu0 0.0
        %2181 = vmatpush.msra.mxu0 0.0
        %2182 = vmatpush.msra.mxu0 0.0
        %2183 = vmatpush.msra.mxu0 0.0
        %2184 = vmatpush.msra.mxu0 0.0
        %2185 = vmatpush.msra.mxu0 0.0
        %v2186 = vsub.f32 %v954, %v954
        %v2187 = vand.u32 %v2186, 4294901760
        %2188 = vmatpush.msra.mxu0 %v2187
        %v2189 = vsub.f32 %v953, %v953
        %v2190 = vand.u32 %v2189, 4294901760
        %2191 = vmatpush.msra.mxu0 %v2190
        %v2192 = vand.u32 %v2069, 4294901760
        %2193 = vmatmul.f32.gmra.mxu0 %v2192
        %v2194 = vpop.f32.mrf.mxu0
        %v2195 = vadd.f32 %v2170, %v2194
        %2196 = vdwg.mxu0
        %2197 = vmatpush.msra.mxu0 0.0
        %2198 = vmatpush.msra.mxu0 0.0
        %2199 = vmatpush.msra.mxu0 0.0
        %2200 = vmatpush.msra.mxu0 0.0
        %2201 = vmatpush.msra.mxu0 0.0
        %2202 = vmatpush.msra.mxu0 0.0
        %2203 = vmatpush.msra.mxu0 0.0
        %2204 = vmatpush.msra.mxu0 0.0
        %2205 = vmatpush.msra.mxu0 0.0
        %2206 = vmatpush.msra.mxu0 0.0
        %2207 = vmatpush.msra.mxu0 0.0
        %2208 = vmatpush.msra.mxu0 0.0
        %2209 = vmatpush.msra.mxu0 0.0
        %2210 = vmatpush.msra.mxu0 0.0
        %2211 = vmatpush.msra.mxu0 %v954
        %2212 = vmatpush.msra.mxu0 %v953
        %v2213 = vand.u32 %v2069, 4294901760
        %2214 = vmatmul.f32.gmra.mxu0 %v2213
        %v2215 = vpop.f32.mrf.mxu0
        %v2216 = vadd.f32 %v2195, %v2215
        %2217 = vdwg.mxu0
        %2218 = vmatpush.msra.mxu0 0.0
        %2219 = vmatpush.msra.mxu0 0.0
        %2220 = vmatpush.msra.mxu0 0.0
        %2221 = vmatpush.msra.mxu0 0.0
        %2222 = vmatpush.msra.mxu0 0.0
        %2223 = vmatpush.msra.mxu0 0.0
        %2224 = vmatpush.msra.mxu0 0.0
        %2225 = vmatpush.msra.mxu0 0.0
        %2226 = vmatpush.msra.mxu0 0.0
        %2227 = vmatpush.msra.mxu0 0.0
        %2228 = vmatpush.msra.mxu0 0.0
        %2229 = vmatpush.msra.mxu0 0.0
        %2230 = vmatpush.msra.mxu0 0.0
        %2231 = vmatpush.msra.mxu0 0.0
        %2232 = vmatpush.msra.mxu0 %v963
        %2233 = vmatpush.msra.mxu0 %v962
        %v2234 = vand.u32 %v2069, 4294901760
        %v2235 = vsub.f32 %v2069, %v2234
        %v2236 = vand.u32 %v2235, 4294901760
        %v2237 = vsub.f32 %v2235, %v2236
        %v2238 = vand.u32 %v2237, 4294901760
        %2239 = vmatmul.f32.gmra.mxu0 %v2238
        %v2240 = vpop.f32.mrf.mxu0
        %v2241 = vadd.f32 0.0, %v2240
        %2242 = vdwg.mxu0
        %2243 = vmatpush.msra.mxu0 0.0
        %2244 = vmatpush.msra.mxu0 0.0
        %2245 = vmatpush.msra.mxu0 0.0
        %2246 = vmatpush.msra.mxu0 0.0
        %2247 = vmatpush.msra.mxu0 0.0
        %2248 = vmatpush.msra.mxu0 0.0
        %2249 = vmatpush.msra.mxu0 0.0
        %2250 = vmatpush.msra.mxu0 0.0
        %2251 = vmatpush.msra.mxu0 0.0
        %2252 = vmatpush.msra.mxu0 0.0
        %2253 = vmatpush.msra.mxu0 0.0
        %2254 = vmatpush.msra.mxu0 0.0
        %2255 = vmatpush.msra.mxu0 0.0
        %2256 = vmatpush.msra.mxu0 0.0
        %v2257 = vsub.f32 %v963, %v963
        %v2258 = vand.u32 %v2257, 4294901760
        %v2259 = vsub.f32 %v2257, %v2258
        %v2260 = vand.u32 %v2259, 4294901760
        %2261 = vmatpush.msra.mxu0 %v2260
        %v2262 = vsub.f32 %v962, %v962
        %v2263 = vand.u32 %v2262, 4294901760
        %v2264 = vsub.f32 %v2262, %v2263
        %v2265 = vand.u32 %v2264, 4294901760
        %2266 = vmatpush.msra.mxu0 %v2265
        %v2267 = vand.u32 %v2069, 4294901760
        %2268 = vmatmul.f32.gmra.mxu0 %v2267
        %v2269 = vpop.f32.mrf.mxu0
        %v2270 = vadd.f32 %v2241, %v2269
        %2271 = vdwg.mxu0
        %2272 = vmatpush.msra.mxu0 0.0
        %2273 = vmatpush.msra.mxu0 0.0
        %2274 = vmatpush.msra.mxu0 0.0
        %2275 = vmatpush.msra.mxu0 0.0
        %2276 = vmatpush.msra.mxu0 0.0
        %2277 = vmatpush.msra.mxu0 0.0
        %2278 = vmatpush.msra.mxu0 0.0
        %2279 = vmatpush.msra.mxu0 0.0
        %2280 = vmatpush.msra.mxu0 0.0
        %2281 = vmatpush.msra.mxu0 0.0
        %2282 = vmatpush.msra.mxu0 0.0
        %2283 = vmatpush.msra.mxu0 0.0
        %2284 = vmatpush.msra.mxu0 0.0
        %2285 = vmatpush.msra.mxu0 0.0
        %v2286 = vsub.f32 %v963, %v963
        %2287 = vmatpush.msra.mxu0 %v2286
        %v2288 = vsub.f32 %v962, %v962
        %2289 = vmatpush.msra.mxu0 %v2288
        %v2290 = vand.u32 %v2069, 4294901760
        %v2291 = vsub.f32 %v2069, %v2290
        %2292 = vmatmul.f32.gmra.mxu0 %v2291
        %v2293 = vpop.f32.mrf.mxu0
        %v2294 = vadd.f32 %v2270, %v2293
        %2295 = vdwg.mxu0
        %2296 = vmatpush.msra.mxu0 0.0
        %2297 = vmatpush.msra.mxu0 0.0
        %2298 = vmatpush.msra.mxu0 0.0
        %2299 = vmatpush.msra.mxu0 0.0
        %2300 = vmatpush.msra.mxu0 0.0
        %2301 = vmatpush.msra.mxu0 0.0
        %2302 = vmatpush.msra.mxu0 0.0
        %2303 = vmatpush.msra.mxu0 0.0
        %2304 = vmatpush.msra.mxu0 0.0
        %2305 = vmatpush.msra.mxu0 0.0
        %2306 = vmatpush.msra.mxu0 0.0
        %2307 = vmatpush.msra.mxu0 0.0
        %2308 = vmatpush.msra.mxu0 0.0
        %2309 = vmatpush.msra.mxu0 0.0
        %2310 = vmatpush.msra.mxu0 %v963
        %2311 = vmatpush.msra.mxu0 %v962
        %v2312 = vand.u32 %v2069, 4294901760
        %v2313 = vsub.f32 %v2069, %v2312
        %v2314 = vand.u32 %v2313, 4294901760
        %2315 = vmatmul.f32.gmra.mxu0 %v2314
        %v2316 = vpop.f32.mrf.mxu0
        %v2317 = vadd.f32 %v2294, %v2316
        %2318 = vdwg.mxu0
        %2319 = vmatpush.msra.mxu0 0.0
        %2320 = vmatpush.msra.mxu0 0.0
        %2321 = vmatpush.msra.mxu0 0.0
        %2322 = vmatpush.msra.mxu0 0.0
        %2323 = vmatpush.msra.mxu0 0.0
        %2324 = vmatpush.msra.mxu0 0.0
        %2325 = vmatpush.msra.mxu0 0.0
        %2326 = vmatpush.msra.mxu0 0.0
        %2327 = vmatpush.msra.mxu0 0.0
        %2328 = vmatpush.msra.mxu0 0.0
        %2329 = vmatpush.msra.mxu0 0.0
        %2330 = vmatpush.msra.mxu0 0.0
        %2331 = vmatpush.msra.mxu0 0.0
        %2332 = vmatpush.msra.mxu0 0.0
        %v2333 = vsub.f32 %v963, %v963
        %v2334 = vand.u32 %v2333, 4294901760
        %2335 = vmatpush.msra.mxu0 %v2334
        %v2336 = vsub.f32 %v962, %v962
        %v2337 = vand.u32 %v2336, 4294901760
        %2338 = vmatpush.msra.mxu0 %v2337
        %v2339 = vand.u32 %v2069, 4294901760
        %2340 = vmatmul.f32.gmra.mxu0 %v2339
        %v2341 = vpop.f32.mrf.mxu0
        %v2342 = vadd.f32 %v2317, %v2341
        %2343 = vdwg.mxu0
        %2344 = vmatpush.msra.mxu0 0.0
        %2345 = vmatpush.msra.mxu0 0.0
        %2346 = vmatpush.msra.mxu0 0.0
        %2347 = vmatpush.msra.mxu0 0.0
        %2348 = vmatpush.msra.mxu0 0.0
        %2349 = vmatpush.msra.mxu0 0.0
        %2350 = vmatpush.msra.mxu0 0.0
        %2351 = vmatpush.msra.mxu0 0.0
        %2352 = vmatpush.msra.mxu0 0.0
        %2353 = vmatpush.msra.mxu0 0.0
        %2354 = vmatpush.msra.mxu0 0.0
        %2355 = vmatpush.msra.mxu0 0.0
        %2356 = vmatpush.msra.mxu0 0.0
        %2357 = vmatpush.msra.mxu0 0.0
        %2358 = vmatpush.msra.mxu0 %v963
        %2359 = vmatpush.msra.mxu0 %v962
        %v2360 = vand.u32 %v2069, 4294901760
        %2361 = vmatmul.f32.gmra.mxu0 %v2360
        %v2362 = vpop.f32.mrf.mxu0
        %v2363 = vadd.f32 %v2342, %v2362
        %2364 = vdwg.mxu0
        %v2365 = vmax.f32 %v2216, %v2363
        %v2367 = vsel %vm1320, %v2365, 0
        %2369 = vmatpush.msra.mxu0 0.0
        %2370 = vmatpush.msra.mxu0 0.0
        %2371 = vmatpush.msra.mxu0 0.0
        %2372 = vmatpush.msra.mxu0 0.0
        %2373 = vmatpush.msra.mxu0 0.0
        %2374 = vmatpush.msra.mxu0 0.0
        %2375 = vmatpush.msra.mxu0 0.0
        %2376 = vmatpush.msra.mxu0 0.0
        %2377 = vmatpush.msra.mxu0 0.0
        %2378 = vmatpush.msra.mxu0 0.0
        %2379 = vmatpush.msra.mxu0 0.0
        %2380 = vmatpush.msra.mxu0 0.0
        %2381 = vmatpush.msra.mxu0 0.0
        %2382 = vmatpush.msra.mxu0 0.0
        %2383 = vmatpush.msra.mxu0 0.0
        %2384 = vmatpush.msra.mxu0 %v2055
        %2385 = vmatmul.f32.gmra.mxu0 %v2367
        %v2386 = vpop.f32.mrf.mxu0
        %v2387 = vadd.f32 0.0, %v2386
        %2388 = vdwg.mxu0
        %2390 = vrot.lane.b32.xlu0 %v2387, 112
        %v2391 = vpop.permute.xlu0 %2390
        %v2392 = vsel %vm1320, %v2387, 0
        %v2394 = vsel %vm1320, %v2391, 0
        %2396 = vmatpush.xpose.msra.mxu0 0.0
        %2397 = vmatpush.xpose.msra.mxu0 0.0
        %2398 = vmatpush.xpose.msra.mxu0 0.0
        %2399 = vmatpush.xpose.msra.mxu0 0.0
        %2400 = vmatpush.xpose.msra.mxu0 0.0
        %2401 = vmatpush.xpose.msra.mxu0 0.0
        %2402 = vmatpush.xpose.msra.mxu0 0.0
        %2403 = vmatpush.xpose.msra.mxu0 0.0
        %2404 = vmatpush.xpose.msra.mxu0 0.0
        %2405 = vmatpush.xpose.msra.mxu0 0.0
        %2406 = vmatpush.xpose.msra.mxu0 0.0
        %2407 = vmatpush.xpose.msra.mxu0 0.0
        %2408 = vmatpush.xpose.msra.mxu0 0.0
        %2409 = vmatpush.xpose.msra.mxu0 0.0
        %2410 = vmatpush.xpose.msra.mxu0 0.0
        %2411 = vmatpush.xpose.msra.mxu0 %v2394
        %2412 = vmatmul.f32.gmra.mxu0 %v2392
        %v2413 = vpop.f32.mrf.mxu0
        %v2414 = vadd.f32 0.0, %v2413
        %2415 = vdwg.mxu0
        %v2416 = vsel %vm1320, %v2414, -inf
        %2417 = vmax.xlane.f32.xlu0 %v2416
        %v2418 = vpop.xlane.xlu0 %2417
        %v2419 = vsub.f32 %v2414, %v2418
        %v2420 = vmul.f32 %v2419, 1.442695
        %v2421 = vpow.pop %v2420
        %v2422 = vsel %vm1320, %v2421, 0.0
        %2423 = vadd.xlane.f32.xlu0 %v2422
        %v2424 = vpop.xlane.xlu0 %2423
        %v2425 = vrcp.pop %v2424
        %v2426 = vmul.f32 %v2421, %v2425
        %2427 = vrot.lane.b32.xlu0 %v2387, 96
        %v2428 = vpop.permute.xlu0 %2427
        %v2431 = vsel %vm1320, %v2426, 0
        %2433 = vmatpush.msra.mxu0 0.0
        %2434 = vmatpush.msra.mxu0 0.0
        %2435 = vmatpush.msra.mxu0 0.0
        %2436 = vmatpush.msra.mxu0 0.0
        %2437 = vmatpush.msra.mxu0 0.0
        %2438 = vmatpush.msra.mxu0 0.0
        %2439 = vmatpush.msra.mxu0 0.0
        %2440 = vmatpush.msra.mxu0 0.0
        %2441 = vmatpush.msra.mxu0 0.0
        %2442 = vmatpush.msra.mxu0 0.0
        %2443 = vmatpush.msra.mxu0 0.0
        %2444 = vmatpush.msra.mxu0 0.0
        %2445 = vmatpush.msra.mxu0 0.0
        %2446 = vmatpush.msra.mxu0 0.0
        %2447 = vmatpush.msra.mxu0 0.0
        %2448 = vmatpush.msra.mxu0 %v2428
        %2449 = vmatmul.f32.gmra.mxu0 %v2431
        %v2450 = vpop.f32.mrf.mxu0
        %v2451 = vadd.f32 0.0, %v2450
        %2452 = vdwg.mxu0
        %2453 = vst.msk [vmem:[#allocation4] sm:$0xff] %vm1320, %v2451
        %2454 = vrot.lane.b32.xlu0 %v2387, 120
        %v2455 = vpop.permute.xlu0 %2454
        %2456 = vrot.lane.b32.xlu0 %v2387, 104
        %v2457 = vpop.permute.xlu0 %2456
        %v2458 = vsel %vm1320, %v2455, 0
        %v2460 = vsel %vm1320, %v2457, 0
        %2462 = vmatpush.xpose.msra.mxu0 0.0
        %2463 = vmatpush.xpose.msra.mxu0 0.0
        %2464 = vmatpush.xpose.msra.mxu0 0.0
        %2465 = vmatpush.xpose.msra.mxu0 0.0
        %2466 = vmatpush.xpose.msra.mxu0 0.0
        %2467 = vmatpush.xpose.msra.mxu0 0.0
        %2468 = vmatpush.xpose.msra.mxu0 0.0
        %2469 = vmatpush.xpose.msra.mxu0 0.0
        %2470 = vmatpush.xpose.msra.mxu0 0.0
        %2471 = vmatpush.xpose.msra.mxu0 0.0
        %2472 = vmatpush.xpose.msra.mxu0 0.0
        %2473 = vmatpush.xpose.msra.mxu0 0.0
        %2474 = vmatpush.xpose.msra.mxu0 0.0
        %2475 = vmatpush.xpose.msra.mxu0 0.0
        %2476 = vmatpush.xpose.msra.mxu0 0.0
        %2477 = vmatpush.xpose.msra.mxu0 %v2460
        %2478 = vmatmul.f32.gmra.mxu0 %v2458
        %v2479 = vpop.f32.mrf.mxu0
        %v2480 = vadd.f32 0.0, %v2479
        %2481 = vdwg.mxu0
        %v2482 = vsel %vm1320, %v2480, -inf
        %2483 = vmax.xlane.f32.xlu0 %v2482
        %v2484 = vpop.xlane.xlu0 %2483
        %v2485 = vsub.f32 %v2480, %v2484
        %v2486 = vmul.f32 %v2485, 1.442695
        %v2487 = vpow.pop %v2486
        %v2488 = vsel %vm1320, %v2487, 0.0
        %2489 = vadd.xlane.f32.xlu0 %v2488
        %v2490 = vpop.xlane.xlu0 %2489
        %v2491 = vrcp.pop %v2490
        %v2492 = vmul.f32 %v2487, %v2491
        %2493 = vrot.lane.b32.xlu0 %v2387, 88
        %v2494 = vpop.permute.xlu0 %2493
        %v2497 = vsel %vm1320, %v2492, 0
        %2499 = vmatpush.msra.mxu0 0.0
        %2500 = vmatpush.msra.mxu0 0.0
        %2501 = vmatpush.msra.mxu0 0.0
        %2502 = vmatpush.msra.mxu0 0.0
        %2503 = vmatpush.msra.mxu0 0.0
        %2504 = vmatpush.msra.mxu0 0.0
        %2505 = vmatpush.msra.mxu0 0.0
        %2506 = vmatpush.msra.mxu0 0.0
        %2507 = vmatpush.msra.mxu0 0.0
        %2508 = vmatpush.msra.mxu0 0.0
        %2509 = vmatpush.msra.mxu0 0.0
        %2510 = vmatpush.msra.mxu0 0.0
        %2511 = vmatpush.msra.mxu0 0.0
        %2512 = vmatpush.msra.mxu0 0.0
        %2513 = vmatpush.msra.mxu0 0.0
        %2514 = vmatpush.msra.mxu0 %v2494
        %2515 = vmatmul.f32.gmra.mxu0 %v2497
        %v2516 = vpop.f32.mrf.mxu0
        %v2517 = vadd.f32 0.0, %v2516
        %2518 = vdwg.mxu0
        %2520 = vrot.lane.b32.xlu0 %v2517, 8
        %v2521 = vpop.permute.xlu0 %2520
        %2523 = vst.msk [vmem:[#allocation4] sm:$0xff] %vm1452, %v2521
        %v2524 = vld [vmem:[#allocation4] sm:$0xff]
        %v2526 = vperm.slane %v2058, 0
        %v2529 = vsel %vm1293, %v2524, 0
        %2531 = vmatpush.msra.mxu0 0.0
        %2532 = vmatpush.msra.mxu0 0.0
        %2533 = vmatpush.msra.mxu0 0.0
        %2534 = vmatpush.msra.mxu0 0.0
        %2535 = vmatpush.msra.mxu0 0.0
        %2536 = vmatpush.msra.mxu0 0.0
        %2537 = vmatpush.msra.mxu0 0.0
        %2538 = vmatpush.msra.mxu0 0.0
        %2539 = vmatpush.msra.mxu0 0.0
        %2540 = vmatpush.msra.mxu0 0.0
        %2541 = vmatpush.msra.mxu0 0.0
        %2542 = vmatpush.msra.mxu0 0.0
        %2543 = vmatpush.msra.mxu0 0.0
        %2544 = vmatpush.msra.mxu0 0.0
        %2545 = vmatpush.msra.mxu0 %v2057
        %2546 = vmatpush.msra.mxu0 %v2056
        %2547 = vmatmul.f32.gmra.mxu0 %v2529
        %v2548 = vpop.f32.mrf.mxu0
        %v2549 = vadd.f32 %v2526, %v2548
        %2550 = vdwg.mxu0
        %v2551 = vadd.f32 %v2549, %v2365
        %2552 = vst.msk [vmem:[#allocation2] sm:$0xff] %vm1482, 0.0
        %2553 = vrot.lane.b32.xlu0 %v2054, 5
        %v2554 = vpop.permute.xlu0 %2553
        %vm2556 = vcmask 171048
        %2557 = vst.msk [vmem:[#allocation2] sm:$0xff] %vm2556, %v2554
        %v2558 = vld [vmem:[#allocation2] sm:$0xff]
        %2559 = vst.msk [vmem:[#allocation3] sm:$0xff] %vm1293, %v2558
        %v2560 = vld [vmem:[#allocation2] sm:$0xff]
        %2562 = vrot.lane.b32.xlu0 %v2560, 127
        %v2563 = vpop.permute.xlu0 %2562
        %2565 = vst.msk [vmem:[#allocation3 + $0x8] sm:$0xff] %vm1293, %v2563
        %v2566 = vld [vmem:[#allocation2] sm:$0xff]
        %2568 = vrot.lane.b32.xlu0 %v2566, 126
        %v2569 = vpop.permute.xlu0 %2568
        %2571 = vst.msk [vmem:[#allocation3 + $0x10] sm:$0xff] %vm1293, %v2569
        %v2572 = vld [vmem:[#allocation2] sm:$0xff]
        %2574 = vrot.lane.b32.xlu0 %v2572, 125
        %v2575 = vpop.permute.xlu0 %2574
        %2577 = vst.msk [vmem:[#allocation3 + $0x18] sm:$0xff] %vm1293, %v2575
        %v2578 = vld [vmem:[#allocation2] sm:$0xff]
        %2580 = vrot.lane.b32.xlu0 %v2578, 124
        %v2581 = vpop.permute.xlu0 %2580
        %2583 = vst.msk [vmem:[#allocation3 + $0x20] sm:$0xff] %vm1293, %v2581
        %v2584 = vld [vmem:[#allocation2] sm:$0xff]
        %2586 = vrot.lane.b32.xlu0 %v2584, 123
        %v2587 = vpop.permute.xlu0 %2586
        %2589 = vst.msk [vmem:[#allocation3 + $0x28] sm:$0xff] %vm1293, %v2587
        %v2590 = vld [vmem:[#allocation2] sm:$0xff]
        %2592 = vrot.lane.b32.xlu0 %v2590, 122
        %v2593 = vpop.permute.xlu0 %2592
        %2595 = vst.msk [vmem:[#allocation3 + $0x30] sm:$0xff] %vm1293, %v2593
        %v2596 = vld [vmem:[#allocation2] sm:$0xff]
        %2598 = vrot.lane.b32.xlu0 %v2596, 121
        %v2599 = vpop.permute.xlu0 %2598
        %2601 = vst.msk [vmem:[#allocation3 + $0x38] sm:$0xff] %vm1293, %v2599
        %v2602 = vld [vmem:[#allocation2] sm:$0xff]
        %2604 = vrot.lane.b32.xlu0 %v2602, 120
        %v2605 = vpop.permute.xlu0 %2604
        %2607 = vst.msk [vmem:[#allocation3 + $0x40] sm:$0xff] %vm1293, %v2605
        %v2608 = vld [vmem:[#allocation2] sm:$0xff]
        %2610 = vrot.lane.b32.xlu0 %v2608, 119
        %v2611 = vpop.permute.xlu0 %2610
        %2613 = vst.msk [vmem:[#allocation3 + $0x48] sm:$0xff] %vm1293, %v2611
        %v2614 = vld [vmem:[#allocation2] sm:$0xff]
        %2616 = vrot.lane.b32.xlu0 %v2614, 118
        %v2617 = vpop.permute.xlu0 %2616
        %2619 = vst.msk [vmem:[#allocation3 + $0x50] sm:$0xff] %vm1293, %v2617
        %v2620 = vld [vmem:[#allocation3] sm:$0xff]
        %v2621 = vld [vmem:[#allocation3 + $0x8] sm:$0xff]
        %v2622 = vld [vmem:[#allocation3 + $0x10] sm:$0xff]
        %v2623 = vld [vmem:[#allocation3 + $0x18] sm:$0xff]
        %v2624 = vld [vmem:[#allocation3 + $0x20] sm:$0xff]
        %v2625 = vld [vmem:[#allocation3 + $0x28] sm:$0xff]
        %v2626 = vld [vmem:[#allocation3 + $0x30] sm:$0xff]
        %v2627 = vld [vmem:[#allocation3 + $0x38] sm:$0xff]
        %v2628 = vld [vmem:[#allocation3 + $0x40] sm:$0xff]
        %v2629 = vld [vmem:[#allocation3 + $0x48] sm:$0xff]
        %v2630 = vld [vmem:[#allocation3 + $0x50] sm:$0xff]
        %2632 = vset.pattern.permute.xlu0 0
        %2633 = vperm.xlu0 %2632, %v2067
        %v2634 = vpop.permute.xlu0 %2633
        %v2637 = vsel %vm1567, %v2066, 0
        %2639 = vmatpush.msra.mxu0 0.0
        %2640 = vmatpush.msra.mxu0 0.0
        %2641 = vmatpush.msra.mxu0 0.0
        %2642 = vmatpush.msra.mxu0 0.0
        %2643 = vmatpush.msra.mxu0 0.0
        %2644 = vmatpush.msra.mxu0 %v2630
        %2645 = vmatpush.msra.mxu0 %v2629
        %2646 = vmatpush.msra.mxu0 %v2628
        %2647 = vmatpush.msra.mxu0 %v2627
        %2648 = vmatpush.msra.mxu0 %v2626
        %2649 = vmatpush.msra.mxu0 %v2625
        %2650 = vmatpush.msra.mxu0 %v2624
        %2651 = vmatpush.msra.mxu0 %v2623
        %2652 = vmatpush.msra.mxu0 %v2622
        %2653 = vmatpush.msra.mxu0 %v2621
        %2654 = vmatpush.msra.mxu0 %v2620
        %2655 = vmatmul.f32.gmra.mxu0 %v2637
        %v2656 = vpop.f32.mrf.mxu0
        %v2657 = vadd.f32 %v2634, %v2656
        %2658 = vdwg.mxu0
        %vm2659 = vcmp.gt.f32.partialorder %v2657, 0.0
        %v2660 = vmul.f32 %v2657, 0.16666667
        %v2661 = vadd.f32 %v2660, 0.5
        %v2662 = vmul.f32 %v2657, %v2661
        %v2663 = vadd.f32 %v2662, 1.0
        %v2664 = vmul.f32 %v2657, %v2663
        %v2665 = vand.u32 2147483647, %v2657
        %vm2666 = vcmp.lt.f32.partialorder %v2665, 0.02
        %v2667 = vmul.f32 %v2657, 1.442695
        %v2668 = vpow.pop %v2667
        %v2669 = vsub.f32 %v2668, 1.0
        %v2670 = vsel %vm2666, %v2664, %v2669
        %v2671 = vsel %vm2659, %v2657, %v2670
        %v2673 = vsel %vm1293, %v2671, 0
        %2675 = vmatpush.msra.mxu0 0.0
        %2676 = vmatpush.msra.mxu0 0.0
        %2677 = vmatpush.msra.mxu0 0.0
        %2678 = vmatpush.msra.mxu0 0.0
        %2679 = vmatpush.msra.mxu0 0.0
        %2680 = vmatpush.msra.mxu0 0.0
        %2681 = vmatpush.msra.mxu0 0.0
        %2682 = vmatpush.msra.mxu0 0.0
        %2683 = vmatpush.msra.mxu0 0.0
        %2684 = vmatpush.msra.mxu0 0.0
        %2685 = vmatpush.msra.mxu0 0.0
        %2686 = vmatpush.msra.mxu0 0.0
        %2687 = vmatpush.msra.mxu0 0.0
        %2688 = vmatpush.msra.mxu0 0.0
        %2689 = vmatpush.msra.mxu0 %v954
        %2690 = vmatpush.msra.mxu0 %v953
        %v2691 = vand.u32 %v2673, 4294901760
        %v2692 = vsub.f32 %v2673, %v2691
        %v2693 = vand.u32 %v2692, 4294901760
        %v2694 = vsub.f32 %v2692, %v2693
        %v2695 = vand.u32 %v2694, 4294901760
        %2696 = vmatmul.f32.gmra.mxu0 %v2695
        %v2697 = vpop.f32.mrf.mxu0
        %v2698 = vadd.f32 0.0, %v2697
        %2699 = vdwg.mxu0
        %2700 = vmatpush.msra.mxu0 0.0
        %2701 = vmatpush.msra.mxu0 0.0
        %2702 = vmatpush.msra.mxu0 0.0
        %2703 = vmatpush.msra.mxu0 0.0
        %2704 = vmatpush.msra.mxu0 0.0
        %2705 = vmatpush.msra.mxu0 0.0
        %2706 = vmatpush.msra.mxu0 0.0
        %2707 = vmatpush.msra.mxu0 0.0
        %2708 = vmatpush.msra.mxu0 0.0
        %2709 = vmatpush.msra.mxu0 0.0
        %2710 = vmatpush.msra.mxu0 0.0
        %2711 = vmatpush.msra.mxu0 0.0
        %2712 = vmatpush.msra.mxu0 0.0
        %2713 = vmatpush.msra.mxu0 0.0
        %v2714 = vsub.f32 %v954, %v954
        %v2715 = vand.u32 %v2714, 4294901760
        %v2716 = vsub.f32 %v2714, %v2715
        %v2717 = vand.u32 %v2716, 4294901760
        %2718 = vmatpush.msra.mxu0 %v2717
        %v2719 = vsub.f32 %v953, %v953
        %v2720 = vand.u32 %v2719, 4294901760
        %v2721 = vsub.f32 %v2719, %v2720
        %v2722 = vand.u32 %v2721, 4294901760
        %2723 = vmatpush.msra.mxu0 %v2722
        %v2724 = vand.u32 %v2673, 4294901760
        %2725 = vmatmul.f32.gmra.mxu0 %v2724
        %v2726 = vpop.f32.mrf.mxu0
        %v2727 = vadd.f32 %v2698, %v2726
        %2728 = vdwg.mxu0
        %2729 = vmatpush.msra.mxu0 0.0
        %2730 = vmatpush.msra.mxu0 0.0
        %2731 = vmatpush.msra.mxu0 0.0
        %2732 = vmatpush.msra.mxu0 0.0
        %2733 = vmatpush.msra.mxu0 0.0
        %2734 = vmatpush.msra.mxu0 0.0
        %2735 = vmatpush.msra.mxu0 0.0
        %2736 = vmatpush.msra.mxu0 0.0
        %2737 = vmatpush.msra.mxu0 0.0
        %2738 = vmatpush.msra.mxu0 0.0
        %2739 = vmatpush.msra.mxu0 0.0
        %2740 = vmatpush.msra.mxu0 0.0
        %2741 = vmatpush.msra.mxu0 0.0
        %2742 = vmatpush.msra.mxu0 0.0
        %v2743 = vsub.f32 %v954, %v954
        %2744 = vmatpush.msra.mxu0 %v2743
        %v2745 = vsub.f32 %v953, %v953
        %2746 = vmatpush.msra.mxu0 %v2745
        %v2747 = vand.u32 %v2673, 4294901760
        %v2748 = vsub.f32 %v2673, %v2747
        %2749 = vmatmul.f32.gmra.mxu0 %v2748
        %v2750 = vpop.f32.mrf.mxu0
        %v2751 = vadd.f32 %v2727, %v2750
        %2752 = vdwg.mxu0
        %2753 = vmatpush.msra.mxu0 0.0
        %2754 = vmatpush.msra.mxu0 0.0
        %2755 = vmatpush.msra.mxu0 0.0
        %2756 = vmatpush.msra.mxu0 0.0
        %2757 = vmatpush.msra.mxu0 0.0
        %2758 = vmatpush.msra.mxu0 0.0
        %2759 = vmatpush.msra.mxu0 0.0
        %2760 = vmatpush.msra.mxu0 0.0
        %2761 = vmatpush.msra.mxu0 0.0
        %2762 = vmatpush.msra.mxu0 0.0
        %2763 = vmatpush.msra.mxu0 0.0
        %2764 = vmatpush.msra.mxu0 0.0
        %2765 = vmatpush.msra.mxu0 0.0
        %2766 = vmatpush.msra.mxu0 0.0
        %2767 = vmatpush.msra.mxu0 %v954
        %2768 = vmatpush.msra.mxu0 %v953
        %v2769 = vand.u32 %v2673, 4294901760
        %v2770 = vsub.f32 %v2673, %v2769
        %v2771 = vand.u32 %v2770, 4294901760
        %2772 = vmatmul.f32.gmra.mxu0 %v2771
        %v2773 = vpop.f32.mrf.mxu0
        %v2774 = vadd.f32 %v2751, %v2773
        %2775 = vdwg.mxu0
        %2776 = vmatpush.msra.mxu0 0.0
        %2777 = vmatpush.msra.mxu0 0.0
        %2778 = vmatpush.msra.mxu0 0.0
        %2779 = vmatpush.msra.mxu0 0.0
        %2780 = vmatpush.msra.mxu0 0.0
        %2781 = vmatpush.msra.mxu0 0.0
        %2782 = vmatpush.msra.mxu0 0.0
        %2783 = vmatpush.msra.mxu0 0.0
        %2784 = vmatpush.msra.mxu0 0.0
        %2785 = vmatpush.msra.mxu0 0.0
        %2786 = vmatpush.msra.mxu0 0.0
        %2787 = vmatpush.msra.mxu0 0.0
        %2788 = vmatpush.msra.mxu0 0.0
        %2789 = vmatpush.msra.mxu0 0.0
        %v2790 = vsub.f32 %v954, %v954
        %v2791 = vand.u32 %v2790, 4294901760
        %2792 = vmatpush.msra.mxu0 %v2791
        %v2793 = vsub.f32 %v953, %v953
        %v2794 = vand.u32 %v2793, 4294901760
        %2795 = vmatpush.msra.mxu0 %v2794
        %v2796 = vand.u32 %v2673, 4294901760
        %2797 = vmatmul.f32.gmra.mxu0 %v2796
        %v2798 = vpop.f32.mrf.mxu0
        %v2799 = vadd.f32 %v2774, %v2798
        %2800 = vdwg.mxu0
        %2801 = vmatpush.msra.mxu0 0.0
        %2802 = vmatpush.msra.mxu0 0.0
        %2803 = vmatpush.msra.mxu0 0.0
        %2804 = vmatpush.msra.mxu0 0.0
        %2805 = vmatpush.msra.mxu0 0.0
        %2806 = vmatpush.msra.mxu0 0.0
        %2807 = vmatpush.msra.mxu0 0.0
        %2808 = vmatpush.msra.mxu0 0.0
        %2809 = vmatpush.msra.mxu0 0.0
        %2810 = vmatpush.msra.mxu0 0.0
        %2811 = vmatpush.msra.mxu0 0.0
        %2812 = vmatpush.msra.mxu0 0.0
        %2813 = vmatpush.msra.mxu0 0.0
        %2814 = vmatpush.msra.mxu0 0.0
        %2815 = vmatpush.msra.mxu0 %v954
        %2816 = vmatpush.msra.mxu0 %v953
        %v2817 = vand.u32 %v2673, 4294901760
        %2818 = vmatmul.f32.gmra.mxu0 %v2817
        %v2819 = vpop.f32.mrf.mxu0
        %v2820 = vadd.f32 %v2799, %v2819
        %2821 = vdwg.mxu0
        %2822 = vmatpush.msra.mxu0 0.0
        %2823 = vmatpush.msra.mxu0 0.0
        %2824 = vmatpush.msra.mxu0 0.0
        %2825 = vmatpush.msra.mxu0 0.0
        %2826 = vmatpush.msra.mxu0 0.0
        %2827 = vmatpush.msra.mxu0 0.0
        %2828 = vmatpush.msra.mxu0 0.0
        %2829 = vmatpush.msra.mxu0 0.0
        %2830 = vmatpush.msra.mxu0 0.0
        %2831 = vmatpush.msra.mxu0 0.0
        %2832 = vmatpush.msra.mxu0 0.0
        %2833 = vmatpush.msra.mxu0 0.0
        %2834 = vmatpush.msra.mxu0 0.0
        %2835 = vmatpush.msra.mxu0 0.0
        %2836 = vmatpush.msra.mxu0 %v963
        %2837 = vmatpush.msra.mxu0 %v962
        %v2838 = vand.u32 %v2673, 4294901760
        %v2839 = vsub.f32 %v2673, %v2838
        %v2840 = vand.u32 %v2839, 4294901760
        %v2841 = vsub.f32 %v2839, %v2840
        %v2842 = vand.u32 %v2841, 4294901760
        %2843 = vmatmul.f32.gmra.mxu0 %v2842
        %v2844 = vpop.f32.mrf.mxu0
        %v2845 = vadd.f32 0.0, %v2844
        %2846 = vdwg.mxu0
        %2847 = vmatpush.msra.mxu0 0.0
        %2848 = vmatpush.msra.mxu0 0.0
        %2849 = vmatpush.msra.mxu0 0.0
        %2850 = vmatpush.msra.mxu0 0.0
        %2851 = vmatpush.msra.mxu0 0.0
        %2852 = vmatpush.msra.mxu0 0.0
        %2853 = vmatpush.msra.mxu0 0.0
        %2854 = vmatpush.msra.mxu0 0.0
        %2855 = vmatpush.msra.mxu0 0.0
        %2856 = vmatpush.msra.mxu0 0.0
        %2857 = vmatpush.msra.mxu0 0.0
        %2858 = vmatpush.msra.mxu0 0.0
        %2859 = vmatpush.msra.mxu0 0.0
        %2860 = vmatpush.msra.mxu0 0.0
        %v2861 = vsub.f32 %v963, %v963
        %v2862 = vand.u32 %v2861, 4294901760
        %v2863 = vsub.f32 %v2861, %v2862
        %v2864 = vand.u32 %v2863, 4294901760
        %2865 = vmatpush.msra.mxu0 %v2864
        %v2866 = vsub.f32 %v962, %v962
        %v2867 = vand.u32 %v2866, 4294901760
        %v2868 = vsub.f32 %v2866, %v2867
        %v2869 = vand.u32 %v2868, 4294901760
        %2870 = vmatpush.msra.mxu0 %v2869
        %v2871 = vand.u32 %v2673, 4294901760
        %2872 = vmatmul.f32.gmra.mxu0 %v2871
        %v2873 = vpop.f32.mrf.mxu0
        %v2874 = vadd.f32 %v2845, %v2873
        %2875 = vdwg.mxu0
        %2876 = vmatpush.msra.mxu0 0.0
        %2877 = vmatpush.msra.mxu0 0.0
        %2878 = vmatpush.msra.mxu0 0.0
        %2879 = vmatpush.msra.mxu0 0.0
        %2880 = vmatpush.msra.mxu0 0.0
        %2881 = vmatpush.msra.mxu0 0.0
        %2882 = vmatpush.msra.mxu0 0.0
        %2883 = vmatpush.msra.mxu0 0.0
        %2884 = vmatpush.msra.mxu0 0.0
        %2885 = vmatpush.msra.mxu0 0.0
        %2886 = vmatpush.msra.mxu0 0.0
        %2887 = vmatpush.msra.mxu0 0.0
        %2888 = vmatpush.msra.mxu0 0.0
        %2889 = vmatpush.msra.mxu0 0.0
        %v2890 = vsub.f32 %v963, %v963
        %2891 = vmatpush.msra.mxu0 %v2890
        %v2892 = vsub.f32 %v962, %v962
        %2893 = vmatpush.msra.mxu0 %v2892
        %v2894 = vand.u32 %v2673, 4294901760
        %v2895 = vsub.f32 %v2673, %v2894
        %2896 = vmatmul.f32.gmra.mxu0 %v2895
        %v2897 = vpop.f32.mrf.mxu0
        %v2898 = vadd.f32 %v2874, %v2897
        %2899 = vdwg.mxu0
        %2900 = vmatpush.msra.mxu0 0.0
        %2901 = vmatpush.msra.mxu0 0.0
        %2902 = vmatpush.msra.mxu0 0.0
        %2903 = vmatpush.msra.mxu0 0.0
        %2904 = vmatpush.msra.mxu0 0.0
        %2905 = vmatpush.msra.mxu0 0.0
        %2906 = vmatpush.msra.mxu0 0.0
        %2907 = vmatpush.msra.mxu0 0.0
        %2908 = vmatpush.msra.mxu0 0.0
        %2909 = vmatpush.msra.mxu0 0.0
        %2910 = vmatpush.msra.mxu0 0.0
        %2911 = vmatpush.msra.mxu0 0.0
        %2912 = vmatpush.msra.mxu0 0.0
        %2913 = vmatpush.msra.mxu0 0.0
        %2914 = vmatpush.msra.mxu0 %v963
        %2915 = vmatpush.msra.mxu0 %v962
        %v2916 = vand.u32 %v2673, 4294901760
        %v2917 = vsub.f32 %v2673, %v2916
        %v2918 = vand.u32 %v2917, 4294901760
        %2919 = vmatmul.f32.gmra.mxu0 %v2918
        %v2920 = vpop.f32.mrf.mxu0
        %v2921 = vadd.f32 %v2898, %v2920
        %2922 = vdwg.mxu0
        %2923 = vmatpush.msra.mxu0 0.0
        %2924 = vmatpush.msra.mxu0 0.0
        %2925 = vmatpush.msra.mxu0 0.0
        %2926 = vmatpush.msra.mxu0 0.0
        %2927 = vmatpush.msra.mxu0 0.0
        %2928 = vmatpush.msra.mxu0 0.0
        %2929 = vmatpush.msra.mxu0 0.0
        %2930 = vmatpush.msra.mxu0 0.0
        %2931 = vmatpush.msra.mxu0 0.0
        %2932 = vmatpush.msra.mxu0 0.0
        %2933 = vmatpush.msra.mxu0 0.0
        %2934 = vmatpush.msra.mxu0 0.0
        %2935 = vmatpush.msra.mxu0 0.0
        %2936 = vmatpush.msra.mxu0 0.0
        %v2937 = vsub.f32 %v963, %v963
        %v2938 = vand.u32 %v2937, 4294901760
        %2939 = vmatpush.msra.mxu0 %v2938
        %v2940 = vsub.f32 %v962, %v962
        %v2941 = vand.u32 %v2940, 4294901760
        %2942 = vmatpush.msra.mxu0 %v2941
        %v2943 = vand.u32 %v2673, 4294901760
        %2944 = vmatmul.f32.gmra.mxu0 %v2943
        %v2945 = vpop.f32.mrf.mxu0
        %v2946 = vadd.f32 %v2921, %v2945
        %2947 = vdwg.mxu0
        %2948 = vmatpush.msra.mxu0 0.0
        %2949 = vmatpush.msra.mxu0 0.0
        %2950 = vmatpush.msra.mxu0 0.0
        %2951 = vmatpush.msra.mxu0 0.0
        %2952 = vmatpush.msra.mxu0 0.0
        %2953 = vmatpush.msra.mxu0 0.0
        %2954 = vmatpush.msra.mxu0 0.0
        %2955 = vmatpush.msra.mxu0 0.0
        %2956 = vmatpush.msra.mxu0 0.0
        %2957 = vmatpush.msra.mxu0 0.0
        %2958 = vmatpush.msra.mxu0 0.0
        %2959 = vmatpush.msra.mxu0 0.0
        %2960 = vmatpush.msra.mxu0 0.0
        %2961 = vmatpush.msra.mxu0 0.0
        %2962 = vmatpush.msra.mxu0 %v963
        %2963 = vmatpush.msra.mxu0 %v962
        %v2964 = vand.u32 %v2673, 4294901760
        %2965 = vmatmul.f32.gmra.mxu0 %v2964
        %v2966 = vpop.f32.mrf.mxu0
        %v2967 = vadd.f32 %v2946, %v2966
        %2968 = vdwg.mxu0
        %v2969 = vmax.f32 %v2820, %v2967
        %v2970 = vmul.f32 %v2969, %v2969
        %v2971 = vsel %vm1320, %v2970, 0.0
        %2972 = vadd.xlane.f32.xlu0 %v2971
        %v2973 = vpop.xlane.xlu0 %2972
        %v2974 = vrcp.pop 8.0
        %v2975 = vmul.f32 8.0, %v2974
        %v2976 = vsub.f32 1.0, %v2975
        %v2977 = vmul.f32 %v2974, %v2976
        %v2978 = vadd.f32 %v2974, %v2977
        %vm2979 = vweird.f32 %v2974
        %v2980 = vsel %vm2979, %v2974, %v2978
        %v2981 = vmul.f32 %v2973, %v2980
        %v2982 = vlog2.pop %v2981
        %v2983 = vmul.f32 %v2982, 0.6931472
        %s2984 = scalar_lea.vmem %s924, 8
        %2985 = vst.msk [vmem:[%s2984] sm:$0xff] %vm1944, %v2983
        %v2986 = vsel %vm1320, %v2551, 0.0
        %2987 = vadd.xlane.f32.xlu0 %v2986
        %v2988 = vpop.xlane.xlu0 %2987
        %v2989 = vmul.f32 %v2988, %v2980
        %v2990 = vsub.f32 %v2551, %v2989
        %v2991 = vmul.f32 %v2990, %v2990
        %v2992 = vsel %vm1320, %v2991, 0.0
        %2993 = vadd.xlane.f32.xlu0 %v2992
        %v2994 = vpop.xlane.xlu0 %2993
        %v2995 = vmul.f32 %v2994, %v2980
        %v2996 = vadd.f32 %v2995, 1e-05
        %v2997 = vrsqrt.pop %v2996
        %v2998 = vmul.f32 %v2997, %v2996
        %v2999 = vmul.f32 %v2998, %v2997
        %v3000 = vmul.f32 0.5, %v2999
        %v3001 = vsub.f32 1.5, %v3000
        %v3002 = vmul.f32 %v2997, %v3001
        %vm3003 = vweird.f32 %v2996
        %vm3004 = vweird.f32 %v2997
        %vm3005 = vmor %vm3003, %vm3004
        %v3006 = vsel %vm3005, %v2997, %v3002
        %v3007 = vmul.f32 %v2990, %v3006
        %v3009 = vperm.slane %v2059, 0
        %v3011 = vmul.f32 %v3007, %v3009
        %v3013 = vperm.slane %v2060, 0
        %v3015 = vadd.f32 %v3011, %v3013
        %v3017 = vperm.slane %v2062, 0
        %v3020 = vsel %vm1320, %v3015, 0
        %3022 = vmatpush.msra.mxu0 0.0
        %3023 = vmatpush.msra.mxu0 0.0
        %3024 = vmatpush.msra.mxu0 0.0
        %3025 = vmatpush.msra.mxu0 0.0
        %3026 = vmatpush.msra.mxu0 0.0
        %3027 = vmatpush.msra.mxu0 0.0
        %3028 = vmatpush.msra.mxu0 0.0
        %3029 = vmatpush.msra.mxu0 0.0
        %3030 = vmatpush.msra.mxu0 0.0
        %3031 = vmatpush.msra.mxu0 0.0
        %3032 = vmatpush.msra.mxu0 0.0
        %3033 = vmatpush.msra.mxu0 0.0
        %3034 = vmatpush.msra.mxu0 0.0
        %3035 = vmatpush.msra.mxu0 0.0
        %3036 = vmatpush.msra.mxu0 0.0
        %3037 = vmatpush.msra.mxu0 %v2061
        %3038 = vmatmul.f32.gmra.mxu0 %v3020
        %v3039 = vpop.f32.mrf.mxu0
        %v3040 = vadd.f32 %v3017, %v3039
        %3041 = vdwg.mxu0
        %v3042 = vmul.f32 %v3040, 0.5
        %v3043 = vmul.f32 %v3040, 0.70710677
        %vm3044 = vcmp.ge.f32.partialorder %v3043, 0.0
        %v3045 = vsel %vm3044, 1.0, -1.0
        %v3046 = vand.u32 2147483647, %v3043
        %v3047 = vmul.f32 %v3046, 0.3275911
        %v3048 = vadd.f32 %v3047, 1.0
        %v3049 = vrcp.pop %v3048
        %v3050 = vmul.f32 %v3049, 1.0614054
        %v3051 = vadd.f32 %v3050, -1.4531521
        %v3052 = vmul.f32 %v3051, %v3049
        %v3053 = vadd.f32 %v3052, 1.4214138
        %v3054 = vmul.f32 %v3053, %v3049
        %v3055 = vadd.f32 %v3054, -0.28449672
        %v3056 = vmul.f32 %v3055, %v3049
        %v3057 = vadd.f32 %v3056, 0.2548296
        %v3058 = vmul.f32 %v3057, %v3049
        %v3059 = vsub.f32 0.0, %v3046
        %v3060 = vmul.f32 %v3059, %v3046
        %v3061 = vmul.f32 %v3060, 1.442695
        %v3062 = vpow.pop %v3061
        %v3063 = vmul.f32 %v3058, %v3062
        %v3064 = vsub.f32 1.0, %v3063
        %v3065 = vmul.f32 %v3045, %v3064
        %v3066 = vadd.f32 %v3065, 1.0
        %v3067 = vmul.f32 %v3042, %v3066
        %v3069 = vperm.slane %v2065, 0
        %v3072 = vsel %vm1293, %v3067, 0
        %3074 = vmatpush.msra.mxu0 0.0
        %3075 = vmatpush.msra.mxu0 0.0
        %3076 = vmatpush.msra.mxu0 0.0
        %3077 = vmatpush.msra.mxu0 0.0
        %3078 = vmatpush.msra.mxu0 0.0
        %3079 = vmatpush.msra.mxu0 0.0
        %3080 = vmatpush.msra.mxu0 0.0
        %3081 = vmatpush.msra.mxu0 0.0
        %3082 = vmatpush.msra.mxu0 0.0
        %3083 = vmatpush.msra.mxu0 0.0
        %3084 = vmatpush.msra.mxu0 0.0
        %3085 = vmatpush.msra.mxu0 0.0
        %3086 = vmatpush.msra.mxu0 0.0
        %3087 = vmatpush.msra.mxu0 0.0
        %3088 = vmatpush.msra.mxu0 %v2064
        %3089 = vmatpush.msra.mxu0 %v2063
        %3090 = vmatmul.f32.gmra.mxu0 %v3072
        %v3091 = vpop.f32.mrf.mxu0
        %v3092 = vadd.f32 %v3069, %v3091
        %3093 = vdwg.mxu0
        %v3094 = vadd.f32 %v3092, %v2969
        %3095 = vst.msk [vmem:[%s919] sm:$0xff] %vm1320, %v3094
        %p3096 = scmp.lt.s32.totalorder %s43, 1
        %s3097 = scalar_select %p3096, %s43, 1
        %s3098 = smul.addr %s3097, 8
        %s3099 = scalar_lea.vmem %s23, %s3098
        %p3100 = scmp.lt.s32.totalorder %s43, 1
        %s3101 = scalar_select %p3100, %s43, 1
        %s3102 = smul.addr %s3101, 2
        %s3103 = smul.addr %s3102, 8
        %s3104 = scalar_lea.vmem %s24, %s3103
        // Predicated region
        $region161: #{pallas_forward.1} parent=111 // pred_check
          %p3105 = pneg %p549
        $region162: #{pallas_forward.1} parent=111 // pred_check_branch
          %3107 = sbr.rel (%p3105) target = $region164
        $region163: #{pallas_forward.1} parent=111 // pred_region
          _
        $region164: #{pallas_forward.1} parent=111 // pred_fallthru
          _
        // Predicated region
        $region165: #{pallas_forward.1} parent=111 // pred_check
          %p3108 = pneg %p575
        $region166: #{pallas_forward.1} parent=111 // pred_check_branch
          %3110 = sbr.rel (%p3108) target = $region168
        $region167: #{pallas_forward.1} parent=111 // pred_region
          _
        $region168: #{pallas_forward.1} parent=111 // pred_fallthru
          _
      $region112: #{pallas_forward.1} parent=5 // pred_fallthru
        _
      %p3111 = scmp.le.s32.totalorder 2, %s38
      // Predicated region
      $region169: #{pallas_forward.1} parent=5 // pred_check
        %p3112 = pneg %p3111
      $region170: #{pallas_forward.1} parent=5 // pred_check_branch
        %3114 = sbr.rel (%p3112) target = $region172
      $region171: #{pallas_forward.1} parent=5 // pred_region
        %s3115 = ssub.s32 %s38, 2
        // Predicated region
        $region173: #{pallas_forward.1} parent=171 // pred_check
          %p3116 = pneg %p555
        $region174: #{pallas_forward.1} parent=171 // pred_check_branch
          %3118 = sbr.rel (%p3116) target = $region176
        $region175: #{pallas_forward.1} parent=171 // pred_region
          %p3119 = scmp.lt.s32.totalorder %s44, 1
          %s3120 = scalar_select %p3119, %s44, 1
          %s3121 = smul.addr %s3120, 8
          %s3122 = scalar_lea.vmem %s23, %s3121
        $region176: #{pallas_forward.1} parent=171 // pred_fallthru
          _
        // Predicated region
        $region177: #{pallas_forward.1} parent=171 // pred_check
          %p3123 = pneg %p581
        $region178: #{pallas_forward.1} parent=171 // pred_check_branch
          %3125 = sbr.rel (%p3123) target = $region180
        $region179: #{pallas_forward.1} parent=171 // pred_region
          %p3126 = scmp.lt.s32.totalorder %s44, 1
          %s3127 = scalar_select %p3126, %s44, 1
          %s3128 = smul.addr %s3127, 2
          %s3129 = smul.addr %s3128, 8
          %s3130 = scalar_lea.vmem %s24, %s3129
        $region180: #{pallas_forward.1} parent=171 // pred_fallthru
          _
      $region172: #{pallas_forward.1} parent=5 // pred_fallthru
        _
    $region6: #{pallas_forward.1} parent=1 // loop_footer
      %s42 = sadd.s32 1, %s38
    $region7: #{pallas_forward.1} parent=1 // loop_footer_branch
      %37 = sbr.rel target = $region3
    $region8: #{pallas_forward.1} parent=1 // loop_exit
      _
    %3131 = vsyncpa [#allocation6], 1
    %s3132 = scalar_lea.sflag [#allocation6], 1
    %3133 = vsyncpa %s3132, 1
    %3134 = vsyncpa [#allocation8], 1
    %3135 = vsyncpa [#allocation11], 1
    %3136 = vsyncpa [#allocation14], 1
    %3137 = vsyncpa [#allocation17], 1
    %3138 = vsyncpa [#allocation20], 1
    %3139 = vsyncpa [#allocation23], 1

</llo_original>
